<compile_context>
chip_gen: v6e
topology: v6e:2x2x1
jax: 0.10.0
libtpu: 0.0.40
codegen_flags: <defaults>
</compile_context>

<pallas_src>
import math
import functools

import jax
import jax.numpy as jnp
from jax.experimental import pallas as pl
from jax.experimental.pallas import tpu as pltpu


# ----------------------------------------------------------------------------
# Helpers
# ----------------------------------------------------------------------------

def _pick_tile(dim, candidates=(512, 256, 128)):
    """Largest candidate that evenly divides `dim`; falls back to the full dim
    (a full-dim block always satisfies the (8,128) BlockSpec rule)."""
    for c in candidates:
        if c <= dim and dim % c == 0:
            return c
    return dim


@functools.lru_cache(maxsize=1)
def _vmem_limit_bytes():
    """~3/4 of physical VMEM: ~96 MiB on v5e/v6e (128 MiB), ~48 MiB on v7x (64 MiB)."""
    cap = 64 * 1024 * 1024
    try:
        info = pltpu.get_tpu_info()
        cap = int(getattr(info, "vmem_capacity_bytes", cap))
    except Exception:
        pass
    return int(cap * 3 // 4)


_LN_EPS = 1e-5  # torch.nn.LayerNorm default


# ----------------------------------------------------------------------------
# Fused linear kernel: [LayerNorm prologue] + matmul + bias [+ relu] [+ residual]
# ----------------------------------------------------------------------------

def _linear_kernel(*refs, nk, activation, has_residual, has_ln, eps):
    it = iter(refs)
    x_ref = next(it)
    w_ref = next(it)
    b_ref = next(it)
    g_ref = next(it) if has_ln else None
    beta_ref = next(it) if has_ln else None
    r_ref = next(it) if has_residual else None
    o_ref = next(it)
    acc_ref = next(it) if nk > 1 else None

    x = x_ref[...]                                   # f32 activations
    if has_ln:
        # LayerNorm prologue on the VMEM-resident block (tk == K guaranteed).
        mean = jnp.mean(x, axis=-1, keepdims=True)
        var = jnp.mean(jnp.square(x - mean), axis=-1, keepdims=True)
        x = (x - mean) * jax.lax.rsqrt(var + eps) * g_ref[...] + beta_ref[...]

    # Cast to bf16 in-kernel (rides idle VPU slots); weights are pre-cast bf16.
    part = jnp.dot(x.astype(jnp.bfloat16), w_ref[...],
                   preferred_element_type=jnp.float32)

    def epilogue(acc):
        out = acc + b_ref[...]
        if activation == "relu":
            out = jnp.maximum(out, 0.0)
        if has_residual:
            out = out + r_ref[...]
        o_ref[...] = out.astype(o_ref.dtype)

    if nk == 1:
        # Single K step: write straight to the output (no scratch / pl.when).
        epilogue(part)
    else:
        k = pl.program_id(2)

        @pl.when(k == 0)
        def _():
            acc_ref[...] = jnp.zeros_like(acc_ref)

        acc_ref[...] += part

        @pl.when(k == nk - 1)
        def _():
            epilogue(acc_ref[...])


def linear(x, w, b, *, activation="none", residual=None, ln=None, eps=_LN_EPS):
    """x: (..., K) f32 @ w: (K, N) bf16 + b: (1, N) f32, with optional fused
    LayerNorm prologue (`ln=(gamma, beta)` each (1, K)), relu, residual."""
    lead = x.shape[:-1]
    K = x.shape[-1]
    N = w.shape[-1]
    x2 = x.reshape(-1, K)
    M = x2.shape[0]

    tm = _pick_tile(M)
    tn = _pick_tile(N)
    tk = K if ln is not None else _pick_tile(K)   # LN needs the whole feature row
    nk = K // tk
    grid = (M // tm, N // tn, nk)

    args = [x2, w, b]
    in_specs = [
        pl.BlockSpec((tm, tk), lambda i, j, k: (i, k)),
        pl.BlockSpec((tk, tn), lambda i, j, k: (k, j)),
        pl.BlockSpec((1, tn), lambda i, j, k: (0, j)),
    ]
    if ln is not None:
        g, beta = ln
        args += [g, beta]
        in_specs += [pl.BlockSpec((1, tk), lambda i, j, k: (0, 0)),
                     pl.BlockSpec((1, tk), lambda i, j, k: (0, 0))]
    if residual is not None:
        args.append(residual.reshape(-1, N))
        in_specs.append(pl.BlockSpec((tm, tn), lambda i, j, k: (i, j)))

    scratch = [pltpu.VMEM((tm, tn), jnp.float32)] if nk > 1 else []

    out = pl.pallas_call(
        functools.partial(_linear_kernel, nk=nk, activation=activation,
                          has_residual=residual is not None,
                          has_ln=ln is not None, eps=eps),
        out_shape=jax.ShapeDtypeStruct((M, N), jnp.float32),
        grid=grid,
        in_specs=in_specs,
        out_specs=pl.BlockSpec((tm, tn), lambda i, j, k: (i, j)),
        scratch_shapes=scratch,
        compiler_params=pltpu.CompilerParams(
            dimension_semantics=("parallel", "parallel", "arbitrary"),
            vmem_limit_bytes=_vmem_limit_bytes()),
    )(*args)
    return out.reshape(*lead, N)


# ----------------------------------------------------------------------------
# Fused FFN kernel: LayerNorm + W1 + bias + relu + W2 + bias + residual
# ----------------------------------------------------------------------------

def _ffn_kernel(x_ref, w1_ref, b1_ref, w2_ref, b2_ref, g_ref, beta_ref, r_ref,
                o_ref, *, eps):
    x = x_ref[...]
    mean = jnp.mean(x, axis=-1, keepdims=True)
    var = jnp.mean(jnp.square(x - mean), axis=-1, keepdims=True)
    xn = (x - mean) * jax.lax.rsqrt(var + eps) * g_ref[...] + beta_ref[...]
    h = jnp.dot(xn.astype(jnp.bfloat16), w1_ref[...],
                preferred_element_type=jnp.float32) + b1_ref[...]
    h = jnp.maximum(h, 0.0)
    out = jnp.dot(h.astype(jnp.bfloat16), w2_ref[...],
                  preferred_element_type=jnp.float32) + b2_ref[...] + r_ref[...]
    o_ref[...] = out.astype(o_ref.dtype)


def feed_forward(x, p, ln, *, residual, eps=_LN_EPS):
    """residual + FFN(LN(x)); single kernel when both weight mats fit VMEM."""
    lead = x.shape[:-1]
    D = x.shape[-1]
    Dff = p["w1"].shape[-1]
    gamma, beta = ln

    # Conservative double-buffered bf16 weight footprint.
    weight_bytes = 2 * 2 * (D * Dff * 2 + Dff * D * 2)
    if weight_bytes > _vmem_limit_bytes() // 3:
        # Fallback: two fused-linear kernels (h round-trips through HBM).
        h = linear(x, p["w1"], p["b1"], activation="relu", ln=ln, eps=eps)
        return linear(h, p["w2"], p["b2"], residual=residual, eps=eps)

    x2 = x.reshape(-1, D)
    r2 = residual.reshape(-1, D)
    M = x2.shape[0]
    tm = _pick_tile(M)

    out = pl.pallas_call(
        functools.partial(_ffn_kernel, eps=eps),
        out_shape=jax.ShapeDtypeStruct((M, D), jnp.float32),
        grid=(M // tm,),
        in_specs=[
            pl.BlockSpec((tm, D), lambda i: (i, 0)),
            pl.BlockSpec((D, Dff), lambda i: (0, 0)),
            pl.BlockSpec((1, Dff), lambda i: (0, 0)),
            pl.BlockSpec((Dff, D), lambda i: (0, 0)),
            pl.BlockSpec((1, D), lambda i: (0, 0)),
            pl.BlockSpec((1, D), lambda i: (0, 0)),
            pl.BlockSpec((1, D), lambda i: (0, 0)),
            pl.BlockSpec((tm, D), lambda i: (i, 0)),
        ],
        out_specs=pl.BlockSpec((tm, D), lambda i: (i, 0)),
        compiler_params=pltpu.CompilerParams(
            dimension_semantics=("parallel",),
            vmem_limit_bytes=_vmem_limit_bytes()),
    )(x2, p["w1"], p["b1"], p["w2"], p["b2"], gamma, beta, r2)
    return out.reshape(*lead, D)


# ----------------------------------------------------------------------------
# Attention kernel: q/k/v read as column offsets of fused buffers, per-head
# matmuls in-kernel, head-merged (1, Sq, D) output (no HBM split/transpose).
# ----------------------------------------------------------------------------

def _attention_kernel(*refs, num_heads, d_model, q_loc, k_loc, v_loc):
    *src_refs, m_ref, o_ref = refs
    loaded = [r[0] for r in src_refs]          # each (S_i, W_i) f32

    def get(loc):
        buf_idx, col = loc
        return loaded[buf_idx][:, col:col + d_model].astype(jnp.bfloat16)

    q = get(q_loc)                              # (Sq, D), 1/sqrt(dk) baked into wq
    k = get(k_loc)                              # (Sk, D)
    v = get(v_loc)                              # (Sk, D)
    m = m_ref[0]                                # (Sq or 1, Sk) f32, broadcasts over rows

    dk = d_model // num_heads
    outs = []
    # Head loop keeps only one (Sq, Sk) score tensor live at a time (VMEM-friendly).
    # TODO(synk): add a flash-style Sk-block online-softmax loop for very long sequences.
    for h in range(num_heads):
        sl = slice(h * dk, (h + 1) * dk)
        s = jax.lax.dot_general(q[:, sl], k[:, sl], (((1,), (1,)), ((), ())),
                                preferred_element_type=jnp.float32)   # (Sq, Sk)
        s = jnp.where(m > 0, s, -1e9)
        s = s - jnp.max(s, axis=-1, keepdims=True)
        p = jnp.exp(s)
        p = p * (1.0 / jnp.sum(p, axis=-1, keepdims=True))            # exact reciprocal
        outs.append(jnp.dot(p.astype(jnp.bfloat16), v[:, sl],
                            preferred_element_type=jnp.float32))      # (Sq, dk)

    o_ref[0] = jnp.concatenate(outs, axis=-1).astype(o_ref.dtype)


def attention(srcs, mask, *, num_heads, d_model, q_loc, k_loc, v_loc):
    """srcs: tuple of activation buffers (B, S_i, W_i) f32 holding q/k/v at the
    given (buffer index, column offset) locations.  mask: (B or 1, 1, mq, Sk)."""
    B = srcs[0].shape[0]
    Sq = srcs[q_loc[0]].shape[1]
    Sk = srcs[k_loc[0]].shape[1]

    m = mask.astype(jnp.float32)
    m = m.reshape(m.shape[0], m.shape[-2], m.shape[-1])   # drop the head dim
    if m.shape[0] != B:
        m = jnp.broadcast_to(m, (B, m.shape[1], m.shape[2]))
    mq = m.shape[1]                                        # 1 (padding mask) or Sq (causal)

    in_specs = [pl.BlockSpec((1, s.shape[1], s.shape[2]), lambda b: (b, 0, 0))
                for s in srcs]
    in_specs.append(pl.BlockSpec((1, mq, Sk), lambda b: (b, 0, 0)))

    out = pl.pallas_call(
        functools.partial(_attention_kernel, num_heads=num_heads, d_model=d_model,
                          q_loc=q_loc, k_loc=k_loc, v_loc=v_loc),
        out_shape=jax.ShapeDtypeStruct((B, Sq, d_model), jnp.float32),
        grid=(B,),
        in_specs=in_specs,
        out_specs=pl.BlockSpec((1, Sq, d_model), lambda b: (b, 0, 0)),
        compiler_params=pltpu.CompilerParams(
            dimension_semantics=("parallel",),
            vmem_limit_bytes=_vmem_limit_bytes()),
    )(*srcs, m)
    return out


# ----------------------------------------------------------------------------
# Transformer building blocks
# ----------------------------------------------------------------------------

def self_attention_block(x, mask, p, ln, num_heads):
    """x + Wo(Attn(LN(x)))  — LN fused into the QKV projection, residual fused
    into the output-projection epilogue."""
    D = x.shape[-1]
    qkv = linear(x, p["wqkv"], p["bqkv"], ln=ln)            # (B, S, 3D)
    o = attention((qkv,), mask, num_heads=num_heads, d_model=D,
                  q_loc=(0, 0), k_loc=(0, D), v_loc=(0, 2 * D))
    return linear(o, p["wo"], p["bo"], residual=x)


def cross_attention_block(x, enc_raw, mask, p, ln_q, ln_kv, num_heads):
    """x + Wo(Attn(LN(x), enc_norm(enc_raw)))  — the final encoder LayerNorm is
    recomputed inside the kv projection (cheap VPU work) instead of a separate
    kernel + HBM round-trip."""
    D = x.shape[-1]
    q = linear(x, p["wq"], p["bq"], ln=ln_q)                # (B, Sq, D)
    kv = linear(enc_raw, p["wkv"], p["bkv"], ln=ln_kv)      # (B, Sk, 2D)
    o = attention((q, kv), mask, num_heads=num_heads, d_model=D,
                  q_loc=(0, 0), k_loc=(1, 0), v_loc=(1, D))
    return linear(o, p["wo"], p["bo"], residual=x)


def encoder_layer(x, src_mask, p, num_heads):
    x = self_attention_block(x, src_mask, p["self_attn"],
                             (p["ln1_g"], p["ln1_b"]), num_heads)
    x = feed_forward(x, p["ffn"], (p["ln2_g"], p["ln2_b"]), residual=x)
    return x


def decoder_layer(x, enc_raw, src_mask, tgt_mask, p, enc_norm, num_heads):
    x = self_attention_block(x, tgt_mask, p["self_attn"],
                             (p["ln1_g"], p["ln1_b"]), num_heads)
    x = cross_attention_block(x, enc_raw, src_mask, p["cross_attn"],
                              (p["ln2_g"], p["ln2_b"]), enc_norm, num_heads)
    x = feed_forward(x, p["ffn"], (p["ln3_g"], p["ln3_b"]), residual=x)
    return x


def transformer_forward(params, src, tgt, src_mask, tgt_mask, *,
                        d_model, num_heads, vocab_size):
    scale = math.sqrt(d_model)

    # ---- encode ----  (embedding gather + PE add stay in plain JAX)
    x = jnp.take(params["src_emb"], src, axis=0) * scale
    x = x + params["pe"][None, : src.shape[1], :]
    for lp in params["encoder_layers"]:
        x = encoder_layer(x, src_mask, lp, num_heads)
    enc_raw = x   # final encoder LN fused into every decoder kv projection

    # ---- decode ----
    y = jnp.take(params["tgt_emb"], tgt, axis=0) * scale
    y = y + params["pe"][None, : tgt.shape[1], :]
    enc_norm = (params["enc_norm_g"], params["enc_norm_b"])
    for lp in params["decoder_layers"]:
        y = decoder_layer(y, enc_raw, src_mask, tgt_mask, lp, enc_norm, num_heads)

    # ---- final projection ----  (dec norm fused; vocab padded to 128 lanes)
    # TODO(synk): FinalLayer may apply log_softmax in the reference; returning raw logits.
    logits = linear(y, params["final_w"], params["final_b"],
                    ln=(params["dec_norm_g"], params["dec_norm_b"]))
    return logits[..., :vocab_size]


# ----------------------------------------------------------------------------
# Deterministic parameter initialization (pre-fused, pre-bf16 weights)
# ----------------------------------------------------------------------------

def _make_pe(max_len, d_model):
    pos = jnp.arange(max_len, dtype=jnp.float32)[:, None]
    i = jnp.arange(0, d_model, 2, dtype=jnp.float32)
    div = jnp.exp(-math.log(10000.0) * i / d_model)
    pe = jnp.zeros((max_len, d_model), dtype=jnp.float32)
    pe = pe.at[:, 0::2].set(jnp.sin(pos * div))
    pe = pe.at[:, 1::2].set(jnp.cos(pos * div))
    return pe


def init_params(key, vocab_size, d_model, d_ff, num_heads, num_layers, max_len):
    keys = iter(jax.random.split(key, 256))
    dk = d_model // num_heads
    q_scale = 1.0 / math.sqrt(dk)   # attention scale baked into the q projection

    def w(shape, std=0.02):
        return jax.random.normal(next(keys), shape, dtype=jnp.float32) * std

    def self_attn_params():
        wq, wk, wv, wo = (w((d_model, d_model)) for _ in range(4))
        return {
            "wqkv": jnp.concatenate([wq * q_scale, wk, wv], axis=1).astype(jnp.bfloat16),
            "bqkv": jnp.zeros((1, 3 * d_model), jnp.float32),
            "wo": wo.astype(jnp.bfloat16),
            "bo": jnp.zeros((1, d_model), jnp.float32),
        }

    def cross_attn_params():
        wq, wk, wv, wo = (w((d_model, d_model)) for _ in range(4))
        return {
            "wq": (wq * q_scale).astype(jnp.bfloat16),
            "bq": jnp.zeros((1, d_model), jnp.float32),
            "wkv": jnp.concatenate([wk, wv], axis=1).astype(jnp.bfloat16),
            "bkv": jnp.zeros((1, 2 * d_model), jnp.float32),
            "wo": wo.astype(jnp.bfloat16),
            "bo": jnp.zeros((1, d_model), jnp.float32),
        }

    def ffn_params():
        return {
            "w1": w((d_model, d_ff)).astype(jnp.bfloat16),
            "b1": jnp.zeros((1, d_ff), jnp.float32),
            "w2": w((d_ff, d_model)).astype(jnp.bfloat16),
            "b2": jnp.zeros((1, d_model), jnp.float32),
        }

    def ln():
        return jnp.ones((1, d_model), jnp.float32), jnp.zeros((1, d_model), jnp.float32)

    enc_layers = []
    for _ in range(num_layers):
        g1, b1 = ln(); g2, b2 = ln()
        enc_layers.append({
            "self_attn": self_attn_params(), "ffn": ffn_params(),
            "ln1_g": g1, "ln1_b": b1, "ln2_g": g2, "ln2_b": b2,
        })

    dec_layers = []
    for _ in range(num_layers):
        g1, b1 = ln(); g2, b2 = ln(); g3, b3 = ln()
        dec_layers.append({
            "self_attn": self_attn_params(), "cross_attn": cross_attn_params(),
            "ffn": ffn_params(),
            "ln1_g": g1, "ln1_b": b1, "ln2_g": g2, "ln2_b": b2, "ln3_g": g3, "ln3_b": b3,
        })

    eng, enb = ln()
    dng, dnb = ln()

    # Lane-dense final projection: pad vocab to a multiple of 128.
    v_pad = ((vocab_size + 127) // 128) * 128
    fw = w((d_model, vocab_size))
    final_w = jnp.zeros((d_model, v_pad), jnp.float32).at[:, :vocab_size].set(fw)

    return {
        "src_emb": w((vocab_size, d_model), std=1.0),
        "tgt_emb": w((vocab_size, d_model), std=1.0),
        "pe": _make_pe(max_len, d_model),
        "encoder_layers": enc_layers,
        "decoder_layers": dec_layers,
        "enc_norm_g": eng, "enc_norm_b": enb,
        "dec_norm_g": dng, "dec_norm_b": dnb,
        "final_w": final_w.astype(jnp.bfloat16),
        "final_b": jnp.zeros((1, v_pad), jnp.float32),
    }


# ----------------------------------------------------------------------------
# Main
# ----------------------------------------------------------------------------

if __name__ == "__main__":
    VOCAB = 50
    D_MODEL = 32
    D_FF = 64
    HEADS = 4
    LAYERS = 2
    MAX_LEN = 16
    B = 2
    S_SRC = 8
    S_TGT = 8

    root = jax.random.PRNGKey(0)
    k_par, k_src, k_tgt = jax.random.split(root, 3)

    params = init_params(k_par, VOCAB, D_MODEL, D_FF, HEADS, LAYERS, MAX_LEN)

    src = jax.random.randint(k_src, (B, S_SRC), 0, VOCAB, dtype=jnp.int32)
    tgt = jax.random.randint(k_tgt, (B, S_TGT), 0, VOCAB, dtype=jnp.int32)

    # src mask: all tokens visible; tgt mask: causal.
    src_mask = jnp.ones((B, 1, 1, S_SRC), dtype=jnp.float32)
    causal = jnp.tril(jnp.ones((S_TGT, S_TGT), dtype=jnp.float32))
    tgt_mask = jnp.broadcast_to(causal[None, None, :, :], (B, 1, S_TGT, S_TGT))

    fwd = jax.jit(functools.partial(transformer_forward, d_model=D_MODEL,
                                    num_heads=HEADS, vocab_size=VOCAB))
    logits = fwd(params, src, tgt, src_mask, tgt_mask)
    jax.block_until_ready(logits)

    assert logits.shape == (B, S_TGT, VOCAB), logits.shape
    assert bool(jnp.all(jnp.isfinite(logits)))
    print("KERNEL_OK")
</pallas_src>

<mosaic_0001>
module attributes {stable_mosaic.version = 11 : i64} {
  func.func @_linear_kernel(%arg0: i32, %arg1: i32, %arg2: i32, %arg3: memref<16x32xf32, #tpu.memory_space<vmem>>, %arg4: memref<32x32xbf16, #tpu.memory_space<vmem>>, %arg5: memref<1x32xf32, #tpu.memory_space<vmem>>, %arg6: memref<16x32xf32, #tpu.memory_space<vmem>>, %arg7: memref<16x32xf32, #tpu.memory_space<vmem>>) attributes {dimension_semantics = [#tpu.dimension_semantics<parallel>, #tpu.dimension_semantics<parallel>, #tpu.dimension_semantics<arbitrary>], iteration_bounds = array<i64: 1, 1, 1>, scalar_prefetch = 0 : i64, scratch_operands = 0 : i64, tpu.core_type = #tpu.core_type<tc>, window_params = [{transform_indices = @transform_0, window_bounds = array<i64: 16, 32>}, {transform_indices = @transform_1, window_bounds = array<i64: 32, 32>}, {transform_indices = @transform_2, window_bounds = array<i64: 1, 32>}, {transform_indices = @transform_3, window_bounds = array<i64: 16, 32>}, {transform_indices = @transform_4, window_bounds = array<i64: 16, 32>}]} {
    %c0 = arith.constant 0 : index
    %c0_0 = arith.constant 0 : index
    %0 = vector.load %arg3[%c0, %c0_0] : memref<16x32xf32, #tpu.memory_space<vmem>>, vector<16x32xf32>
    %1 = arith.truncf %0 : vector<16x32xf32> to vector<16x32xbf16>
    %c0_1 = arith.constant 0 : index
    %c0_2 = arith.constant 0 : index
    %2 = vector.load %arg4[%c0_1, %c0_2] : memref<32x32xbf16, #tpu.memory_space<vmem>>, vector<32x32xbf16>
    %cst = arith.constant dense<0.000000e+00> : vector<16x32xf32>
    %3 = tpu.matmul %1, %2, %cst {dimension_numbers = #tpu.dot_dimension_numbers<[1], [0], [0], [1], [0, 0, 1, 1], [], []>} : vector<16x32xbf16>, vector<32x32xbf16>, vector<16x32xf32> -> vector<16x32xf32>
    %c0_3 = arith.constant 0 : index
    %c0_4 = arith.constant 0 : index
    %4 = vector.load %arg5[%c0_3, %c0_4] : memref<1x32xf32, #tpu.memory_space<vmem>>, vector<1x32xf32>
    %5 = vector.broadcast %4 : vector<1x32xf32> to vector<16x32xf32>
    %6 = arith.addf %3, %5 : vector<16x32xf32>
    %c0_5 = arith.constant 0 : index
    %c0_6 = arith.constant 0 : index
    %7 = vector.load %arg6[%c0_5, %c0_6] : memref<16x32xf32, #tpu.memory_space<vmem>>, vector<16x32xf32>
    %8 = arith.addf %6, %7 : vector<16x32xf32>
    %c0_7 = arith.constant 0 : index
    %c0_8 = arith.constant 0 : index
    %9 = vector.load %arg7[%c0_7, %c0_8] : memref<16x32xf32, #tpu.memory_space<vmem>>, vector<16x32xf32>
    tpu.vector_store %arg7[%c0_7, %c0_8], %8 {strides = array<i32>} : memref<16x32xf32, #tpu.memory_space<vmem>>, vector<16x32xf32>,
    return
  }
  func.func @transform_0(%arg0: i32, %arg1: i32, %arg2: i32) -> (i32, i32) {
    %c0_i32 = arith.constant 0 : i32
    return %arg0, %arg2 : i32, i32
  }
  func.func @transform_1(%arg0: i32, %arg1: i32, %arg2: i32) -> (i32, i32) {
    %c0_i32 = arith.constant 0 : i32
    return %arg2, %arg1 : i32, i32
  }
  func.func @transform_2(%arg0: i32, %arg1: i32, %arg2: i32) -> (i32, i32) {
    %c0_i32 = arith.constant 0 : i32
    %c0_i32_0 = arith.constant 0 : i32
    return %c0_i32, %arg1 : i32, i32
  }
  func.func @transform_3(%arg0: i32, %arg1: i32, %arg2: i32) -> (i32, i32) {
    %c0_i32 = arith.constant 0 : i32
    return %arg0, %arg1 : i32, i32
  }
  func.func @transform_4(%arg0: i32, %arg1: i32, %arg2: i32) -> (i32, i32) {
    %c0_i32 = arith.constant 0 : i32
    return %arg0, %arg1 : i32, i32
  }
}

module attributes {stable_mosaic.version = 11 : i64} {
  func.func @_attention_kernel(%arg0: i32, %arg1: memref<1x8x96xf32, #tpu.memory_space<vmem>>, %arg2: memref<1x1x8xf32, #tpu.memory_space<vmem>>, %arg3: memref<1x8x32xf32, #tpu.memory_space<vmem>>) attributes {dimension_semantics = [#tpu.dimension_semantics<parallel>], iteration_bounds = array<i64: 2>, scalar_prefetch = 0 : i64, scratch_operands = 0 : i64, tpu.core_type = #tpu.core_type<tc>, window_params = [{transform_indices = @transform_0, window_bounds = array<i64: 1, 8, 96>}, {transform_indices = @transform_1, window_bounds = array<i64: 1, 1, 8>}, {transform_indices = @transform_2, window_bounds = array<i64: 1, 8, 32>}]} {
    %c0 = arith.constant 0 : index
    %c0_0 = arith.constant 0 : index
    %c0_1 = arith.constant 0 : index
    %0 = vector.load %arg1[%c0, %c0_0, %c0_1] : memref<1x8x96xf32, #tpu.memory_space<vmem>>, vector<1x8x96xf32>
    %1 = vector.shape_cast %0 : vector<1x8x96xf32> to vector<8x96xf32>
    %2 = vector.extract_strided_slice %1 {offsets = [0, 0], sizes = [8, 32], strides = [1, 1]} : vector<8x96xf32> to vector<8x32xf32>
    %3 = arith.truncf %2 : vector<8x32xf32> to vector<8x32xbf16>
    %4 = vector.extract_strided_slice %1 {offsets = [0, 32], sizes = [8, 32], strides = [1, 1]} : vector<8x96xf32> to vector<8x32xf32>
    %5 = arith.truncf %4 : vector<8x32xf32> to vector<8x32xbf16>
    %6 = vector.extract_strided_slice %1 {offsets = [0, 64], sizes = [8, 32], strides = [1, 1]} : vector<8x96xf32> to vector<8x32xf32>
    %7 = arith.truncf %6 : vector<8x32xf32> to vector<8x32xbf16>
    %c0_2 = arith.constant 0 : index
    %c0_3 = arith.constant 0 : index
    %c0_4 = arith.constant 0 : index
    %8 = vector.load %arg2[%c0_2, %c0_3, %c0_4] : memref<1x1x8xf32, #tpu.memory_space<vmem>>, vector<1x1x8xf32>
    %9 = vector.shape_cast %8 : vector<1x1x8xf32> to vector<1x8xf32>
    %10 = vector.extract_strided_slice %3 {offsets = [0, 0], sizes = [8, 8], strides = [1, 1]} : vector<8x32xbf16> to vector<8x8xbf16>
    %11 = vector.extract_strided_slice %5 {offsets = [0, 0], sizes = [8, 8], strides = [1, 1]} : vector<8x32xbf16> to vector<8x8xbf16>
    %cst = arith.constant dense<0.000000e+00> : vector<8x8xf32>
    %12 = tpu.matmul %10, %11, %cst {dimension_numbers = #tpu.dot_dimension_numbers<[1], [1], [0], [0], [0, 0, 1, 0], [], []>} : vector<8x8xbf16>, vector<8x8xbf16>, vector<8x8xf32> -> vector<8x8xf32>
    %cst_5 = arith.constant 0.000000e+00 : f32
    %13 = vector.broadcast %cst_5 : f32 to vector<1x8xf32>
    %14 = arith.cmpf ogt, %9, %13 : vector<1x8xf32>
    %cst_6 = arith.constant -1.000000e+09 : f32
    %15 = vector.shape_cast %14 : vector<1x8xi1> to vector<1x8xi1>
    %16 = vector.broadcast %15 : vector<1x8xi1> to vector<8x8xi1>
    %17 = vector.broadcast %cst_6 : f32 to vector<8x8xf32>
    %18 = arith.select %16, %12, %17 : vector<8x8xi1>, vector<8x8xf32>
    %cst_7 = arith.constant dense<0xFF800000> : vector<8xf32>
    %19 = vector.multi_reduction <maximumf>, %18, %cst_7 [1] : vector<8x8xf32> to vector<8xf32>
    %20 = vector.shape_cast %19 : vector<8xf32> to vector<8x1xf32>
    %21 = vector.broadcast %20 : vector<8x1xf32> to vector<8x8xf32>
    %22 = arith.subf %18, %21 : vector<8x8xf32>
    %23 = math.exp %22 : vector<8x8xf32>
    %cst_8 = arith.constant dense<0.000000e+00> : vector<8xf32>
    %24 = vector.multi_reduction <add>, %23, %cst_8 [1] : vector<8x8xf32> to vector<8xf32>
    %25 = vector.shape_cast %24 : vector<8xf32> to vector<8x1xf32>
    %cst_9 = arith.constant 1.000000e+00 : f32
    %26 = vector.broadcast %cst_9 : f32 to vector<8x1xf32>
    %27 = arith.divf %26, %25 : vector<8x1xf32>
    %28 = vector.broadcast %27 : vector<8x1xf32> to vector<8x8xf32>
    %29 = arith.mulf %23, %28 : vector<8x8xf32>
    %30 = arith.truncf %29 : vector<8x8xf32> to vector<8x8xbf16>
    %31 = vector.extract_strided_slice %7 {offsets = [0, 0], sizes = [8, 8], strides = [1, 1]} : vector<8x32xbf16> to vector<8x8xbf16>
    %cst_10 = arith.constant dense<0.000000e+00> : vector<8x8xf32>
    %32 = tpu.matmul %30, %31, %cst_10 {dimension_numbers = #tpu.dot_dimension_numbers<[1], [0], [0], [1], [0, 0, 1, 1], [], []>} : vector<8x8xbf16>, vector<8x8xbf16>, vector<8x8xf32> -> vector<8x8xf32>
    %33 = vector.extract_strided_slice %3 {offsets = [0, 8], sizes = [8, 8], strides = [1, 1]} : vector<8x32xbf16> to vector<8x8xbf16>
    %34 = vector.extract_strided_slice %5 {offsets = [0, 8], sizes = [8, 8], strides = [1, 1]} : vector<8x32xbf16> to vector<8x8xbf16>
    %cst_11 = arith.constant dense<0.000000e+00> : vector<8x8xf32>
    %35 = tpu.matmul %33, %34, %cst_11 {dimension_numbers = #tpu.dot_dimension_numbers<[1], [1], [0], [0], [0, 0, 1, 0], [], []>} : vector<8x8xbf16>, vector<8x8xbf16>, vector<8x8xf32> -> vector<8x8xf32>
    %cst_12 = arith.constant 0.000000e+00 : f32
    %36 = vector.broadcast %cst_12 : f32 to vector<1x8xf32>
    %37 = arith.cmpf ogt, %9, %36 : vector<1x8xf32>
    %cst_13 = arith.constant -1.000000e+09 : f32
    %38 = vector.shape_cast %37 : vector<1x8xi1> to vector<1x8xi1>
    %39 = vector.broadcast %38 : vector<1x8xi1> to vector<8x8xi1>
    %40 = vector.broadcast %cst_13 : f32 to vector<8x8xf32>
    %41 = arith.select %39, %35, %40 : vector<8x8xi1>, vector<8x8xf32>
    %cst_14 = arith.constant dense<0xFF800000> : vector<8xf32>
    %42 = vector.multi_reduction <maximumf>, %41, %cst_14 [1] : vector<8x8xf32> to vector<8xf32>
    %43 = vector.shape_cast %42 : vector<8xf32> to vector<8x1xf32>
    %44 = vector.broadcast %43 : vector<8x1xf32> to vector<8x8xf32>
    %45 = arith.subf %41, %44 : vector<8x8xf32>
    %46 = math.exp %45 : vector<8x8xf32>
    %cst_15 = arith.constant dense<0.000000e+00> : vector<8xf32>
    %47 = vector.multi_reduction <add>, %46, %cst_15 [1] : vector<8x8xf32> to vector<8xf32>
    %48 = vector.shape_cast %47 : vector<8xf32> to vector<8x1xf32>
    %cst_16 = arith.constant 1.000000e+00 : f32
    %49 = vector.broadcast %cst_16 : f32 to vector<8x1xf32>
    %50 = arith.divf %49, %48 : vector<8x1xf32>
    %51 = vector.broadcast %50 : vector<8x1xf32> to vector<8x8xf32>
    %52 = arith.mulf %46, %51 : vector<8x8xf32>
    %53 = arith.truncf %52 : vector<8x8xf32> to vector<8x8xbf16>
    %54 = vector.extract_strided_slice %7 {offsets = [0, 8], sizes = [8, 8], strides = [1, 1]} : vector<8x32xbf16> to vector<8x8xbf16>
    %cst_17 = arith.constant dense<0.000000e+00> : vector<8x8xf32>
    %55 = tpu.matmul %53, %54, %cst_17 {dimension_numbers = #tpu.dot_dimension_numbers<[1], [0], [0], [1], [0, 0, 1, 1], [], []>} : vector<8x8xbf16>, vector<8x8xbf16>, vector<8x8xf32> -> vector<8x8xf32>
    %56 = vector.extract_strided_slice %3 {offsets = [0, 16], sizes = [8, 8], strides = [1, 1]} : vector<8x32xbf16> to vector<8x8xbf16>
    %57 = vector.extract_strided_slice %5 {offsets = [0, 16], sizes = [8, 8], strides = [1, 1]} : vector<8x32xbf16> to vector<8x8xbf16>
    %cst_18 = arith.constant dense<0.000000e+00> : vector<8x8xf32>
    %58 = tpu.matmul %56, %57, %cst_18 {dimension_numbers = #tpu.dot_dimension_numbers<[1], [1], [0], [0], [0, 0, 1, 0], [], []>} : vector<8x8xbf16>, vector<8x8xbf16>, vector<8x8xf32> -> vector<8x8xf32>
    %cst_19 = arith.constant 0.000000e+00 : f32
    %59 = vector.broadcast %cst_19 : f32 to vector<1x8xf32>
    %60 = arith.cmpf ogt, %9, %59 : vector<1x8xf32>
    %cst_20 = arith.constant -1.000000e+09 : f32
    %61 = vector.shape_cast %60 : vector<1x8xi1> to vector<1x8xi1>
    %62 = vector.broadcast %61 : vector<1x8xi1> to vector<8x8xi1>
    %63 = vector.broadcast %cst_20 : f32 to vector<8x8xf32>
    %64 = arith.select %62, %58, %63 : vector<8x8xi1>, vector<8x8xf32>
    %cst_21 = arith.constant dense<0xFF800000> : vector<8xf32>
    %65 = vector.multi_reduction <maximumf>, %64, %cst_21 [1] : vector<8x8xf32> to vector<8xf32>
    %66 = vector.shape_cast %65 : vector<8xf32> to vector<8x1xf32>
    %67 = vector.broadcast %66 : vector<8x1xf32> to vector<8x8xf32>
    %68 = arith.subf %64, %67 : vector<8x8xf32>
    %69 = math.exp %68 : vector<8x8xf32>
    %cst_22 = arith.constant dense<0.000000e+00> : vector<8xf32>
    %70 = vector.multi_reduction <add>, %69, %cst_22 [1] : vector<8x8xf32> to vector<8xf32>
    %71 = vector.shape_cast %70 : vector<8xf32> to vector<8x1xf32>
    %cst_23 = arith.constant 1.000000e+00 : f32
    %72 = vector.broadcast %cst_23 : f32 to vector<8x1xf32>
    %73 = arith.divf %72, %71 : vector<8x1xf32>
    %74 = vector.broadcast %73 : vector<8x1xf32> to vector<8x8xf32>
    %75 = arith.mulf %69, %74 : vector<8x8xf32>
    %76 = arith.truncf %75 : vector<8x8xf32> to vector<8x8xbf16>
    %77 = vector.extract_strided_slice %7 {offsets = [0, 16], sizes = [8, 8], strides = [1, 1]} : vector<8x32xbf16> to vector<8x8xbf16>
    %cst_24 = arith.constant dense<0.000000e+00> : vector<8x8xf32>
    %78 = tpu.matmul %76, %77, %cst_24 {dimension_numbers = #tpu.dot_dimension_numbers<[1], [0], [0], [1], [0, 0, 1, 1], [], []>} : vector<8x8xbf16>, vector<8x8xbf16>, vector<8x8xf32> -> vector<8x8xf32>
    %79 = vector.extract_strided_slice %3 {offsets = [0, 24], sizes = [8, 8], strides = [1, 1]} : vector<8x32xbf16> to vector<8x8xbf16>
    %80 = vector.extract_strided_slice %5 {offsets = [0, 24], sizes = [8, 8], strides = [1, 1]} : vector<8x32xbf16> to vector<8x8xbf16>
    %cst_25 = arith.constant dense<0.000000e+00> : vector<8x8xf32>
    %81 = tpu.matmul %79, %80, %cst_25 {dimension_numbers = #tpu.dot_dimension_numbers<[1], [1], [0], [0], [0, 0, 1, 0], [], []>} : vector<8x8xbf16>, vector<8x8xbf16>, vector<8x8xf32> -> vector<8x8xf32>
    %cst_26 = arith.constant 0.000000e+00 : f32
    %82 = vector.broadcast %cst_26 : f32 to vector<1x8xf32>
    %83 = arith.cmpf ogt, %9, %82 : vector<1x8xf32>
    %cst_27 = arith.constant -1.000000e+09 : f32
    %84 = vector.shape_cast %83 : vector<1x8xi1> to vector<1x8xi1>
    %85 = vector.broadcast %84 : vector<1x8xi1> to vector<8x8xi1>
    %86 = vector.broadcast %cst_27 : f32 to vector<8x8xf32>
    %87 = arith.select %85, %81, %86 : vector<8x8xi1>, vector<8x8xf32>
    %cst_28 = arith.constant dense<0xFF800000> : vector<8xf32>
    %88 = vector.multi_reduction <maximumf>, %87, %cst_28 [1] : vector<8x8xf32> to vector<8xf32>
    %89 = vector.shape_cast %88 : vector<8xf32> to vector<8x1xf32>
    %90 = vector.broadcast %89 : vector<8x1xf32> to vector<8x8xf32>
    %91 = arith.subf %87, %90 : vector<8x8xf32>
    %92 = math.exp %91 : vector<8x8xf32>
    %cst_29 = arith.constant dense<0.000000e+00> : vector<8xf32>
    %93 = vector.multi_reduction <add>, %92, %cst_29 [1] : vector<8x8xf32> to vector<8xf32>
    %94 = vector.shape_cast %93 : vector<8xf32> to vector<8x1xf32>
    %cst_30 = arith.constant 1.000000e+00 : f32
    %95 = vector.broadcast %cst_30 : f32 to vector<8x1xf32>
    %96 = arith.divf %95, %94 : vector<8x1xf32>
    %97 = vector.broadcast %96 : vector<8x1xf32> to vector<8x8xf32>
    %98 = arith.mulf %92, %97 : vector<8x8xf32>
    %99 = arith.truncf %98 : vector<8x8xf32> to vector<8x8xbf16>
    %100 = vector.extract_strided_slice %7 {offsets = [0, 24], sizes = [8, 8], strides = [1, 1]} : vector<8x32xbf16> to vector<8x8xbf16>
    %cst_31 = arith.constant dense<0.000000e+00> : vector<8x8xf32>
    %101 = tpu.matmul %99, %100, %cst_31 {dimension_numbers = #tpu.dot_dimension_numbers<[1], [0], [0], [1], [0, 0, 1, 1], [], []>} : vector<8x8xbf16>, vector<8x8xbf16>, vector<8x8xf32> -> vector<8x8xf32>
    %102 = tpu.concatenate %32, %55, %78, %101 in 1 : vector<8x8xf32>, vector<8x8xf32>, vector<8x8xf32>, vector<8x8xf32> -> vector<8x32xf32>
    %c0_32 = arith.constant 0 : index
    %c0_33 = arith.constant 0 : index
    %c0_34 = arith.constant 0 : index
    %103 = vector.load %arg3[%c0_32, %c0_33, %c0_34] : memref<1x8x32xf32, #tpu.memory_space<vmem>>, vector<1x8x32xf32>
    %104 = vector.shape_cast %103 : vector<1x8x32xf32> to vector<8x32xf32>
    %105 = vector.shape_cast %102 : vector<8x32xf32> to vector<1x8x32xf32>
    tpu.vector_store %arg3[%c0_32, %c0_33, %c0_34], %105 {strides = array<i32>} : memref<1x8x32xf32, #tpu.memory_space<vmem>>, vector<1x8x32xf32>,
    return
  }
  func.func @transform_0(%arg0: i32) -> (i32, i32, i32) {
    %c0_i32 = arith.constant 0 : i32
    %c0_i32_0 = arith.constant 0 : i32
    %c0_i32_1 = arith.constant 0 : i32
    return %arg0, %c0_i32, %c0_i32_0 : i32, i32, i32
  }
  func.func @transform_1(%arg0: i32) -> (i32, i32, i32) {
    %c0_i32 = arith.constant 0 : i32
    %c0_i32_0 = arith.constant 0 : i32
    %c0_i32_1 = arith.constant 0 : i32
    return %arg0, %c0_i32, %c0_i32_0 : i32, i32, i32
  }
  func.func @transform_2(%arg0: i32) -> (i32, i32, i32) {
    %c0_i32 = arith.constant 0 : i32
    %c0_i32_0 = arith.constant 0 : i32
    %c0_i32_1 = arith.constant 0 : i32
    return %arg0, %c0_i32, %c0_i32_0 : i32, i32, i32
  }
}

module attributes {stable_mosaic.version = 11 : i64} {
  func.func @_linear_kernel(%arg0: i32, %arg1: i32, %arg2: i32, %arg3: memref<16x32xf32, #tpu.memory_space<vmem>>, %arg4: memref<32x96xbf16, #tpu.memory_space<vmem>>, %arg5: memref<1x96xf32, #tpu.memory_space<vmem>>, %arg6: memref<1x32xf32, #tpu.memory_space<vmem>>, %arg7: memref<1x32xf32, #tpu.memory_space<vmem>>, %arg8: memref<16x96xf32, #tpu.memory_space<vmem>>) attributes {dimension_semantics = [#tpu.dimension_semantics<parallel>, #tpu.dimension_semantics<parallel>, #tpu.dimension_semantics<arbitrary>], iteration_bounds = array<i64: 1, 1, 1>, scalar_prefetch = 0 : i64, scratch_operands = 0 : i64, tpu.core_type = #tpu.core_type<tc>, window_params = [{transform_indices = @transform_0, window_bounds = array<i64: 16, 32>}, {transform_indices = @transform_1, window_bounds = array<i64: 32, 96>}, {transform_indices = @transform_2, window_bounds = array<i64: 1, 96>}, {pipeline_mode = #tpu.pipeline_mode<synchronous>, transform_indices = @transform_3, window_bounds = array<i64: 1, 32>}, {pipeline_mode = #tpu.pipeline_mode<synchronous>, transform_indices = @transform_4, window_bounds = array<i64: 1, 32>}, {transform_indices = @transform_5, window_bounds = array<i64: 16, 96>}]} {
    %c0 = arith.constant 0 : index
    %c0_0 = arith.constant 0 : index
    %0 = vector.load %arg3[%c0, %c0_0] : memref<16x32xf32, #tpu.memory_space<vmem>>, vector<16x32xf32>
    %cst = arith.constant dense<0.000000e+00> : vector<16xf32>
    %1 = vector.multi_reduction <add>, %0, %cst [1] : vector<16x32xf32> to vector<16xf32>
    %2 = vector.shape_cast %1 : vector<16xf32> to vector<16x1xf32>
    %cst_1 = arith.constant 3.200000e+01 : f32
    %3 = vector.broadcast %cst_1 : f32 to vector<16x1xf32>
    %4 = arith.divf %2, %3 : vector<16x1xf32>
    %5 = vector.broadcast %4 : vector<16x1xf32> to vector<16x32xf32>
    %6 = arith.subf %0, %5 : vector<16x32xf32>
    %7 = arith.mulf %6, %6 : vector<16x32xf32>
    %cst_2 = arith.constant dense<0.000000e+00> : vector<16xf32>
    %8 = vector.multi_reduction <add>, %7, %cst_2 [1] : vector<16x32xf32> to vector<16xf32>
    %9 = vector.shape_cast %8 : vector<16xf32> to vector<16x1xf32>
    %cst_3 = arith.constant 3.200000e+01 : f32
    %10 = vector.broadcast %cst_3 : f32 to vector<16x1xf32>
    %11 = arith.divf %9, %10 : vector<16x1xf32>
    %12 = vector.broadcast %4 : vector<16x1xf32> to vector<16x32xf32>
    %13 = arith.subf %0, %12 : vector<16x32xf32>
    %cst_4 = arith.constant 9.99999974E-6 : f32
    %14 = vector.broadcast %cst_4 : f32 to vector<16x1xf32>
    %15 = arith.addf %11, %14 : vector<16x1xf32>
    %16 = math.rsqrt %15 : vector<16x1xf32>
    %17 = vector.broadcast %16 : vector<16x1xf32> to vector<16x32xf32>
    %18 = arith.mulf %13, %17 : vector<16x32xf32>
    %c0_5 = arith.constant 0 : index
    %c0_6 = arith.constant 0 : index
    %19 = vector.load %arg6[%c0_5, %c0_6] : memref<1x32xf32, #tpu.memory_space<vmem>>, vector<1x32xf32>
    %20 = vector.broadcast %19 : vector<1x32xf32> to vector<16x32xf32>
    %21 = arith.mulf %18, %20 : vector<16x32xf32>
    %c0_7 = arith.constant 0 : index
    %c0_8 = arith.constant 0 : index
    %22 = vector.load %arg7[%c0_7, %c0_8] : memref<1x32xf32, #tpu.memory_space<vmem>>, vector<1x32xf32>
    %23 = vector.broadcast %22 : vector<1x32xf32> to vector<16x32xf32>
    %24 = arith.addf %21, %23 : vector<16x32xf32>
    %25 = arith.truncf %24 : vector<16x32xf32> to vector<16x32xbf16>
    %c0_9 = arith.constant 0 : index
    %c0_10 = arith.constant 0 : index
    %26 = vector.load %arg4[%c0_9, %c0_10] : memref<32x96xbf16, #tpu.memory_space<vmem>>, vector<32x96xbf16>
    %cst_11 = arith.constant dense<0.000000e+00> : vector<16x96xf32>
    %27 = tpu.matmul %25, %26, %cst_11 {dimension_numbers = #tpu.dot_dimension_numbers<[1], [0], [0], [1], [0, 0, 1, 1], [], []>} : vector<16x32xbf16>, vector<32x96xbf16>, vector<16x96xf32> -> vector<16x96xf32>
    %c0_12 = arith.constant 0 : index
    %c0_13 = arith.constant 0 : index
    %28 = vector.load %arg5[%c0_12, %c0_13] : memref<1x96xf32, #tpu.memory_space<vmem>>, vector<1x96xf32>
    %29 = vector.broadcast %28 : vector<1x96xf32> to vector<16x96xf32>
    %30 = arith.addf %27, %29 : vector<16x96xf32>
    %c0_14 = arith.constant 0 : index
    %c0_15 = arith.constant 0 : index
    %31 = vector.load %arg8[%c0_14, %c0_15] : memref<16x96xf32, #tpu.memory_space<vmem>>, vector<16x96xf32>
    tpu.vector_store %arg8[%c0_14, %c0_15], %30 {strides = array<i32>} : memref<16x96xf32, #tpu.memory_space<vmem>>, vector<16x96xf32>,
    return
  }
  func.func @transform_0(%arg0: i32, %arg1: i32, %arg2: i32) -> (i32, i32) {
    %c0_i32 = arith.constant 0 : i32
    return %arg0, %arg2 : i32, i32
  }
  func.func @transform_1(%arg0: i32, %arg1: i32, %arg2: i32) -> (i32, i32) {
    %c0_i32 = arith.constant 0 : i32
    return %arg2, %arg1 : i32, i32
  }
  func.func @transform_2(%arg0: i32, %arg1: i32, %arg2: i32) -> (i32, i32) {
    %c0_i32 = arith.constant 0 : i32
    %c0_i32_0 = arith.constant 0 : i32
    return %c0_i32, %arg1 : i32, i32
  }
  func.func @transform_3(%arg0: i32, %arg1: i32, %arg2: i32) -> (i32, i32) {
    %c0_i32 = arith.constant 0 : i32
    %c0_i32_0 = arith.constant 0 : i32
    %c0_i32_1 = arith.constant 0 : i32
    return %c0_i32, %c0_i32_0 : i32, i32
  }
  func.func @transform_4(%arg0: i32, %arg1: i32, %arg2: i32) -> (i32, i32) {
    %c0_i32 = arith.constant 0 : i32
    %c0_i32_0 = arith.constant 0 : i32
    %c0_i32_1 = arith.constant 0 : i32
    return %c0_i32, %c0_i32_0 : i32, i32
  }
  func.func @transform_5(%arg0: i32, %arg1: i32, %arg2: i32) -> (i32, i32) {
    %c0_i32 = arith.constant 0 : i32
    return %arg0, %arg1 : i32, i32
  }
}

module attributes {stable_mosaic.version = 11 : i64} {
  func.func @_ffn_kernel(%arg0: i32, %arg1: memref<16x32xf32, #tpu.memory_space<vmem>>, %arg2: memref<32x64xbf16, #tpu.memory_space<vmem>>, %arg3: memref<1x64xf32, #tpu.memory_space<vmem>>, %arg4: memref<64x32xbf16, #tpu.memory_space<vmem>>, %arg5: memref<1x32xf32, #tpu.memory_space<vmem>>, %arg6: memref<1x32xf32, #tpu.memory_space<vmem>>, %arg7: memref<1x32xf32, #tpu.memory_space<vmem>>, %arg8: memref<16x32xf32, #tpu.memory_space<vmem>>, %arg9: memref<16x32xf32, #tpu.memory_space<vmem>>) attributes {dimension_semantics = [#tpu.dimension_semantics<parallel>], iteration_bounds = array<i64: 1>, scalar_prefetch = 0 : i64, scratch_operands = 0 : i64, tpu.core_type = #tpu.core_type<tc>, window_params = [{transform_indices = @transform_0, window_bounds = array<i64: 16, 32>}, {pipeline_mode = #tpu.pipeline_mode<synchronous>, transform_indices = @transform_1, window_bounds = array<i64: 32, 64>}, {pipeline_mode = #tpu.pipeline_mode<synchronous>, transform_indices = @transform_2, window_bounds = array<i64: 1, 64>}, {pipeline_mode = #tpu.pipeline_mode<synchronous>, transform_indices = @transform_3, window_bounds = array<i64: 64, 32>}, {pipeline_mode = #tpu.pipeline_mode<synchronous>, transform_indices = @transform_4, window_bounds = array<i64: 1, 32>}, {pipeline_mode = #tpu.pipeline_mode<synchronous>, transform_indices = @transform_5, window_bounds = array<i64: 1, 32>}, {pipeline_mode = #tpu.pipeline_mode<synchronous>, transform_indices = @transform_6, window_bounds = array<i64: 1, 32>}, {transform_indices = @transform_7, window_bounds = array<i64: 16, 32>}, {transform_indices = @transform_8, window_bounds = array<i64: 16, 32>}]} {
    %c0 = arith.constant 0 : index
    %c0_0 = arith.constant 0 : index
    %0 = vector.load %arg1[%c0, %c0_0] : memref<16x32xf32, #tpu.memory_space<vmem>>, vector<16x32xf32>
    %cst = arith.constant dense<0.000000e+00> : vector<16xf32>
    %1 = vector.multi_reduction <add>, %0, %cst [1] : vector<16x32xf32> to vector<16xf32>
    %2 = vector.shape_cast %1 : vector<16xf32> to vector<16x1xf32>
    %cst_1 = arith.constant 3.200000e+01 : f32
    %3 = vector.broadcast %cst_1 : f32 to vector<16x1xf32>
    %4 = arith.divf %2, %3 : vector<16x1xf32>
    %5 = vector.broadcast %4 : vector<16x1xf32> to vector<16x32xf32>
    %6 = arith.subf %0, %5 : vector<16x32xf32>
    %7 = arith.mulf %6, %6 : vector<16x32xf32>
    %cst_2 = arith.constant dense<0.000000e+00> : vector<16xf32>
    %8 = vector.multi_reduction <add>, %7, %cst_2 [1] : vector<16x32xf32> to vector<16xf32>
    %9 = vector.shape_cast %8 : vector<16xf32> to vector<16x1xf32>
    %cst_3 = arith.constant 3.200000e+01 : f32
    %10 = vector.broadcast %cst_3 : f32 to vector<16x1xf32>
    %11 = arith.divf %9, %10 : vector<16x1xf32>
    %12 = vector.broadcast %4 : vector<16x1xf32> to vector<16x32xf32>
    %13 = arith.subf %0, %12 : vector<16x32xf32>
    %cst_4 = arith.constant 9.99999974E-6 : f32
    %14 = vector.broadcast %cst_4 : f32 to vector<16x1xf32>
    %15 = arith.addf %11, %14 : vector<16x1xf32>
    %16 = math.rsqrt %15 : vector<16x1xf32>
    %17 = vector.broadcast %16 : vector<16x1xf32> to vector<16x32xf32>
    %18 = arith.mulf %13, %17 : vector<16x32xf32>
    %c0_5 = arith.constant 0 : index
    %c0_6 = arith.constant 0 : index
    %19 = vector.load %arg6[%c0_5, %c0_6] : memref<1x32xf32, #tpu.memory_space<vmem>>, vector<1x32xf32>
    %20 = vector.broadcast %19 : vector<1x32xf32> to vector<16x32xf32>
    %21 = arith.mulf %18, %20 : vector<16x32xf32>
    %c0_7 = arith.constant 0 : index
    %c0_8 = arith.constant 0 : index
    %22 = vector.load %arg7[%c0_7, %c0_8] : memref<1x32xf32, #tpu.memory_space<vmem>>, vector<1x32xf32>
    %23 = vector.broadcast %22 : vector<1x32xf32> to vector<16x32xf32>
    %24 = arith.addf %21, %23 : vector<16x32xf32>
    %25 = arith.truncf %24 : vector<16x32xf32> to vector<16x32xbf16>
    %c0_9 = arith.constant 0 : index
    %c0_10 = arith.constant 0 : index
    %26 = vector.load %arg2[%c0_9, %c0_10] : memref<32x64xbf16, #tpu.memory_space<vmem>>, vector<32x64xbf16>
    %cst_11 = arith.constant dense<0.000000e+00> : vector<16x64xf32>
    %27 = tpu.matmul %25, %26, %cst_11 {dimension_numbers = #tpu.dot_dimension_numbers<[1], [0], [0], [1], [0, 0, 1, 1], [], []>} : vector<16x32xbf16>, vector<32x64xbf16>, vector<16x64xf32> -> vector<16x64xf32>
    %c0_12 = arith.constant 0 : index
    %c0_13 = arith.constant 0 : index
    %28 = vector.load %arg3[%c0_12, %c0_13] : memref<1x64xf32, #tpu.memory_space<vmem>>, vector<1x64xf32>
    %29 = vector.broadcast %28 : vector<1x64xf32> to vector<16x64xf32>
    %30 = arith.addf %27, %29 : vector<16x64xf32>
    %cst_14 = arith.constant 0.000000e+00 : f32
    %31 = vector.broadcast %cst_14 : f32 to vector<16x64xf32>
    %32 = arith.maximumf %30, %31 : vector<16x64xf32>
    %33 = arith.truncf %32 : vector<16x64xf32> to vector<16x64xbf16>
    %c0_15 = arith.constant 0 : index
    %c0_16 = arith.constant 0 : index
    %34 = vector.load %arg4[%c0_15, %c0_16] : memref<64x32xbf16, #tpu.memory_space<vmem>>, vector<64x32xbf16>
    %cst_17 = arith.constant dense<0.000000e+00> : vector<16x32xf32>
    %35 = tpu.matmul %33, %34, %cst_17 {dimension_numbers = #tpu.dot_dimension_numbers<[1], [0], [0], [1], [0, 0, 1, 1], [], []>} : vector<16x64xbf16>, vector<64x32xbf16>, vector<16x32xf32> -> vector<16x32xf32>
    %c0_18 = arith.constant 0 : index
    %c0_19 = arith.constant 0 : index
    %36 = vector.load %arg5[%c0_18, %c0_19] : memref<1x32xf32, #tpu.memory_space<vmem>>, vector<1x32xf32>
    %37 = vector.broadcast %36 : vector<1x32xf32> to vector<16x32xf32>
    %38 = arith.addf %35, %37 : vector<16x32xf32>
    %c0_20 = arith.constant 0 : index
    %c0_21 = arith.constant 0 : index
    %39 = vector.load %arg8[%c0_20, %c0_21] : memref<16x32xf32, #tpu.memory_space<vmem>>, vector<16x32xf32>
    %40 = arith.addf %38, %39 : vector<16x32xf32>
    %c0_22 = arith.constant 0 : index
    %c0_23 = arith.constant 0 : index
    %41 = vector.load %arg9[%c0_22, %c0_23] : memref<16x32xf32, #tpu.memory_space<vmem>>, vector<16x32xf32>
    tpu.vector_store %arg9[%c0_22, %c0_23], %40 {strides = array<i32>} : memref<16x32xf32, #tpu.memory_space<vmem>>, vector<16x32xf32>,
    return
  }
  func.func @transform_0(%arg0: i32) -> (i32, i32) {
    %c0_i32 = arith.constant 0 : i32
    %c0_i32_0 = arith.constant 0 : i32
    return %arg0, %c0_i32 : i32, i32
  }
  func.func @transform_1(%arg0: i32) -> (i32, i32) {
    %c0_i32 = arith.constant 0 : i32
    %c0_i32_0 = arith.constant 0 : i32
    %c0_i32_1 = arith.constant 0 : i32
    return %c0_i32, %c0_i32_0 : i32, i32
  }
  func.func @transform_2(%arg0: i32) -> (i32, i32) {
    %c0_i32 = arith.constant 0 : i32
    %c0_i32_0 = arith.constant 0 : i32
    %c0_i32_1 = arith.constant 0 : i32
    return %c0_i32, %c0_i32_0 : i32, i32
  }
  func.func @transform_3(%arg0: i32) -> (i32, i32) {
    %c0_i32 = arith.constant 0 : i32
    %c0_i32_0 = arith.constant 0 : i32
    %c0_i32_1 = arith.constant 0 : i32
    return %c0_i32, %c0_i32_0 : i32, i32
  }
  func.func @transform_4(%arg0: i32) -> (i32, i32) {
    %c0_i32 = arith.constant 0 : i32
    %c0_i32_0 = arith.constant 0 : i32
    %c0_i32_1 = arith.constant 0 : i32
    return %c0_i32, %c0_i32_0 : i32, i32
  }
  func.func @transform_5(%arg0: i32) -> (i32, i32) {
    %c0_i32 = arith.constant 0 : i32
    %c0_i32_0 = arith.constant 0 : i32
    %c0_i32_1 = arith.constant 0 : i32
    return %c0_i32, %c0_i32_0 : i32, i32
  }
  func.func @transform_6(%arg0: i32) -> (i32, i32) {
    %c0_i32 = arith.constant 0 : i32
    %c0_i32_0 = arith.constant 0 : i32
    %c0_i32_1 = arith.constant 0 : i32
    return %c0_i32, %c0_i32_0 : i32, i32
  }
  func.func @transform_7(%arg0: i32) -> (i32, i32) {
    %c0_i32 = arith.constant 0 : i32
    %c0_i32_0 = arith.constant 0 : i32
    return %arg0, %c0_i32 : i32, i32
  }
  func.func @transform_8(%arg0: i32) -> (i32, i32) {
    %c0_i32 = arith.constant 0 : i32
    %c0_i32_0 = arith.constant 0 : i32
    return %arg0, %c0_i32 : i32, i32
  }
}

module attributes {stable_mosaic.version = 11 : i64} {
  func.func @_linear_kernel(%arg0: i32, %arg1: i32, %arg2: i32, %arg3: memref<16x32xf32, #tpu.memory_space<vmem>>, %arg4: memref<32x64xbf16, #tpu.memory_space<vmem>>, %arg5: memref<1x64xf32, #tpu.memory_space<vmem>>, %arg6: memref<1x32xf32, #tpu.memory_space<vmem>>, %arg7: memref<1x32xf32, #tpu.memory_space<vmem>>, %arg8: memref<16x64xf32, #tpu.memory_space<vmem>>) attributes {dimension_semantics = [#tpu.dimension_semantics<parallel>, #tpu.dimension_semantics<parallel>, #tpu.dimension_semantics<arbitrary>], iteration_bounds = array<i64: 1, 1, 1>, scalar_prefetch = 0 : i64, scratch_operands = 0 : i64, tpu.core_type = #tpu.core_type<tc>, window_params = [{transform_indices = @transform_0, window_bounds = array<i64: 16, 32>}, {transform_indices = @transform_1, window_bounds = array<i64: 32, 64>}, {transform_indices = @transform_2, window_bounds = array<i64: 1, 64>}, {pipeline_mode = #tpu.pipeline_mode<synchronous>, transform_indices = @transform_3, window_bounds = array<i64: 1, 32>}, {pipeline_mode = #tpu.pipeline_mode<synchronous>, transform_indices = @transform_4, window_bounds = array<i64: 1, 32>}, {transform_indices = @transform_5, window_bounds = array<i64: 16, 64>}]} {
    %c0 = arith.constant 0 : index
    %c0_0 = arith.constant 0 : index
    %0 = vector.load %arg3[%c0, %c0_0] : memref<16x32xf32, #tpu.memory_space<vmem>>, vector<16x32xf32>
    %cst = arith.constant dense<0.000000e+00> : vector<16xf32>
    %1 = vector.multi_reduction <add>, %0, %cst [1] : vector<16x32xf32> to vector<16xf32>
    %2 = vector.shape_cast %1 : vector<16xf32> to vector<16x1xf32>
    %cst_1 = arith.constant 3.200000e+01 : f32
    %3 = vector.broadcast %cst_1 : f32 to vector<16x1xf32>
    %4 = arith.divf %2, %3 : vector<16x1xf32>
    %5 = vector.broadcast %4 : vector<16x1xf32> to vector<16x32xf32>
    %6 = arith.subf %0, %5 : vector<16x32xf32>
    %7 = arith.mulf %6, %6 : vector<16x32xf32>
    %cst_2 = arith.constant dense<0.000000e+00> : vector<16xf32>
    %8 = vector.multi_reduction <add>, %7, %cst_2 [1] : vector<16x32xf32> to vector<16xf32>
    %9 = vector.shape_cast %8 : vector<16xf32> to vector<16x1xf32>
    %cst_3 = arith.constant 3.200000e+01 : f32
    %10 = vector.broadcast %cst_3 : f32 to vector<16x1xf32>
    %11 = arith.divf %9, %10 : vector<16x1xf32>
    %12 = vector.broadcast %4 : vector<16x1xf32> to vector<16x32xf32>
    %13 = arith.subf %0, %12 : vector<16x32xf32>
    %cst_4 = arith.constant 9.99999974E-6 : f32
    %14 = vector.broadcast %cst_4 : f32 to vector<16x1xf32>
    %15 = arith.addf %11, %14 : vector<16x1xf32>
    %16 = math.rsqrt %15 : vector<16x1xf32>
    %17 = vector.broadcast %16 : vector<16x1xf32> to vector<16x32xf32>
    %18 = arith.mulf %13, %17 : vector<16x32xf32>
    %c0_5 = arith.constant 0 : index
    %c0_6 = arith.constant 0 : index
    %19 = vector.load %arg6[%c0_5, %c0_6] : memref<1x32xf32, #tpu.memory_space<vmem>>, vector<1x32xf32>
    %20 = vector.broadcast %19 : vector<1x32xf32> to vector<16x32xf32>
    %21 = arith.mulf %18, %20 : vector<16x32xf32>
    %c0_7 = arith.constant 0 : index
    %c0_8 = arith.constant 0 : index
    %22 = vector.load %arg7[%c0_7, %c0_8] : memref<1x32xf32, #tpu.memory_space<vmem>>, vector<1x32xf32>
    %23 = vector.broadcast %22 : vector<1x32xf32> to vector<16x32xf32>
    %24 = arith.addf %21, %23 : vector<16x32xf32>
    %25 = arith.truncf %24 : vector<16x32xf32> to vector<16x32xbf16>
    %c0_9 = arith.constant 0 : index
    %c0_10 = arith.constant 0 : index
    %26 = vector.load %arg4[%c0_9, %c0_10] : memref<32x64xbf16, #tpu.memory_space<vmem>>, vector<32x64xbf16>
    %cst_11 = arith.constant dense<0.000000e+00> : vector<16x64xf32>
    %27 = tpu.matmul %25, %26, %cst_11 {dimension_numbers = #tpu.dot_dimension_numbers<[1], [0], [0], [1], [0, 0, 1, 1], [], []>} : vector<16x32xbf16>, vector<32x64xbf16>, vector<16x64xf32> -> vector<16x64xf32>
    %c0_12 = arith.constant 0 : index
    %c0_13 = arith.constant 0 : index
    %28 = vector.load %arg5[%c0_12, %c0_13] : memref<1x64xf32, #tpu.memory_space<vmem>>, vector<1x64xf32>
    %29 = vector.broadcast %28 : vector<1x64xf32> to vector<16x64xf32>
    %30 = arith.addf %27, %29 : vector<16x64xf32>
    %c0_14 = arith.constant 0 : index
    %c0_15 = arith.constant 0 : index
    %31 = vector.load %arg8[%c0_14, %c0_15] : memref<16x64xf32, #tpu.memory_space<vmem>>, vector<16x64xf32>
    tpu.vector_store %arg8[%c0_14, %c0_15], %30 {strides = array<i32>} : memref<16x64xf32, #tpu.memory_space<vmem>>, vector<16x64xf32>,
    return
  }
  func.func @transform_0(%arg0: i32, %arg1: i32, %arg2: i32) -> (i32, i32) {
    %c0_i32 = arith.constant 0 : i32
    return %arg0, %arg2 : i32, i32
  }
  func.func @transform_1(%arg0: i32, %arg1: i32, %arg2: i32) -> (i32, i32) {
    %c0_i32 = arith.constant 0 : i32
    return %arg2, %arg1 : i32, i32
  }
  func.func @transform_2(%arg0: i32, %arg1: i32, %arg2: i32) -> (i32, i32) {
    %c0_i32 = arith.constant 0 : i32
    %c0_i32_0 = arith.constant 0 : i32
    return %c0_i32, %arg1 : i32, i32
  }
  func.func @transform_3(%arg0: i32, %arg1: i32, %arg2: i32) -> (i32, i32) {
    %c0_i32 = arith.constant 0 : i32
    %c0_i32_0 = arith.constant 0 : i32
    %c0_i32_1 = arith.constant 0 : i32
    return %c0_i32, %c0_i32_0 : i32, i32
  }
  func.func @transform_4(%arg0: i32, %arg1: i32, %arg2: i32) -> (i32, i32) {
    %c0_i32 = arith.constant 0 : i32
    %c0_i32_0 = arith.constant 0 : i32
    %c0_i32_1 = arith.constant 0 : i32
    return %c0_i32, %c0_i32_0 : i32, i32
  }
  func.func @transform_5(%arg0: i32, %arg1: i32, %arg2: i32) -> (i32, i32) {
    %c0_i32 = arith.constant 0 : i32
    return %arg0, %arg1 : i32, i32
  }
}

module attributes {stable_mosaic.version = 11 : i64} {
  func.func @_linear_kernel(%arg0: i32, %arg1: i32, %arg2: i32, %arg3: memref<16x32xf32, #tpu.memory_space<vmem>>, %arg4: memref<32x32xbf16, #tpu.memory_space<vmem>>, %arg5: memref<1x32xf32, #tpu.memory_space<vmem>>, %arg6: memref<1x32xf32, #tpu.memory_space<vmem>>, %arg7: memref<1x32xf32, #tpu.memory_space<vmem>>, %arg8: memref<16x32xf32, #tpu.memory_space<vmem>>) attributes {dimension_semantics = [#tpu.dimension_semantics<parallel>, #tpu.dimension_semantics<parallel>, #tpu.dimension_semantics<arbitrary>], iteration_bounds = array<i64: 1, 1, 1>, scalar_prefetch = 0 : i64, scratch_operands = 0 : i64, tpu.core_type = #tpu.core_type<tc>, window_params = [{transform_indices = @transform_0, window_bounds = array<i64: 16, 32>}, {transform_indices = @transform_1, window_bounds = array<i64: 32, 32>}, {transform_indices = @transform_2, window_bounds = array<i64: 1, 32>}, {pipeline_mode = #tpu.pipeline_mode<synchronous>, transform_indices = @transform_3, window_bounds = array<i64: 1, 32>}, {pipeline_mode = #tpu.pipeline_mode<synchronous>, transform_indices = @transform_4, window_bounds = array<i64: 1, 32>}, {transform_indices = @transform_5, window_bounds = array<i64: 16, 32>}]} {
    %c0 = arith.constant 0 : index
    %c0_0 = arith.constant 0 : index
    %0 = vector.load %arg3[%c0, %c0_0] : memref<16x32xf32, #tpu.memory_space<vmem>>, vector<16x32xf32>
    %cst = arith.constant dense<0.000000e+00> : vector<16xf32>
    %1 = vector.multi_reduction <add>, %0, %cst [1] : vector<16x32xf32> to vector<16xf32>
    %2 = vector.shape_cast %1 : vector<16xf32> to vector<16x1xf32>
    %cst_1 = arith.constant 3.200000e+01 : f32
    %3 = vector.broadcast %cst_1 : f32 to vector<16x1xf32>
    %4 = arith.divf %2, %3 : vector<16x1xf32>
    %5 = vector.broadcast %4 : vector<16x1xf32> to vector<16x32xf32>
    %6 = arith.subf %0, %5 : vector<16x32xf32>
    %7 = arith.mulf %6, %6 : vector<16x32xf32>
    %cst_2 = arith.constant dense<0.000000e+00> : vector<16xf32>
    %8 = vector.multi_reduction <add>, %7, %cst_2 [1] : vector<16x32xf32> to vector<16xf32>
    %9 = vector.shape_cast %8 : vector<16xf32> to vector<16x1xf32>
    %cst_3 = arith.constant 3.200000e+01 : f32
    %10 = vector.broadcast %cst_3 : f32 to vector<16x1xf32>
    %11 = arith.divf %9, %10 : vector<16x1xf32>
    %12 = vector.broadcast %4 : vector<16x1xf32> to vector<16x32xf32>
    %13 = arith.subf %0, %12 : vector<16x32xf32>
    %cst_4 = arith.constant 9.99999974E-6 : f32
    %14 = vector.broadcast %cst_4 : f32 to vector<16x1xf32>
    %15 = arith.addf %11, %14 : vector<16x1xf32>
    %16 = math.rsqrt %15 : vector<16x1xf32>
    %17 = vector.broadcast %16 : vector<16x1xf32> to vector<16x32xf32>
    %18 = arith.mulf %13, %17 : vector<16x32xf32>
    %c0_5 = arith.constant 0 : index
    %c0_6 = arith.constant 0 : index
    %19 = vector.load %arg6[%c0_5, %c0_6] : memref<1x32xf32, #tpu.memory_space<vmem>>, vector<1x32xf32>
    %20 = vector.broadcast %19 : vector<1x32xf32> to vector<16x32xf32>
    %21 = arith.mulf %18, %20 : vector<16x32xf32>
    %c0_7 = arith.constant 0 : index
    %c0_8 = arith.constant 0 : index
    %22 = vector.load %arg7[%c0_7, %c0_8] : memref<1x32xf32, #tpu.memory_space<vmem>>, vector<1x32xf32>
    %23 = vector.broadcast %22 : vector<1x32xf32> to vector<16x32xf32>
    %24 = arith.addf %21, %23 : vector<16x32xf32>
    %25 = arith.truncf %24 : vector<16x32xf32> to vector<16x32xbf16>
    %c0_9 = arith.constant 0 : index
    %c0_10 = arith.constant 0 : index
    %26 = vector.load %arg4[%c0_9, %c0_10] : memref<32x32xbf16, #tpu.memory_space<vmem>>, vector<32x32xbf16>
    %cst_11 = arith.constant dense<0.000000e+00> : vector<16x32xf32>
    %27 = tpu.matmul %25, %26, %cst_11 {dimension_numbers = #tpu.dot_dimension_numbers<[1], [0], [0], [1], [0, 0, 1, 1], [], []>} : vector<16x32xbf16>, vector<32x32xbf16>, vector<16x32xf32> -> vector<16x32xf32>
    %c0_12 = arith.constant 0 : index
    %c0_13 = arith.constant 0 : index
    %28 = vector.load %arg5[%c0_12, %c0_13] : memref<1x32xf32, #tpu.memory_space<vmem>>, vector<1x32xf32>
    %29 = vector.broadcast %28 : vector<1x32xf32> to vector<16x32xf32>
    %30 = arith.addf %27, %29 : vector<16x32xf32>
    %c0_14 = arith.constant 0 : index
    %c0_15 = arith.constant 0 : index
    %31 = vector.load %arg8[%c0_14, %c0_15] : memref<16x32xf32, #tpu.memory_space<vmem>>, vector<16x32xf32>
    tpu.vector_store %arg8[%c0_14, %c0_15], %30 {strides = array<i32>} : memref<16x32xf32, #tpu.memory_space<vmem>>, vector<16x32xf32>,
    return
  }
  func.func @transform_0(%arg0: i32, %arg1: i32, %arg2: i32) -> (i32, i32) {
    %c0_i32 = arith.constant 0 : i32
    return %arg0, %arg2 : i32, i32
  }
  func.func @transform_1(%arg0: i32, %arg1: i32, %arg2: i32) -> (i32, i32) {
    %c0_i32 = arith.constant 0 : i32
    return %arg2, %arg1 : i32, i32
  }
  func.func @transform_2(%arg0: i32, %arg1: i32, %arg2: i32) -> (i32, i32) {
    %c0_i32 = arith.constant 0 : i32
    %c0_i32_0 = arith.constant 0 : i32
    return %c0_i32, %arg1 : i32, i32
  }
  func.func @transform_3(%arg0: i32, %arg1: i32, %arg2: i32) -> (i32, i32) {
    %c0_i32 = arith.constant 0 : i32
    %c0_i32_0 = arith.constant 0 : i32
    %c0_i32_1 = arith.constant 0 : i32
    return %c0_i32, %c0_i32_0 : i32, i32
  }
  func.func @transform_4(%arg0: i32, %arg1: i32, %arg2: i32) -> (i32, i32) {
    %c0_i32 = arith.constant 0 : i32
    %c0_i32_0 = arith.constant 0 : i32
    %c0_i32_1 = arith.constant 0 : i32
    return %c0_i32, %c0_i32_0 : i32, i32
  }
  func.func @transform_5(%arg0: i32, %arg1: i32, %arg2: i32) -> (i32, i32) {
    %c0_i32 = arith.constant 0 : i32
    return %arg0, %arg1 : i32, i32
  }
}

module attributes {stable_mosaic.version = 11 : i64} {
  func.func @_attention_kernel(%arg0: i32, %arg1: memref<1x8x96xf32, #tpu.memory_space<vmem>>, %arg2: memref<1x8x8xf32, #tpu.memory_space<vmem>>, %arg3: memref<1x8x32xf32, #tpu.memory_space<vmem>>) attributes {dimension_semantics = [#tpu.dimension_semantics<parallel>], iteration_bounds = array<i64: 2>, scalar_prefetch = 0 : i64, scratch_operands = 0 : i64, tpu.core_type = #tpu.core_type<tc>, window_params = [{transform_indices = @transform_0, window_bounds = array<i64: 1, 8, 96>}, {transform_indices = @transform_1, window_bounds = array<i64: 1, 8, 8>}, {transform_indices = @transform_2, window_bounds = array<i64: 1, 8, 32>}]} {
    %c0 = arith.constant 0 : index
    %c0_0 = arith.constant 0 : index
    %c0_1 = arith.constant 0 : index
    %0 = vector.load %arg1[%c0, %c0_0, %c0_1] : memref<1x8x96xf32, #tpu.memory_space<vmem>>, vector<1x8x96xf32>
    %1 = vector.shape_cast %0 : vector<1x8x96xf32> to vector<8x96xf32>
    %2 = vector.extract_strided_slice %1 {offsets = [0, 0], sizes = [8, 32], strides = [1, 1]} : vector<8x96xf32> to vector<8x32xf32>
    %3 = arith.truncf %2 : vector<8x32xf32> to vector<8x32xbf16>
    %4 = vector.extract_strided_slice %1 {offsets = [0, 32], sizes = [8, 32], strides = [1, 1]} : vector<8x96xf32> to vector<8x32xf32>
    %5 = arith.truncf %4 : vector<8x32xf32> to vector<8x32xbf16>
    %6 = vector.extract_strided_slice %1 {offsets = [0, 64], sizes = [8, 32], strides = [1, 1]} : vector<8x96xf32> to vector<8x32xf32>
    %7 = arith.truncf %6 : vector<8x32xf32> to vector<8x32xbf16>
    %c0_2 = arith.constant 0 : index
    %c0_3 = arith.constant 0 : index
    %c0_4 = arith.constant 0 : index
    %8 = vector.load %arg2[%c0_2, %c0_3, %c0_4] : memref<1x8x8xf32, #tpu.memory_space<vmem>>, vector<1x8x8xf32>
    %9 = vector.shape_cast %8 : vector<1x8x8xf32> to vector<8x8xf32>
    %10 = vector.extract_strided_slice %3 {offsets = [0, 0], sizes = [8, 8], strides = [1, 1]} : vector<8x32xbf16> to vector<8x8xbf16>
    %11 = vector.extract_strided_slice %5 {offsets = [0, 0], sizes = [8, 8], strides = [1, 1]} : vector<8x32xbf16> to vector<8x8xbf16>
    %cst = arith.constant dense<0.000000e+00> : vector<8x8xf32>
    %12 = tpu.matmul %10, %11, %cst {dimension_numbers = #tpu.dot_dimension_numbers<[1], [1], [0], [0], [0, 0, 1, 0], [], []>} : vector<8x8xbf16>, vector<8x8xbf16>, vector<8x8xf32> -> vector<8x8xf32>
    %cst_5 = arith.constant 0.000000e+00 : f32
    %13 = vector.broadcast %cst_5 : f32 to vector<8x8xf32>
    %14 = arith.cmpf ogt, %9, %13 : vector<8x8xf32>
    %cst_6 = arith.constant -1.000000e+09 : f32
    %15 = vector.broadcast %cst_6 : f32 to vector<8x8xf32>
    %16 = arith.select %14, %12, %15 : vector<8x8xi1>, vector<8x8xf32>
    %cst_7 = arith.constant dense<0xFF800000> : vector<8xf32>
    %17 = vector.multi_reduction <maximumf>, %16, %cst_7 [1] : vector<8x8xf32> to vector<8xf32>
    %18 = vector.shape_cast %17 : vector<8xf32> to vector<8x1xf32>
    %19 = vector.broadcast %18 : vector<8x1xf32> to vector<8x8xf32>
    %20 = arith.subf %16, %19 : vector<8x8xf32>
    %21 = math.exp %20 : vector<8x8xf32>
    %cst_8 = arith.constant dense<0.000000e+00> : vector<8xf32>
    %22 = vector.multi_reduction <add>, %21, %cst_8 [1] : vector<8x8xf32> to vector<8xf32>
    %23 = vector.shape_cast %22 : vector<8xf32> to vector<8x1xf32>
    %cst_9 = arith.constant 1.000000e+00 : f32
    %24 = vector.broadcast %cst_9 : f32 to vector<8x1xf32>
    %25 = arith.divf %24, %23 : vector<8x1xf32>
    %26 = vector.broadcast %25 : vector<8x1xf32> to vector<8x8xf32>
    %27 = arith.mulf %21, %26 : vector<8x8xf32>
    %28 = arith.truncf %27 : vector<8x8xf32> to vector<8x8xbf16>
    %29 = vector.extract_strided_slice %7 {offsets = [0, 0], sizes = [8, 8], strides = [1, 1]} : vector<8x32xbf16> to vector<8x8xbf16>
    %cst_10 = arith.constant dense<0.000000e+00> : vector<8x8xf32>
    %30 = tpu.matmul %28, %29, %cst_10 {dimension_numbers = #tpu.dot_dimension_numbers<[1], [0], [0], [1], [0, 0, 1, 1], [], []>} : vector<8x8xbf16>, vector<8x8xbf16>, vector<8x8xf32> -> vector<8x8xf32>
    %31 = vector.extract_strided_slice %3 {offsets = [0, 8], sizes = [8, 8], strides = [1, 1]} : vector<8x32xbf16> to vector<8x8xbf16>
    %32 = vector.extract_strided_slice %5 {offsets = [0, 8], sizes = [8, 8], strides = [1, 1]} : vector<8x32xbf16> to vector<8x8xbf16>
    %cst_11 = arith.constant dense<0.000000e+00> : vector<8x8xf32>
    %33 = tpu.matmul %31, %32, %cst_11 {dimension_numbers = #tpu.dot_dimension_numbers<[1], [1], [0], [0], [0, 0, 1, 0], [], []>} : vector<8x8xbf16>, vector<8x8xbf16>, vector<8x8xf32> -> vector<8x8xf32>
    %cst_12 = arith.constant 0.000000e+00 : f32
    %34 = vector.broadcast %cst_12 : f32 to vector<8x8xf32>
    %35 = arith.cmpf ogt, %9, %34 : vector<8x8xf32>
    %cst_13 = arith.constant -1.000000e+09 : f32
    %36 = vector.broadcast %cst_13 : f32 to vector<8x8xf32>
    %37 = arith.select %35, %33, %36 : vector<8x8xi1>, vector<8x8xf32>
    %cst_14 = arith.constant dense<0xFF800000> : vector<8xf32>
    %38 = vector.multi_reduction <maximumf>, %37, %cst_14 [1] : vector<8x8xf32> to vector<8xf32>
    %39 = vector.shape_cast %38 : vector<8xf32> to vector<8x1xf32>
    %40 = vector.broadcast %39 : vector<8x1xf32> to vector<8x8xf32>
    %41 = arith.subf %37, %40 : vector<8x8xf32>
    %42 = math.exp %41 : vector<8x8xf32>
    %cst_15 = arith.constant dense<0.000000e+00> : vector<8xf32>
    %43 = vector.multi_reduction <add>, %42, %cst_15 [1] : vector<8x8xf32> to vector<8xf32>
    %44 = vector.shape_cast %43 : vector<8xf32> to vector<8x1xf32>
    %cst_16 = arith.constant 1.000000e+00 : f32
    %45 = vector.broadcast %cst_16 : f32 to vector<8x1xf32>
    %46 = arith.divf %45, %44 : vector<8x1xf32>
    %47 = vector.broadcast %46 : vector<8x1xf32> to vector<8x8xf32>
    %48 = arith.mulf %42, %47 : vector<8x8xf32>
    %49 = arith.truncf %48 : vector<8x8xf32> to vector<8x8xbf16>
    %50 = vector.extract_strided_slice %7 {offsets = [0, 8], sizes = [8, 8], strides = [1, 1]} : vector<8x32xbf16> to vector<8x8xbf16>
    %cst_17 = arith.constant dense<0.000000e+00> : vector<8x8xf32>
    %51 = tpu.matmul %49, %50, %cst_17 {dimension_numbers = #tpu.dot_dimension_numbers<[1], [0], [0], [1], [0, 0, 1, 1], [], []>} : vector<8x8xbf16>, vector<8x8xbf16>, vector<8x8xf32> -> vector<8x8xf32>
    %52 = vector.extract_strided_slice %3 {offsets = [0, 16], sizes = [8, 8], strides = [1, 1]} : vector<8x32xbf16> to vector<8x8xbf16>
    %53 = vector.extract_strided_slice %5 {offsets = [0, 16], sizes = [8, 8], strides = [1, 1]} : vector<8x32xbf16> to vector<8x8xbf16>
    %cst_18 = arith.constant dense<0.000000e+00> : vector<8x8xf32>
    %54 = tpu.matmul %52, %53, %cst_18 {dimension_numbers = #tpu.dot_dimension_numbers<[1], [1], [0], [0], [0, 0, 1, 0], [], []>} : vector<8x8xbf16>, vector<8x8xbf16>, vector<8x8xf32> -> vector<8x8xf32>
    %cst_19 = arith.constant 0.000000e+00 : f32
    %55 = vector.broadcast %cst_19 : f32 to vector<8x8xf32>
    %56 = arith.cmpf ogt, %9, %55 : vector<8x8xf32>
    %cst_20 = arith.constant -1.000000e+09 : f32
    %57 = vector.broadcast %cst_20 : f32 to vector<8x8xf32>
    %58 = arith.select %56, %54, %57 : vector<8x8xi1>, vector<8x8xf32>
    %cst_21 = arith.constant dense<0xFF800000> : vector<8xf32>
    %59 = vector.multi_reduction <maximumf>, %58, %cst_21 [1] : vector<8x8xf32> to vector<8xf32>
    %60 = vector.shape_cast %59 : vector<8xf32> to vector<8x1xf32>
    %61 = vector.broadcast %60 : vector<8x1xf32> to vector<8x8xf32>
    %62 = arith.subf %58, %61 : vector<8x8xf32>
    %63 = math.exp %62 : vector<8x8xf32>
    %cst_22 = arith.constant dense<0.000000e+00> : vector<8xf32>
    %64 = vector.multi_reduction <add>, %63, %cst_22 [1] : vector<8x8xf32> to vector<8xf32>
    %65 = vector.shape_cast %64 : vector<8xf32> to vector<8x1xf32>
    %cst_23 = arith.constant 1.000000e+00 : f32
    %66 = vector.broadcast %cst_23 : f32 to vector<8x1xf32>
    %67 = arith.divf %66, %65 : vector<8x1xf32>
    %68 = vector.broadcast %67 : vector<8x1xf32> to vector<8x8xf32>
    %69 = arith.mulf %63, %68 : vector<8x8xf32>
    %70 = arith.truncf %69 : vector<8x8xf32> to vector<8x8xbf16>
    %71 = vector.extract_strided_slice %7 {offsets = [0, 16], sizes = [8, 8], strides = [1, 1]} : vector<8x32xbf16> to vector<8x8xbf16>
    %cst_24 = arith.constant dense<0.000000e+00> : vector<8x8xf32>
    %72 = tpu.matmul %70, %71, %cst_24 {dimension_numbers = #tpu.dot_dimension_numbers<[1], [0], [0], [1], [0, 0, 1, 1], [], []>} : vector<8x8xbf16>, vector<8x8xbf16>, vector<8x8xf32> -> vector<8x8xf32>
    %73 = vector.extract_strided_slice %3 {offsets = [0, 24], sizes = [8, 8], strides = [1, 1]} : vector<8x32xbf16> to vector<8x8xbf16>
    %74 = vector.extract_strided_slice %5 {offsets = [0, 24], sizes = [8, 8], strides = [1, 1]} : vector<8x32xbf16> to vector<8x8xbf16>
    %cst_25 = arith.constant dense<0.000000e+00> : vector<8x8xf32>
    %75 = tpu.matmul %73, %74, %cst_25 {dimension_numbers = #tpu.dot_dimension_numbers<[1], [1], [0], [0], [0, 0, 1, 0], [], []>} : vector<8x8xbf16>, vector<8x8xbf16>, vector<8x8xf32> -> vector<8x8xf32>
    %cst_26 = arith.constant 0.000000e+00 : f32
    %76 = vector.broadcast %cst_26 : f32 to vector<8x8xf32>
    %77 = arith.cmpf ogt, %9, %76 : vector<8x8xf32>
    %cst_27 = arith.constant -1.000000e+09 : f32
    %78 = vector.broadcast %cst_27 : f32 to vector<8x8xf32>
    %79 = arith.select %77, %75, %78 : vector<8x8xi1>, vector<8x8xf32>
    %cst_28 = arith.constant dense<0xFF800000> : vector<8xf32>
    %80 = vector.multi_reduction <maximumf>, %79, %cst_28 [1] : vector<8x8xf32> to vector<8xf32>
    %81 = vector.shape_cast %80 : vector<8xf32> to vector<8x1xf32>
    %82 = vector.broadcast %81 : vector<8x1xf32> to vector<8x8xf32>
    %83 = arith.subf %79, %82 : vector<8x8xf32>
    %84 = math.exp %83 : vector<8x8xf32>
    %cst_29 = arith.constant dense<0.000000e+00> : vector<8xf32>
    %85 = vector.multi_reduction <add>, %84, %cst_29 [1] : vector<8x8xf32> to vector<8xf32>
    %86 = vector.shape_cast %85 : vector<8xf32> to vector<8x1xf32>
    %cst_30 = arith.constant 1.000000e+00 : f32
    %87 = vector.broadcast %cst_30 : f32 to vector<8x1xf32>
    %88 = arith.divf %87, %86 : vector<8x1xf32>
    %89 = vector.broadcast %88 : vector<8x1xf32> to vector<8x8xf32>
    %90 = arith.mulf %84, %89 : vector<8x8xf32>
    %91 = arith.truncf %90 : vector<8x8xf32> to vector<8x8xbf16>
    %92 = vector.extract_strided_slice %7 {offsets = [0, 24], sizes = [8, 8], strides = [1, 1]} : vector<8x32xbf16> to vector<8x8xbf16>
    %cst_31 = arith.constant dense<0.000000e+00> : vector<8x8xf32>
    %93 = tpu.matmul %91, %92, %cst_31 {dimension_numbers = #tpu.dot_dimension_numbers<[1], [0], [0], [1], [0, 0, 1, 1], [], []>} : vector<8x8xbf16>, vector<8x8xbf16>, vector<8x8xf32> -> vector<8x8xf32>
    %94 = tpu.concatenate %30, %51, %72, %93 in 1 : vector<8x8xf32>, vector<8x8xf32>, vector<8x8xf32>, vector<8x8xf32> -> vector<8x32xf32>
    %c0_32 = arith.constant 0 : index
    %c0_33 = arith.constant 0 : index
    %c0_34 = arith.constant 0 : index
    %95 = vector.load %arg3[%c0_32, %c0_33, %c0_34] : memref<1x8x32xf32, #tpu.memory_space<vmem>>, vector<1x8x32xf32>
    %96 = vector.shape_cast %95 : vector<1x8x32xf32> to vector<8x32xf32>
    %97 = vector.shape_cast %94 : vector<8x32xf32> to vector<1x8x32xf32>
    tpu.vector_store %arg3[%c0_32, %c0_33, %c0_34], %97 {strides = array<i32>} : memref<1x8x32xf32, #tpu.memory_space<vmem>>, vector<1x8x32xf32>,
    return
  }
  func.func @transform_0(%arg0: i32) -> (i32, i32, i32) {
    %c0_i32 = arith.constant 0 : i32
    %c0_i32_0 = arith.constant 0 : i32
    %c0_i32_1 = arith.constant 0 : i32
    return %arg0, %c0_i32, %c0_i32_0 : i32, i32, i32
  }
  func.func @transform_1(%arg0: i32) -> (i32, i32, i32) {
    %c0_i32 = arith.constant 0 : i32
    %c0_i32_0 = arith.constant 0 : i32
    %c0_i32_1 = arith.constant 0 : i32
    return %arg0, %c0_i32, %c0_i32_0 : i32, i32, i32
  }
  func.func @transform_2(%arg0: i32) -> (i32, i32, i32) {
    %c0_i32 = arith.constant 0 : i32
    %c0_i32_0 = arith.constant 0 : i32
    %c0_i32_1 = arith.constant 0 : i32
    return %arg0, %c0_i32, %c0_i32_0 : i32, i32, i32
  }
}

module attributes {stable_mosaic.version = 11 : i64} {
  func.func @_attention_kernel(%arg0: i32, %arg1: memref<1x8x32xf32, #tpu.memory_space<vmem>>, %arg2: memref<1x8x64xf32, #tpu.memory_space<vmem>>, %arg3: memref<1x1x8xf32, #tpu.memory_space<vmem>>, %arg4: memref<1x8x32xf32, #tpu.memory_space<vmem>>) attributes {dimension_semantics = [#tpu.dimension_semantics<parallel>], iteration_bounds = array<i64: 2>, scalar_prefetch = 0 : i64, scratch_operands = 0 : i64, tpu.core_type = #tpu.core_type<tc>, window_params = [{transform_indices = @transform_0, window_bounds = array<i64: 1, 8, 32>}, {transform_indices = @transform_1, window_bounds = array<i64: 1, 8, 64>}, {transform_indices = @transform_2, window_bounds = array<i64: 1, 1, 8>}, {transform_indices = @transform_3, window_bounds = array<i64: 1, 8, 32>}]} {
    %c0 = arith.constant 0 : index
    %c0_0 = arith.constant 0 : index
    %c0_1 = arith.constant 0 : index
    %0 = vector.load %arg1[%c0, %c0_0, %c0_1] : memref<1x8x32xf32, #tpu.memory_space<vmem>>, vector<1x8x32xf32>
    %1 = vector.shape_cast %0 : vector<1x8x32xf32> to vector<8x32xf32>
    %c0_2 = arith.constant 0 : index
    %c0_3 = arith.constant 0 : index
    %c0_4 = arith.constant 0 : index
    %2 = vector.load %arg2[%c0_2, %c0_3, %c0_4] : memref<1x8x64xf32, #tpu.memory_space<vmem>>, vector<1x8x64xf32>
    %3 = vector.shape_cast %2 : vector<1x8x64xf32> to vector<8x64xf32>
    %4 = arith.truncf %1 : vector<8x32xf32> to vector<8x32xbf16>
    %5 = vector.extract_strided_slice %3 {offsets = [0, 0], sizes = [8, 32], strides = [1, 1]} : vector<8x64xf32> to vector<8x32xf32>
    %6 = arith.truncf %5 : vector<8x32xf32> to vector<8x32xbf16>
    %7 = vector.extract_strided_slice %3 {offsets = [0, 32], sizes = [8, 32], strides = [1, 1]} : vector<8x64xf32> to vector<8x32xf32>
    %8 = arith.truncf %7 : vector<8x32xf32> to vector<8x32xbf16>
    %c0_5 = arith.constant 0 : index
    %c0_6 = arith.constant 0 : index
    %c0_7 = arith.constant 0 : index
    %9 = vector.load %arg3[%c0_5, %c0_6, %c0_7] : memref<1x1x8xf32, #tpu.memory_space<vmem>>, vector<1x1x8xf32>
    %10 = vector.shape_cast %9 : vector<1x1x8xf32> to vector<1x8xf32>
    %11 = vector.extract_strided_slice %4 {offsets = [0, 0], sizes = [8, 8], strides = [1, 1]} : vector<8x32xbf16> to vector<8x8xbf16>
    %12 = vector.extract_strided_slice %6 {offsets = [0, 0], sizes = [8, 8], strides = [1, 1]} : vector<8x32xbf16> to vector<8x8xbf16>
    %cst = arith.constant dense<0.000000e+00> : vector<8x8xf32>
    %13 = tpu.matmul %11, %12, %cst {dimension_numbers = #tpu.dot_dimension_numbers<[1], [1], [0], [0], [0, 0, 1, 0], [], []>} : vector<8x8xbf16>, vector<8x8xbf16>, vector<8x8xf32> -> vector<8x8xf32>
    %cst_8 = arith.constant 0.000000e+00 : f32
    %14 = vector.broadcast %cst_8 : f32 to vector<1x8xf32>
    %15 = arith.cmpf ogt, %10, %14 : vector<1x8xf32>
    %cst_9 = arith.constant -1.000000e+09 : f32
    %16 = vector.shape_cast %15 : vector<1x8xi1> to vector<1x8xi1>
    %17 = vector.broadcast %16 : vector<1x8xi1> to vector<8x8xi1>
    %18 = vector.broadcast %cst_9 : f32 to vector<8x8xf32>
    %19 = arith.select %17, %13, %18 : vector<8x8xi1>, vector<8x8xf32>
    %cst_10 = arith.constant dense<0xFF800000> : vector<8xf32>
    %20 = vector.multi_reduction <maximumf>, %19, %cst_10 [1] : vector<8x8xf32> to vector<8xf32>
    %21 = vector.shape_cast %20 : vector<8xf32> to vector<8x1xf32>
    %22 = vector.broadcast %21 : vector<8x1xf32> to vector<8x8xf32>
    %23 = arith.subf %19, %22 : vector<8x8xf32>
    %24 = math.exp %23 : vector<8x8xf32>
    %cst_11 = arith.constant dense<0.000000e+00> : vector<8xf32>
    %25 = vector.multi_reduction <add>, %24, %cst_11 [1] : vector<8x8xf32> to vector<8xf32>
    %26 = vector.shape_cast %25 : vector<8xf32> to vector<8x1xf32>
    %cst_12 = arith.constant 1.000000e+00 : f32
    %27 = vector.broadcast %cst_12 : f32 to vector<8x1xf32>
    %28 = arith.divf %27, %26 : vector<8x1xf32>
    %29 = vector.broadcast %28 : vector<8x1xf32> to vector<8x8xf32>
    %30 = arith.mulf %24, %29 : vector<8x8xf32>
    %31 = arith.truncf %30 : vector<8x8xf32> to vector<8x8xbf16>
    %32 = vector.extract_strided_slice %8 {offsets = [0, 0], sizes = [8, 8], strides = [1, 1]} : vector<8x32xbf16> to vector<8x8xbf16>
    %cst_13 = arith.constant dense<0.000000e+00> : vector<8x8xf32>
    %33 = tpu.matmul %31, %32, %cst_13 {dimension_numbers = #tpu.dot_dimension_numbers<[1], [0], [0], [1], [0, 0, 1, 1], [], []>} : vector<8x8xbf16>, vector<8x8xbf16>, vector<8x8xf32> -> vector<8x8xf32>
    %34 = vector.extract_strided_slice %4 {offsets = [0, 8], sizes = [8, 8], strides = [1, 1]} : vector<8x32xbf16> to vector<8x8xbf16>
    %35 = vector.extract_strided_slice %6 {offsets = [0, 8], sizes = [8, 8], strides = [1, 1]} : vector<8x32xbf16> to vector<8x8xbf16>
    %cst_14 = arith.constant dense<0.000000e+00> : vector<8x8xf32>
    %36 = tpu.matmul %34, %35, %cst_14 {dimension_numbers = #tpu.dot_dimension_numbers<[1], [1], [0], [0], [0, 0, 1, 0], [], []>} : vector<8x8xbf16>, vector<8x8xbf16>, vector<8x8xf32> -> vector<8x8xf32>
    %cst_15 = arith.constant 0.000000e+00 : f32
    %37 = vector.broadcast %cst_15 : f32 to vector<1x8xf32>
    %38 = arith.cmpf ogt, %10, %37 : vector<1x8xf32>
    %cst_16 = arith.constant -1.000000e+09 : f32
    %39 = vector.shape_cast %38 : vector<1x8xi1> to vector<1x8xi1>
    %40 = vector.broadcast %39 : vector<1x8xi1> to vector<8x8xi1>
    %41 = vector.broadcast %cst_16 : f32 to vector<8x8xf32>
    %42 = arith.select %40, %36, %41 : vector<8x8xi1>, vector<8x8xf32>
    %cst_17 = arith.constant dense<0xFF800000> : vector<8xf32>
    %43 = vector.multi_reduction <maximumf>, %42, %cst_17 [1] : vector<8x8xf32> to vector<8xf32>
    %44 = vector.shape_cast %43 : vector<8xf32> to vector<8x1xf32>
    %45 = vector.broadcast %44 : vector<8x1xf32> to vector<8x8xf32>
    %46 = arith.subf %42, %45 : vector<8x8xf32>
    %47 = math.exp %46 : vector<8x8xf32>
    %cst_18 = arith.constant dense<0.000000e+00> : vector<8xf32>
    %48 = vector.multi_reduction <add>, %47, %cst_18 [1] : vector<8x8xf32> to vector<8xf32>
    %49 = vector.shape_cast %48 : vector<8xf32> to vector<8x1xf32>
    %cst_19 = arith.constant 1.000000e+00 : f32
    %50 = vector.broadcast %cst_19 : f32 to vector<8x1xf32>
    %51 = arith.divf %50, %49 : vector<8x1xf32>
    %52 = vector.broadcast %51 : vector<8x1xf32> to vector<8x8xf32>
    %53 = arith.mulf %47, %52 : vector<8x8xf32>
    %54 = arith.truncf %53 : vector<8x8xf32> to vector<8x8xbf16>
    %55 = vector.extract_strided_slice %8 {offsets = [0, 8], sizes = [8, 8], strides = [1, 1]} : vector<8x32xbf16> to vector<8x8xbf16>
    %cst_20 = arith.constant dense<0.000000e+00> : vector<8x8xf32>
    %56 = tpu.matmul %54, %55, %cst_20 {dimension_numbers = #tpu.dot_dimension_numbers<[1], [0], [0], [1], [0, 0, 1, 1], [], []>} : vector<8x8xbf16>, vector<8x8xbf16>, vector<8x8xf32> -> vector<8x8xf32>
    %57 = vector.extract_strided_slice %4 {offsets = [0, 16], sizes = [8, 8], strides = [1, 1]} : vector<8x32xbf16> to vector<8x8xbf16>
    %58 = vector.extract_strided_slice %6 {offsets = [0, 16], sizes = [8, 8], strides = [1, 1]} : vector<8x32xbf16> to vector<8x8xbf16>
    %cst_21 = arith.constant dense<0.000000e+00> : vector<8x8xf32>
    %59 = tpu.matmul %57, %58, %cst_21 {dimension_numbers = #tpu.dot_dimension_numbers<[1], [1], [0], [0], [0, 0, 1, 0], [], []>} : vector<8x8xbf16>, vector<8x8xbf16>, vector<8x8xf32> -> vector<8x8xf32>
    %cst_22 = arith.constant 0.000000e+00 : f32
    %60 = vector.broadcast %cst_22 : f32 to vector<1x8xf32>
    %61 = arith.cmpf ogt, %10, %60 : vector<1x8xf32>
    %cst_23 = arith.constant -1.000000e+09 : f32
    %62 = vector.shape_cast %61 : vector<1x8xi1> to vector<1x8xi1>
    %63 = vector.broadcast %62 : vector<1x8xi1> to vector<8x8xi1>
    %64 = vector.broadcast %cst_23 : f32 to vector<8x8xf32>
    %65 = arith.select %63, %59, %64 : vector<8x8xi1>, vector<8x8xf32>
    %cst_24 = arith.constant dense<0xFF800000> : vector<8xf32>
    %66 = vector.multi_reduction <maximumf>, %65, %cst_24 [1] : vector<8x8xf32> to vector<8xf32>
    %67 = vector.shape_cast %66 : vector<8xf32> to vector<8x1xf32>
    %68 = vector.broadcast %67 : vector<8x1xf32> to vector<8x8xf32>
    %69 = arith.subf %65, %68 : vector<8x8xf32>
    %70 = math.exp %69 : vector<8x8xf32>
    %cst_25 = arith.constant dense<0.000000e+00> : vector<8xf32>
    %71 = vector.multi_reduction <add>, %70, %cst_25 [1] : vector<8x8xf32> to vector<8xf32>
    %72 = vector.shape_cast %71 : vector<8xf32> to vector<8x1xf32>
    %cst_26 = arith.constant 1.000000e+00 : f32
    %73 = vector.broadcast %cst_26 : f32 to vector<8x1xf32>
    %74 = arith.divf %73, %72 : vector<8x1xf32>
    %75 = vector.broadcast %74 : vector<8x1xf32> to vector<8x8xf32>
    %76 = arith.mulf %70, %75 : vector<8x8xf32>
    %77 = arith.truncf %76 : vector<8x8xf32> to vector<8x8xbf16>
    %78 = vector.extract_strided_slice %8 {offsets = [0, 16], sizes = [8, 8], strides = [1, 1]} : vector<8x32xbf16> to vector<8x8xbf16>
    %cst_27 = arith.constant dense<0.000000e+00> : vector<8x8xf32>
    %79 = tpu.matmul %77, %78, %cst_27 {dimension_numbers = #tpu.dot_dimension_numbers<[1], [0], [0], [1], [0, 0, 1, 1], [], []>} : vector<8x8xbf16>, vector<8x8xbf16>, vector<8x8xf32> -> vector<8x8xf32>
    %80 = vector.extract_strided_slice %4 {offsets = [0, 24], sizes = [8, 8], strides = [1, 1]} : vector<8x32xbf16> to vector<8x8xbf16>
    %81 = vector.extract_strided_slice %6 {offsets = [0, 24], sizes = [8, 8], strides = [1, 1]} : vector<8x32xbf16> to vector<8x8xbf16>
    %cst_28 = arith.constant dense<0.000000e+00> : vector<8x8xf32>
    %82 = tpu.matmul %80, %81, %cst_28 {dimension_numbers = #tpu.dot_dimension_numbers<[1], [1], [0], [0], [0, 0, 1, 0], [], []>} : vector<8x8xbf16>, vector<8x8xbf16>, vector<8x8xf32> -> vector<8x8xf32>
    %cst_29 = arith.constant 0.000000e+00 : f32
    %83 = vector.broadcast %cst_29 : f32 to vector<1x8xf32>
    %84 = arith.cmpf ogt, %10, %83 : vector<1x8xf32>
    %cst_30 = arith.constant -1.000000e+09 : f32
    %85 = vector.shape_cast %84 : vector<1x8xi1> to vector<1x8xi1>
    %86 = vector.broadcast %85 : vector<1x8xi1> to vector<8x8xi1>
    %87 = vector.broadcast %cst_30 : f32 to vector<8x8xf32>
    %88 = arith.select %86, %82, %87 : vector<8x8xi1>, vector<8x8xf32>
    %cst_31 = arith.constant dense<0xFF800000> : vector<8xf32>
    %89 = vector.multi_reduction <maximumf>, %88, %cst_31 [1] : vector<8x8xf32> to vector<8xf32>
    %90 = vector.shape_cast %89 : vector<8xf32> to vector<8x1xf32>
    %91 = vector.broadcast %90 : vector<8x1xf32> to vector<8x8xf32>
    %92 = arith.subf %88, %91 : vector<8x8xf32>
    %93 = math.exp %92 : vector<8x8xf32>
    %cst_32 = arith.constant dense<0.000000e+00> : vector<8xf32>
    %94 = vector.multi_reduction <add>, %93, %cst_32 [1] : vector<8x8xf32> to vector<8xf32>
    %95 = vector.shape_cast %94 : vector<8xf32> to vector<8x1xf32>
    %cst_33 = arith.constant 1.000000e+00 : f32
    %96 = vector.broadcast %cst_33 : f32 to vector<8x1xf32>
    %97 = arith.divf %96, %95 : vector<8x1xf32>
    %98 = vector.broadcast %97 : vector<8x1xf32> to vector<8x8xf32>
    %99 = arith.mulf %93, %98 : vector<8x8xf32>
    %100 = arith.truncf %99 : vector<8x8xf32> to vector<8x8xbf16>
    %101 = vector.extract_strided_slice %8 {offsets = [0, 24], sizes = [8, 8], strides = [1, 1]} : vector<8x32xbf16> to vector<8x8xbf16>
    %cst_34 = arith.constant dense<0.000000e+00> : vector<8x8xf32>
    %102 = tpu.matmul %100, %101, %cst_34 {dimension_numbers = #tpu.dot_dimension_numbers<[1], [0], [0], [1], [0, 0, 1, 1], [], []>} : vector<8x8xbf16>, vector<8x8xbf16>, vector<8x8xf32> -> vector<8x8xf32>
    %103 = tpu.concatenate %33, %56, %79, %102 in 1 : vector<8x8xf32>, vector<8x8xf32>, vector<8x8xf32>, vector<8x8xf32> -> vector<8x32xf32>
    %c0_35 = arith.constant 0 : index
    %c0_36 = arith.constant 0 : index
    %c0_37 = arith.constant 0 : index
    %104 = vector.load %arg4[%c0_35, %c0_36, %c0_37] : memref<1x8x32xf32, #tpu.memory_space<vmem>>, vector<1x8x32xf32>
    %105 = vector.shape_cast %104 : vector<1x8x32xf32> to vector<8x32xf32>
    %106 = vector.shape_cast %103 : vector<8x32xf32> to vector<1x8x32xf32>
    tpu.vector_store %arg4[%c0_35, %c0_36, %c0_37], %106 {strides = array<i32>} : memref<1x8x32xf32, #tpu.memory_space<vmem>>, vector<1x8x32xf32>,
    return
  }
  func.func @transform_0(%arg0: i32) -> (i32, i32, i32) {
    %c0_i32 = arith.constant 0 : i32
    %c0_i32_0 = arith.constant 0 : i32
    %c0_i32_1 = arith.constant 0 : i32
    return %arg0, %c0_i32, %c0_i32_0 : i32, i32, i32
  }
  func.func @transform_1(%arg0: i32) -> (i32, i32, i32) {
    %c0_i32 = arith.constant 0 : i32
    %c0_i32_0 = arith.constant 0 : i32
    %c0_i32_1 = arith.constant 0 : i32
    return %arg0, %c0_i32, %c0_i32_0 : i32, i32, i32
  }
  func.func @transform_2(%arg0: i32) -> (i32, i32, i32) {
    %c0_i32 = arith.constant 0 : i32
    %c0_i32_0 = arith.constant 0 : i32
    %c0_i32_1 = arith.constant 0 : i32
    return %arg0, %c0_i32, %c0_i32_0 : i32, i32, i32
  }
  func.func @transform_3(%arg0: i32) -> (i32, i32, i32) {
    %c0_i32 = arith.constant 0 : i32
    %c0_i32_0 = arith.constant 0 : i32
    %c0_i32_1 = arith.constant 0 : i32
    return %arg0, %c0_i32, %c0_i32_0 : i32, i32, i32
  }
}

module attributes {stable_mosaic.version = 11 : i64} {
  func.func @_linear_kernel(%arg0: i32, %arg1: i32, %arg2: i32, %arg3: memref<16x32xf32, #tpu.memory_space<vmem>>, %arg4: memref<32x128xbf16, #tpu.memory_space<vmem>>, %arg5: memref<1x128xf32, #tpu.memory_space<vmem>>, %arg6: memref<1x32xf32, #tpu.memory_space<vmem>>, %arg7: memref<1x32xf32, #tpu.memory_space<vmem>>, %arg8: memref<16x128xf32, #tpu.memory_space<vmem>>) attributes {dimension_semantics = [#tpu.dimension_semantics<parallel>, #tpu.dimension_semantics<parallel>, #tpu.dimension_semantics<arbitrary>], iteration_bounds = array<i64: 1, 1, 1>, scalar_prefetch = 0 : i64, scratch_operands = 0 : i64, tpu.core_type = #tpu.core_type<tc>, window_params = [{transform_indices = @transform_0, window_bounds = array<i64: 16, 32>}, {transform_indices = @transform_1, window_bounds = array<i64: 32, 128>}, {transform_indices = @transform_2, window_bounds = array<i64: 1, 128>}, {pipeline_mode = #tpu.pipeline_mode<synchronous>, transform_indices = @transform_3, window_bounds = array<i64: 1, 32>}, {pipeline_mode = #tpu.pipeline_mode<synchronous>, transform_indices = @transform_4, window_bounds = array<i64: 1, 32>}, {transform_indices = @transform_5, window_bounds = array<i64: 16, 128>}]} {
    %c0 = arith.constant 0 : index
    %c0_0 = arith.constant 0 : index
    %0 = vector.load %arg3[%c0, %c0_0] : memref<16x32xf32, #tpu.memory_space<vmem>>, vector<16x32xf32>
    %cst = arith.constant dense<0.000000e+00> : vector<16xf32>
    %1 = vector.multi_reduction <add>, %0, %cst [1] : vector<16x32xf32> to vector<16xf32>
    %2 = vector.shape_cast %1 : vector<16xf32> to vector<16x1xf32>
    %cst_1 = arith.constant 3.200000e+01 : f32
    %3 = vector.broadcast %cst_1 : f32 to vector<16x1xf32>
    %4 = arith.divf %2, %3 : vector<16x1xf32>
    %5 = vector.broadcast %4 : vector<16x1xf32> to vector<16x32xf32>
    %6 = arith.subf %0, %5 : vector<16x32xf32>
    %7 = arith.mulf %6, %6 : vector<16x32xf32>
    %cst_2 = arith.constant dense<0.000000e+00> : vector<16xf32>
    %8 = vector.multi_reduction <add>, %7, %cst_2 [1] : vector<16x32xf32> to vector<16xf32>
    %9 = vector.shape_cast %8 : vector<16xf32> to vector<16x1xf32>
    %cst_3 = arith.constant 3.200000e+01 : f32
    %10 = vector.broadcast %cst_3 : f32 to vector<16x1xf32>
    %11 = arith.divf %9, %10 : vector<16x1xf32>
    %12 = vector.broadcast %4 : vector<16x1xf32> to vector<16x32xf32>
    %13 = arith.subf %0, %12 : vector<16x32xf32>
    %cst_4 = arith.constant 9.99999974E-6 : f32
    %14 = vector.broadcast %cst_4 : f32 to vector<16x1xf32>
    %15 = arith.addf %11, %14 : vector<16x1xf32>
    %16 = math.rsqrt %15 : vector<16x1xf32>
    %17 = vector.broadcast %16 : vector<16x1xf32> to vector<16x32xf32>
    %18 = arith.mulf %13, %17 : vector<16x32xf32>
    %c0_5 = arith.constant 0 : index
    %c0_6 = arith.constant 0 : index
    %19 = vector.load %arg6[%c0_5, %c0_6] : memref<1x32xf32, #tpu.memory_space<vmem>>, vector<1x32xf32>
    %20 = vector.broadcast %19 : vector<1x32xf32> to vector<16x32xf32>
    %21 = arith.mulf %18, %20 : vector<16x32xf32>
    %c0_7 = arith.constant 0 : index
    %c0_8 = arith.constant 0 : index
    %22 = vector.load %arg7[%c0_7, %c0_8] : memref<1x32xf32, #tpu.memory_space<vmem>>, vector<1x32xf32>
    %23 = vector.broadcast %22 : vector<1x32xf32> to vector<16x32xf32>
    %24 = arith.addf %21, %23 : vector<16x32xf32>
    %25 = arith.truncf %24 : vector<16x32xf32> to vector<16x32xbf16>
    %c0_9 = arith.constant 0 : index
    %c0_10 = arith.constant 0 : index
    %26 = vector.load %arg4[%c0_9, %c0_10] : memref<32x128xbf16, #tpu.memory_space<vmem>>, vector<32x128xbf16>
    %cst_11 = arith.constant dense<0.000000e+00> : vector<16x128xf32>
    %27 = tpu.matmul %25, %26, %cst_11 {dimension_numbers = #tpu.dot_dimension_numbers<[1], [0], [0], [1], [0, 0, 1, 1], [], []>} : vector<16x32xbf16>, vector<32x128xbf16>, vector<16x128xf32> -> vector<16x128xf32>
    %c0_12 = arith.constant 0 : index
    %c0_13 = arith.constant 0 : index
    %28 = vector.load %arg5[%c0_12, %c0_13] : memref<1x128xf32, #tpu.memory_space<vmem>>, vector<1x128xf32>
    %29 = vector.broadcast %28 : vector<1x128xf32> to vector<16x128xf32>
    %30 = arith.addf %27, %29 : vector<16x128xf32>
    %c0_14 = arith.constant 0 : index
    %c0_15 = arith.constant 0 : index
    %31 = vector.load %arg8[%c0_14, %c0_15] : memref<16x128xf32, #tpu.memory_space<vmem>>, vector<16x128xf32>
    tpu.vector_store %arg8[%c0_14, %c0_15], %30 {strides = array<i32>} : memref<16x128xf32, #tpu.memory_space<vmem>>, vector<16x128xf32>,
    return
  }
  func.func @transform_0(%arg0: i32, %arg1: i32, %arg2: i32) -> (i32, i32) {
    %c0_i32 = arith.constant 0 : i32
    return %arg0, %arg2 : i32, i32
  }
  func.func @transform_1(%arg0: i32, %arg1: i32, %arg2: i32) -> (i32, i32) {
    %c0_i32 = arith.constant 0 : i32
    return %arg2, %arg1 : i32, i32
  }
  func.func @transform_2(%arg0: i32, %arg1: i32, %arg2: i32) -> (i32, i32) {
    %c0_i32 = arith.constant 0 : i32
    %c0_i32_0 = arith.constant 0 : i32
    return %c0_i32, %arg1 : i32, i32
  }
  func.func @transform_3(%arg0: i32, %arg1: i32, %arg2: i32) -> (i32, i32) {
    %c0_i32 = arith.constant 0 : i32
    %c0_i32_0 = arith.constant 0 : i32
    %c0_i32_1 = arith.constant 0 : i32
    return %c0_i32, %c0_i32_0 : i32, i32
  }
  func.func @transform_4(%arg0: i32, %arg1: i32, %arg2: i32) -> (i32, i32) {
    %c0_i32 = arith.constant 0 : i32
    %c0_i32_0 = arith.constant 0 : i32
    %c0_i32_1 = arith.constant 0 : i32
    return %c0_i32, %c0_i32_0 : i32, i32
  }
  func.func @transform_5(%arg0: i32, %arg1: i32, %arg2: i32) -> (i32, i32) {
    %c0_i32 = arith.constant 0 : i32
    return %arg0, %arg1 : i32, i32
  }
}

</mosaic_0001>

<llo_original>
// kernel: transformer_forward.25
$region0: #{transformer_forward.25}
  #allocation0 [shape = 'u32[]', space=smem, size = 0x4, offset = 0x4, fixed_abs, tag = 'smem constant byte address 0x4 - core index']
  #allocation1 [shape = 'u32[144,128]{1,0:T(1,128)}', space=vmem, size = 0x12000, scoped, tag = 'internal scratch']
  %s0 = inlined_call_operand.vmem [shape: f32[16,32], index: 0, kind: input, shape index: {}]
  %s1 = inlined_call_operand.vmem [shape: bf16[32,96], index: 1, kind: input, shape index: {}]
  %s2 = inlined_call_operand.vmem [shape: f32[1,96], index: 2, kind: input, shape index: {}]
  %s3 = inlined_call_operand.vmem [shape: f32[1,32], index: 3, kind: input, shape index: {}]
  %s4 = inlined_call_operand.vmem [shape: f32[1,32], index: 4, kind: input, shape index: {}]
  %s5 = inlined_call_operand.vmem [shape: f32[16,96], index: 5, kind: output, shape index: {}]
  %s6 = sld [smem:[#allocation0]]
  $region30: #{transformer_forward.25} parent=0
    _
  %s8 = ssub.s32 1, %s6
  %s9 = scalar_select 0, %s8, %s6
  // Predicated region
  $region2: #{transformer_forward.25} parent=0 // pred_check
    _
  $region3: #{transformer_forward.25} parent=0 // pred_check_branch
    %11 = sbr.rel (0) target = $region5
  $region4: #{transformer_forward.25} parent=0 // pred_region
    _
  $region5: #{transformer_forward.25} parent=0 // pred_fallthru
    _
  // Predicated region
  $region6: #{transformer_forward.25} parent=0 // pred_check
    _
  $region7: #{transformer_forward.25} parent=0 // pred_check_branch
    %13 = sbr.rel (0) target = $region9
  $region8: #{transformer_forward.25} parent=0 // pred_region
    _
  $region9: #{transformer_forward.25} parent=0 // pred_fallthru
    _
  // Predicated region
  $region10: #{transformer_forward.25} parent=0 // pred_check
    _
  $region11: #{transformer_forward.25} parent=0 // pred_check_branch
    %15 = sbr.rel (0) target = $region13
  $region12: #{transformer_forward.25} parent=0 // pred_region
    _
  $region13: #{transformer_forward.25} parent=0 // pred_fallthru
    _
  // Predicated region
  $region14: #{transformer_forward.25} parent=0 // pred_check
    _
  $region15: #{transformer_forward.25} parent=0 // pred_check_branch
    %17 = sbr.rel (0) target = $region17
  $region16: #{transformer_forward.25} parent=0 // pred_region
    _
  $region17: #{transformer_forward.25} parent=0 // pred_fallthru
    _
  // Predicated region
  $region18: #{transformer_forward.25} parent=0 // pred_check
    _
  $region19: #{transformer_forward.25} parent=0 // pred_check_branch
    %19 = sbr.rel (0) target = $region21
  $region20: #{transformer_forward.25} parent=0 // pred_region
    _
  $region21: #{transformer_forward.25} parent=0 // pred_fallthru
    _
  %v21 = vld [vmem:[%s0] sm:$0xff]
  %v22 = vld [vmem:[%s0 + $0x8] sm:$0xff]
  %vm23 = vcmask 261120
  %v24 = vsel %vm23, %v21, 0.0
  %25 = vadd.xlane.f32.xlu0 %v24
  %v26 = vpop.xlane.xlu0 %25
  %v27 = vsel %vm23, %v22, 0.0
  %28 = vadd.xlane.f32.xlu0 %v27
  %v29 = vpop.xlane.xlu0 %28
  %v30 = vrcp.pop 32.0
  %v31 = vmul.f32 %v26, %v30
  %v32 = vmul.f32 %v29, %v30
  %v33 = vsub.f32 %v21, %v31
  %v34 = vsub.f32 %v22, %v32
  %v35 = vmul.f32 %v33, %v33
  %v36 = vmul.f32 %v34, %v34
  %v37 = vsel %vm23, %v35, 0.0
  %38 = vadd.xlane.f32.xlu0 %v37
  %v39 = vpop.xlane.xlu0 %38
  %v40 = vsel %vm23, %v36, 0.0
  %41 = vadd.xlane.f32.xlu0 %v40
  %v42 = vpop.xlane.xlu0 %41
  %v43 = vmul.f32 %v39, %v30
  %v44 = vmul.f32 %v42, %v30
  %v45 = vadd.f32 %v43, 1e-05
  %v46 = vadd.f32 %v44, 1e-05
  %v47 = vrsqrt.pop %v45
  %v48 = vrsqrt.pop %v46
  %v49 = vmul.f32 %v33, %v47
  %v50 = vmul.f32 %v34, %v48
  %v51 = vld [vmem:[%s3] sm:$0x1]
  %v53 = vlaneseq
  %v54 = vshrl.u32 %v53, 7
  %v55 = vsub.s32 0, %v54
  %v56 = vrot.slane %v51, %v55
  %v58 = vmul.f32 %v49, %v56
  %v59 = vmul.f32 %v50, %v56
  %v60 = vld [vmem:[%s4] sm:$0x1]
  %v62 = vlaneseq
  %v63 = vshrl.u32 %v62, 7
  %v64 = vsub.s32 0, %v63
  %v65 = vrot.slane %v60, %v64
  %v67 = vadd.f32 %v58, %v65
  %v68 = vadd.f32 %v59, %v65
  %v69 = vpack.c.bf16 %v68, %v67
  %v70 = vld [vmem:[%s1] sm:$0xf]
  %v71 = vld [vmem:[%s1 + $0x4] sm:$0xf]
  %v72 = vld [vmem:[%s1 + $0x8] sm:$0xf]
  %v73 = vld [vmem:[%s1 + $0xc] sm:$0xf]
  %v74 = vld [vmem:[%s2] sm:$0x1]
  %v76 = vlaneseq
  %v77 = vshrl.u32 %v76, 7
  %v78 = vsub.s32 0, %v77
  %v79 = vrot.slane %v74, %v78
  %v85 = vunpack.c.l.b16 %v70
  %v86 = vunpack.c.l.b16 %v71
  %v87 = vunpack.c.l.b16 %v72
  %v88 = vunpack.c.l.b16 %v73
  %v89 = vpack.c.b16 %v86, %v85
  %v90 = vpack.c.b16 %v88, %v87
  %v94 = vsel %vm23, %v69, 0
  %96 = vmatprep.subr.bf16.mxu0 0
  %97 = vmatpush1.bf16.msra.mxu0 0
  %98 = vmatprep.subr.bf16.mxu0 0
  %99 = vmatpush1.bf16.msra.mxu0 0
  %100 = vmatprep.subr.bf16.mxu0 0
  %101 = vmatpush1.bf16.msra.mxu0 0
  %102 = vmatprep.subr.bf16.mxu0 0
  %103 = vmatpush1.bf16.msra.mxu0 0
  %104 = vmatprep.subr.bf16.mxu0 0
  %105 = vmatpush1.bf16.msra.mxu0 0
  %106 = vmatprep.subr.bf16.mxu0 0
  %107 = vmatpush1.bf16.msra.mxu0 0
  %108 = vmatprep.subr.bf16.mxu0 0
  %109 = vmatpush1.bf16.msra.mxu0 %v90
  %110 = vmatprep.subr.bf16.mxu0 0
  %111 = vmatpush1.bf16.msra.mxu0 %v89
  %112 = vmatprep.subr.bf16.mxu0 0
  %113 = vmatpush2.bf16.msra.mxu0 0
  %114 = vmatprep.subr.bf16.mxu0 0
  %115 = vmatpush2.bf16.msra.mxu0 0
  %116 = vmatprep.subr.bf16.mxu0 0
  %117 = vmatpush2.bf16.msra.mxu0 0
  %118 = vmatprep.subr.bf16.mxu0 0
  %119 = vmatpush2.bf16.msra.mxu0 0
  %120 = vmatprep.subr.bf16.mxu0 0
  %121 = vmatpush2.bf16.msra.mxu0 0
  %122 = vmatprep.subr.bf16.mxu0 0
  %123 = vmatpush2.bf16.msra.mxu0 0
  %124 = vmatprep.subr.bf16.mxu0 0
  %125 = vmatpush2.bf16.msra.mxu0 0
  %126 = vmatprep.subr.bf16.mxu0 0
  %127 = vmatpush2.bf16.msra.mxu0 0
  %128 = vmatprep.mubr.bf16.mxu0 0
  %129 = vmatmul.mubr.bf16.gmra.mxu0 %v94
  %v130 = vpop.f32.mrf.mxu0
  %v131 = vadd.f32 %v79, %v130
  %v132 = vpop.f32.mrf.mxu0
  %v133 = vpop.f32.mrf.mxu0
  %v134 = vadd.f32 %v79, %v133
  %v135 = vpop.f32.mrf.mxu0
  %136 = vdwg.mxu0
  %vm137 = vcmask 785408
  %138 = vst.msk [vmem:[%s5] sm:$0xff] %vm137, %v131
  %139 = vst.msk [vmem:[%s5 + $0x8] sm:$0xff] %vm137, %v134
  // Predicated region
  $region22: #{transformer_forward.25} parent=0 // pred_check
    _
  $region23: #{transformer_forward.25} parent=0 // pred_check_branch
    %141 = sbr.rel (0) target = $region25
  $region24: #{transformer_forward.25} parent=0 // pred_region
    _
  $region25: #{transformer_forward.25} parent=0 // pred_fallthru
    _
  // Predicated region
  $region26: #{transformer_forward.25} parent=0 // pred_check
    _
  $region27: #{transformer_forward.25} parent=0 // pred_check_branch
    %143 = sbr.rel (0) target = $region29
  $region28: #{transformer_forward.25} parent=0 // pred_region
    _
  $region29: #{transformer_forward.25} parent=0 // pred_fallthru
    _

// kernel: transformer_forward.27
$region0: #{transformer_forward.27}
  #allocation0 [shape = 'u32[]', space=smem, size = 0x4, offset = 0x4, fixed_abs, tag = 'smem constant byte address 0x4 - core index']
  #allocation1 [shape = 'u32[144,128]{1,0:T(1,128)}', space=vmem, size = 0x12000, scoped, tag = 'internal scratch']
  %s0 = inlined_call_operand.vmem [shape: f32[16,32], index: 0, kind: input, shape index: {}]
  %s1 = inlined_call_operand.vmem [shape: bf16[32,32], index: 1, kind: input, shape index: {}]
  %s2 = inlined_call_operand.vmem [shape: f32[1,32], index: 2, kind: input, shape index: {}]
  %s3 = inlined_call_operand.vmem [shape: f32[16,32], index: 3, kind: input, shape index: {}]
  %s4 = inlined_call_operand.vmem [shape: f32[16,32], index: 4, kind: output, shape index: {}]
  %s5 = sld [smem:[#allocation0]]
  $region26: #{transformer_forward.27} parent=0
    _
  %s7 = ssub.s32 1, %s5
  %s8 = scalar_select 0, %s7, %s5
  // Predicated region
  $region2: #{transformer_forward.27} parent=0 // pred_check
    _
  $region3: #{transformer_forward.27} parent=0 // pred_check_branch
    %10 = sbr.rel (0) target = $region5
  $region4: #{transformer_forward.27} parent=0 // pred_region
    _
  $region5: #{transformer_forward.27} parent=0 // pred_fallthru
    _
  // Predicated region
  $region6: #{transformer_forward.27} parent=0 // pred_check
    _
  $region7: #{transformer_forward.27} parent=0 // pred_check_branch
    %12 = sbr.rel (0) target = $region9
  $region8: #{transformer_forward.27} parent=0 // pred_region
    _
  $region9: #{transformer_forward.27} parent=0 // pred_fallthru
    _
  // Predicated region
  $region10: #{transformer_forward.27} parent=0 // pred_check
    _
  $region11: #{transformer_forward.27} parent=0 // pred_check_branch
    %14 = sbr.rel (0) target = $region13
  $region12: #{transformer_forward.27} parent=0 // pred_region
    _
  $region13: #{transformer_forward.27} parent=0 // pred_fallthru
    _
  // Predicated region
  $region14: #{transformer_forward.27} parent=0 // pred_check
    _
  $region15: #{transformer_forward.27} parent=0 // pred_check_branch
    %16 = sbr.rel (0) target = $region17
  $region16: #{transformer_forward.27} parent=0 // pred_region
    _
  $region17: #{transformer_forward.27} parent=0 // pred_fallthru
    _
  %v18 = vld [vmem:[%s0] sm:$0xff]
  %v19 = vld [vmem:[%s0 + $0x8] sm:$0xff]
  %v20 = vpack.c.bf16 %v19, %v18
  %v21 = vld [vmem:[%s1] sm:$0xf]
  %v22 = vld [vmem:[%s1 + $0x4] sm:$0xf]
  %v23 = vld [vmem:[%s1 + $0x8] sm:$0xf]
  %v24 = vld [vmem:[%s1 + $0xc] sm:$0xf]
  %v25 = vld [vmem:[%s2] sm:$0x1]
  %v27 = vlaneseq
  %v28 = vshrl.u32 %v27, 7
  %v29 = vsub.s32 0, %v28
  %v30 = vrot.slane %v25, %v29
  %v36 = vunpack.c.l.b16 %v21
  %v37 = vunpack.c.l.b16 %v22
  %v38 = vunpack.c.l.b16 %v23
  %v39 = vunpack.c.l.b16 %v24
  %v40 = vpack.c.b16 %v37, %v36
  %v41 = vpack.c.b16 %v39, %v38
  %vm44 = vcmask 261120
  %v46 = vsel %vm44, %v20, 0
  %48 = vmatprep.subr.bf16.mxu0 0
  %49 = vmatpush1.bf16.msra.mxu0 0
  %50 = vmatprep.subr.bf16.mxu0 0
  %51 = vmatpush1.bf16.msra.mxu0 0
  %52 = vmatprep.subr.bf16.mxu0 0
  %53 = vmatpush1.bf16.msra.mxu0 0
  %54 = vmatprep.subr.bf16.mxu0 0
  %55 = vmatpush1.bf16.msra.mxu0 0
  %56 = vmatprep.subr.bf16.mxu0 0
  %57 = vmatpush1.bf16.msra.mxu0 0
  %58 = vmatprep.subr.bf16.mxu0 0
  %59 = vmatpush1.bf16.msra.mxu0 0
  %60 = vmatprep.subr.bf16.mxu0 0
  %61 = vmatpush1.bf16.msra.mxu0 %v41
  %62 = vmatprep.subr.bf16.mxu0 0
  %63 = vmatpush1.bf16.msra.mxu0 %v40
  %64 = vmatprep.subr.bf16.mxu0 0
  %65 = vmatpush2.bf16.msra.mxu0 0
  %66 = vmatprep.subr.bf16.mxu0 0
  %67 = vmatpush2.bf16.msra.mxu0 0
  %68 = vmatprep.subr.bf16.mxu0 0
  %69 = vmatpush2.bf16.msra.mxu0 0
  %70 = vmatprep.subr.bf16.mxu0 0
  %71 = vmatpush2.bf16.msra.mxu0 0
  %72 = vmatprep.subr.bf16.mxu0 0
  %73 = vmatpush2.bf16.msra.mxu0 0
  %74 = vmatprep.subr.bf16.mxu0 0
  %75 = vmatpush2.bf16.msra.mxu0 0
  %76 = vmatprep.subr.bf16.mxu0 0
  %77 = vmatpush2.bf16.msra.mxu0 0
  %78 = vmatprep.subr.bf16.mxu0 0
  %79 = vmatpush2.bf16.msra.mxu0 0
  %80 = vmatprep.mubr.bf16.mxu0 0
  %81 = vmatmul.mubr.bf16.gmra.mxu0 %v46
  %v82 = vpop.f32.mrf.mxu0
  %v83 = vadd.f32 %v30, %v82
  %v84 = vpop.f32.mrf.mxu0
  %v85 = vpop.f32.mrf.mxu0
  %v86 = vadd.f32 %v30, %v85
  %v87 = vpop.f32.mrf.mxu0
  %88 = vdwg.mxu0
  %v89 = vld [vmem:[%s3] sm:$0xff]
  %v90 = vld [vmem:[%s3 + $0x8] sm:$0xff]
  %v91 = vadd.f32 %v83, %v89
  %v92 = vadd.f32 %v86, %v90
  %93 = vst.msk [vmem:[%s4] sm:$0xff] %vm44, %v91
  %94 = vst.msk [vmem:[%s4 + $0x8] sm:$0xff] %vm44, %v92
  // Predicated region
  $region18: #{transformer_forward.27} parent=0 // pred_check
    _
  $region19: #{transformer_forward.27} parent=0 // pred_check_branch
    %96 = sbr.rel (0) target = $region21
  $region20: #{transformer_forward.27} parent=0 // pred_region
    _
  $region21: #{transformer_forward.27} parent=0 // pred_fallthru
    _
  // Predicated region
  $region22: #{transformer_forward.27} parent=0 // pred_check
    _
  $region23: #{transformer_forward.27} parent=0 // pred_check_branch
    %98 = sbr.rel (0) target = $region25
  $region24: #{transformer_forward.27} parent=0 // pred_region
    _
  $region25: #{transformer_forward.27} parent=0 // pred_fallthru
    _

// kernel: transformer_forward.28
$region0: #{transformer_forward.28}
  #allocation0 [shape = 'u32[]', space=smem, size = 0x4, offset = 0x4, fixed_abs, tag = 'smem constant byte address 0x4 - core index']
  #allocation1 [shape = 'u32[144,128]{1,0:T(1,128)}', space=vmem, size = 0x12000, scoped, tag = 'internal scratch']
  %s0 = inlined_call_operand.vmem [shape: f32[16,32], index: 0, kind: input, shape index: {}, may-alias: {0,7}]
  %s1 = inlined_call_operand.vmem [shape: bf16[32,64], index: 1, kind: input, shape index: {}]
  %s2 = inlined_call_operand.vmem [shape: f32[1,64], index: 2, kind: input, shape index: {}]
  %s3 = inlined_call_operand.vmem [shape: bf16[64,32], index: 3, kind: input, shape index: {}]
  %s4 = inlined_call_operand.vmem [shape: f32[1,32], index: 4, kind: input, shape index: {}]
  %s5 = inlined_call_operand.vmem [shape: f32[1,32], index: 5, kind: input, shape index: {}]
  %s6 = inlined_call_operand.vmem [shape: f32[1,32], index: 6, kind: input, shape index: {}]
  %s7 = inlined_call_operand.vmem [shape: f32[16,32], index: 7, kind: input, shape index: {}, may-alias: {0,7}]
  %s8 = inlined_call_operand.vmem [shape: f32[16,32], index: 8, kind: output, shape index: {}]
  %s9 = sld [smem:[#allocation0]]
  $region42: #{transformer_forward.28} parent=0
    _
  %s11 = ssub.s32 1, %s9
  %s12 = scalar_select 0, %s11, %s9
  // Predicated region
  $region2: #{transformer_forward.28} parent=0 // pred_check
    _
  $region3: #{transformer_forward.28} parent=0 // pred_check_branch
    %14 = sbr.rel (0) target = $region5
  $region4: #{transformer_forward.28} parent=0 // pred_region
    _
  $region5: #{transformer_forward.28} parent=0 // pred_fallthru
    _
  // Predicated region
  $region6: #{transformer_forward.28} parent=0 // pred_check
    _
  $region7: #{transformer_forward.28} parent=0 // pred_check_branch
    %16 = sbr.rel (0) target = $region9
  $region8: #{transformer_forward.28} parent=0 // pred_region
    _
  $region9: #{transformer_forward.28} parent=0 // pred_fallthru
    _
  // Predicated region
  $region10: #{transformer_forward.28} parent=0 // pred_check
    _
  $region11: #{transformer_forward.28} parent=0 // pred_check_branch
    %18 = sbr.rel (0) target = $region13
  $region12: #{transformer_forward.28} parent=0 // pred_region
    _
  $region13: #{transformer_forward.28} parent=0 // pred_fallthru
    _
  // Predicated region
  $region14: #{transformer_forward.28} parent=0 // pred_check
    _
  $region15: #{transformer_forward.28} parent=0 // pred_check_branch
    %20 = sbr.rel (0) target = $region17
  $region16: #{transformer_forward.28} parent=0 // pred_region
    _
  $region17: #{transformer_forward.28} parent=0 // pred_fallthru
    _
  // Predicated region
  $region18: #{transformer_forward.28} parent=0 // pred_check
    _
  $region19: #{transformer_forward.28} parent=0 // pred_check_branch
    %22 = sbr.rel (0) target = $region21
  $region20: #{transformer_forward.28} parent=0 // pred_region
    _
  $region21: #{transformer_forward.28} parent=0 // pred_fallthru
    _
  // Predicated region
  $region22: #{transformer_forward.28} parent=0 // pred_check
    _
  $region23: #{transformer_forward.28} parent=0 // pred_check_branch
    %24 = sbr.rel (0) target = $region25
  $region24: #{transformer_forward.28} parent=0 // pred_region
    _
  $region25: #{transformer_forward.28} parent=0 // pred_fallthru
    _
  // Predicated region
  $region26: #{transformer_forward.28} parent=0 // pred_check
    _
  $region27: #{transformer_forward.28} parent=0 // pred_check_branch
    %26 = sbr.rel (0) target = $region29
  $region28: #{transformer_forward.28} parent=0 // pred_region
    _
  $region29: #{transformer_forward.28} parent=0 // pred_fallthru
    _
  // Predicated region
  $region30: #{transformer_forward.28} parent=0 // pred_check
    _
  $region31: #{transformer_forward.28} parent=0 // pred_check_branch
    %28 = sbr.rel (0) target = $region33
  $region32: #{transformer_forward.28} parent=0 // pred_region
    _
  $region33: #{transformer_forward.28} parent=0 // pred_fallthru
    _
  %v30 = vld [vmem:[%s0] sm:$0xff]
  %v31 = vld [vmem:[%s0 + $0x8] sm:$0xff]
  %vm32 = vcmask 261120
  %v33 = vsel %vm32, %v30, 0.0
  %34 = vadd.xlane.f32.xlu0 %v33
  %v35 = vpop.xlane.xlu0 %34
  %v36 = vsel %vm32, %v31, 0.0
  %37 = vadd.xlane.f32.xlu0 %v36
  %v38 = vpop.xlane.xlu0 %37
  %v39 = vrcp.pop 32.0
  %v40 = vmul.f32 %v35, %v39
  %v41 = vmul.f32 %v38, %v39
  %v42 = vsub.f32 %v30, %v40
  %v43 = vsub.f32 %v31, %v41
  %v44 = vmul.f32 %v42, %v42
  %v45 = vmul.f32 %v43, %v43
  %v46 = vsel %vm32, %v44, 0.0
  %47 = vadd.xlane.f32.xlu0 %v46
  %v48 = vpop.xlane.xlu0 %47
  %v49 = vsel %vm32, %v45, 0.0
  %50 = vadd.xlane.f32.xlu0 %v49
  %v51 = vpop.xlane.xlu0 %50
  %v52 = vmul.f32 %v48, %v39
  %v53 = vmul.f32 %v51, %v39
  %v54 = vadd.f32 %v52, 1e-05
  %v55 = vadd.f32 %v53, 1e-05
  %v56 = vrsqrt.pop %v54
  %v57 = vrsqrt.pop %v55
  %v58 = vmul.f32 %v42, %v56
  %v59 = vmul.f32 %v43, %v57
  %v60 = vld [vmem:[%s5] sm:$0x1]
  %v62 = vlaneseq
  %v63 = vshrl.u32 %v62, 7
  %v64 = vsub.s32 0, %v63
  %v65 = vrot.slane %v60, %v64
  %v67 = vmul.f32 %v58, %v65
  %v68 = vmul.f32 %v59, %v65
  %v69 = vld [vmem:[%s6] sm:$0x1]
  %v71 = vlaneseq
  %v72 = vshrl.u32 %v71, 7
  %v73 = vsub.s32 0, %v72
  %v74 = vrot.slane %v69, %v73
  %v76 = vadd.f32 %v67, %v74
  %v77 = vadd.f32 %v68, %v74
  %v78 = vpack.c.bf16 %v77, %v76
  %v79 = vld [vmem:[%s1] sm:$0xf]
  %v80 = vld [vmem:[%s1 + $0x4] sm:$0xf]
  %v81 = vld [vmem:[%s1 + $0x8] sm:$0xf]
  %v82 = vld [vmem:[%s1 + $0xc] sm:$0xf]
  %v83 = vld [vmem:[%s2] sm:$0x1]
  %v85 = vlaneseq
  %v86 = vshrl.u32 %v85, 7
  %v87 = vsub.s32 0, %v86
  %v88 = vrot.slane %v83, %v87
  %v94 = vunpack.c.l.b16 %v79
  %v95 = vunpack.c.l.b16 %v80
  %v96 = vunpack.c.l.b16 %v81
  %v97 = vunpack.c.l.b16 %v82
  %v98 = vpack.c.b16 %v95, %v94
  %v99 = vpack.c.b16 %v97, %v96
  %v103 = vsel %vm32, %v78, 0
  %105 = vmatprep.subr.bf16.mxu0 0
  %106 = vmatpush1.bf16.msra.mxu0 0
  %107 = vmatprep.subr.bf16.mxu0 0
  %108 = vmatpush1.bf16.msra.mxu0 0
  %109 = vmatprep.subr.bf16.mxu0 0
  %110 = vmatpush1.bf16.msra.mxu0 0
  %111 = vmatprep.subr.bf16.mxu0 0
  %112 = vmatpush1.bf16.msra.mxu0 0
  %113 = vmatprep.subr.bf16.mxu0 0
  %114 = vmatpush1.bf16.msra.mxu0 0
  %115 = vmatprep.subr.bf16.mxu0 0
  %116 = vmatpush1.bf16.msra.mxu0 0
  %117 = vmatprep.subr.bf16.mxu0 0
  %118 = vmatpush1.bf16.msra.mxu0 %v99
  %119 = vmatprep.subr.bf16.mxu0 0
  %120 = vmatpush1.bf16.msra.mxu0 %v98
  %121 = vmatprep.subr.bf16.mxu0 0
  %122 = vmatpush2.bf16.msra.mxu0 0
  %123 = vmatprep.subr.bf16.mxu0 0
  %124 = vmatpush2.bf16.msra.mxu0 0
  %125 = vmatprep.subr.bf16.mxu0 0
  %126 = vmatpush2.bf16.msra.mxu0 0
  %127 = vmatprep.subr.bf16.mxu0 0
  %128 = vmatpush2.bf16.msra.mxu0 0
  %129 = vmatprep.subr.bf16.mxu0 0
  %130 = vmatpush2.bf16.msra.mxu0 0
  %131 = vmatprep.subr.bf16.mxu0 0
  %132 = vmatpush2.bf16.msra.mxu0 0
  %133 = vmatprep.subr.bf16.mxu0 0
  %134 = vmatpush2.bf16.msra.mxu0 0
  %135 = vmatprep.subr.bf16.mxu0 0
  %136 = vmatpush2.bf16.msra.mxu0 0
  %137 = vmatprep.mubr.bf16.mxu0 0
  %138 = vmatmul.mubr.bf16.gmra.mxu0 %v103
  %v139 = vpop.f32.mrf.mxu0
  %v140 = vadd.f32 %v88, %v139
  %v141 = vpop.f32.mrf.mxu0
  %v142 = vpop.f32.mrf.mxu0
  %v143 = vadd.f32 %v88, %v142
  %v144 = vpop.f32.mrf.mxu0
  %145 = vdwg.mxu0
  %v146 = vmax.f32 %v140, 0.0
  %v147 = vmax.f32 %v143, 0.0
  %v148 = vpack.c.bf16 %v147, %v146
  %v149 = vld [vmem:[%s3] sm:$0xf]
  %v150 = vld [vmem:[%s3 + $0x4] sm:$0xf]
  %v151 = vld [vmem:[%s3 + $0x8] sm:$0xf]
  %v152 = vld [vmem:[%s3 + $0xc] sm:$0xf]
  %v153 = vld [vmem:[%s3 + $0x10] sm:$0xf]
  %v154 = vld [vmem:[%s3 + $0x14] sm:$0xf]
  %v155 = vld [vmem:[%s3 + $0x18] sm:$0xf]
  %v156 = vld [vmem:[%s3 + $0x1c] sm:$0xf]
  %v157 = vld [vmem:[%s4] sm:$0x1]
  %v159 = vlaneseq
  %v160 = vshrl.u32 %v159, 7
  %v161 = vsub.s32 0, %v160
  %v162 = vrot.slane %v157, %v161
  %v172 = vunpack.c.l.b16 %v149
  %v173 = vunpack.c.l.b16 %v150
  %v174 = vunpack.c.l.b16 %v151
  %v175 = vunpack.c.l.b16 %v152
  %v176 = vunpack.c.l.b16 %v153
  %v177 = vunpack.c.l.b16 %v154
  %v178 = vunpack.c.l.b16 %v155
  %v179 = vunpack.c.l.b16 %v156
  %v180 = vpack.c.b16 %v173, %v172
  %v181 = vpack.c.b16 %v175, %v174
  %v182 = vpack.c.b16 %v177, %v176
  %v183 = vpack.c.b16 %v179, %v178
  %vm188 = vcmask 523264
  %v190 = vsel %vm188, %v148, 0
  %192 = vmatprep.subr.bf16.mxu0 0
  %193 = vmatpush1.bf16.msra.mxu0 0
  %194 = vmatprep.subr.bf16.mxu0 0
  %195 = vmatpush1.bf16.msra.mxu0 0
  %196 = vmatprep.subr.bf16.mxu0 0
  %197 = vmatpush1.bf16.msra.mxu0 0
  %198 = vmatprep.subr.bf16.mxu0 0
  %199 = vmatpush1.bf16.msra.mxu0 0
  %200 = vmatprep.subr.bf16.mxu0 0
  %201 = vmatpush1.bf16.msra.mxu0 %v183
  %202 = vmatprep.subr.bf16.mxu0 0
  %203 = vmatpush1.bf16.msra.mxu0 %v182
  %204 = vmatprep.subr.bf16.mxu0 0
  %205 = vmatpush1.bf16.msra.mxu0 %v181
  %206 = vmatprep.subr.bf16.mxu0 0
  %207 = vmatpush1.bf16.msra.mxu0 %v180
  %208 = vmatprep.subr.bf16.mxu0 0
  %209 = vmatpush2.bf16.msra.mxu0 0
  %210 = vmatprep.subr.bf16.mxu0 0
  %211 = vmatpush2.bf16.msra.mxu0 0
  %212 = vmatprep.subr.bf16.mxu0 0
  %213 = vmatpush2.bf16.msra.mxu0 0
  %214 = vmatprep.subr.bf16.mxu0 0
  %215 = vmatpush2.bf16.msra.mxu0 0
  %216 = vmatprep.subr.bf16.mxu0 0
  %217 = vmatpush2.bf16.msra.mxu0 0
  %218 = vmatprep.subr.bf16.mxu0 0
  %219 = vmatpush2.bf16.msra.mxu0 0
  %220 = vmatprep.subr.bf16.mxu0 0
  %221 = vmatpush2.bf16.msra.mxu0 0
  %222 = vmatprep.subr.bf16.mxu0 0
  %223 = vmatpush2.bf16.msra.mxu0 0
  %224 = vmatprep.mubr.bf16.mxu0 0
  %225 = vmatmul.mubr.bf16.gmra.mxu0 %v190
  %v226 = vpop.f32.mrf.mxu0
  %v227 = vadd.f32 %v162, %v226
  %v228 = vpop.f32.mrf.mxu0
  %v229 = vpop.f32.mrf.mxu0
  %v230 = vadd.f32 %v162, %v229
  %v231 = vpop.f32.mrf.mxu0
  %232 = vdwg.mxu0
  %v233 = vld [vmem:[%s7] sm:$0xff]
  %v234 = vld [vmem:[%s7 + $0x8] sm:$0xff]
  %v235 = vadd.f32 %v227, %v233
  %v236 = vadd.f32 %v230, %v234
  %237 = vst.msk [vmem:[%s8] sm:$0xff] %vm32, %v235
  %238 = vst.msk [vmem:[%s8 + $0x8] sm:$0xff] %vm32, %v236
  // Predicated region
  $region34: #{transformer_forward.28} parent=0 // pred_check
    _
  $region35: #{transformer_forward.28} parent=0 // pred_check_branch
    %240 = sbr.rel (0) target = $region37
  $region36: #{transformer_forward.28} parent=0 // pred_region
    _
  $region37: #{transformer_forward.28} parent=0 // pred_fallthru
    _
  // Predicated region
  $region38: #{transformer_forward.28} parent=0 // pred_check
    _
  $region39: #{transformer_forward.28} parent=0 // pred_check_branch
    %242 = sbr.rel (0) target = $region41
  $region40: #{transformer_forward.28} parent=0 // pred_region
    _
  $region41: #{transformer_forward.28} parent=0 // pred_fallthru
    _

// kernel: transformer_forward.26
$region0: #{transformer_forward.26}
  #allocation0 [shape = 'u32[]', space=smem, size = 0x4, offset = 0x4, fixed_abs, tag = 'smem constant byte address 0x4 - core index']
  #allocation1 [shape = 'u32[144,128]{1,0:T(1,128)}', space=vmem, size = 0x12000, scoped, tag = 'internal scratch']
  %s0 = inlined_call_operand.vmem [shape: f32[2,8,96], index: 0, kind: input, shape index: {}]
  %s1 = inlined_call_operand.vmem [shape: f32[2,1,8], index: 1, kind: input, shape index: {}]
  %s2 = inlined_call_operand.vmem [shape: f32[2,8,32], index: 2, kind: output, shape index: {}]
  %s3 = sld [smem:[#allocation0]]
  $region41: #{transformer_forward.26} parent=0
    _
  %s5 = ssub.s32 1, %s3
  %s6 = scalar_select 0, %s5, %s3
  loop: start=0, step=1, limit=4
  $region2: #{transformer_forward.26} parent=0 // loop_pre_header
    _
  $region3: #{transformer_forward.26} parent=0 // loop_header
    %s8 = sphi 0, %s12
    %p9 = scmp.ge.s32.totalorder %s8, 4
    %s18 = sphi 0, %s20
    %s21 = sphi 0, %s18
    %s22 = sphi 0, %s21
    %s38 = sphi 0, %s22
    %s44 = sphi 0, %s46
    %s47 = sphi 0, %s44
    %s48 = sphi 0, %s47
    %s64 = sphi 0, %s48
    %s70 = sphi 0, %s72
    %s73 = sphi 0, %s70
    %s74 = sphi 0, %s73
    %s90 = sphi 0, %s74
  $region4: #{transformer_forward.26} parent=0 // loop_header_branch
    %11 = sbr.rel (%p9) target = $region8
  $region5: #{transformer_forward.26} parent=0 // loop_body
    %s13 = ssub.s32 %s8, 1
    %s14 = ssub.s32 %s8, 2
    %s15 = sadd.s32 %s8, 1
    %s16 = ssub.s32 %s8, %s15
    %p17 = scmp.eq.s32.totalorder %s16, 0
    %s19 = sadd.s32 %s18, 1
    %s20 = scalar_select %p17, %s18, %s19
    %p23 = pneg %p17
    %p24 = scmp.eq.s32.totalorder %s8, 1
    %p25 = por %p23, %p24
    %p26 = scmp.ne.s32.totalorder %s18, %s21
    %p27 = scmp.eq.s32.totalorder %s8, 0
    %p28 = por %p26, %p27
    %p29 = scmp.ne.s32.totalorder %s18, %s21
    %p30 = scmp.eq.s32.totalorder %s13, 1
    %p31 = por %p29, %p30
    %p32 = scmp.ne.s32.totalorder %s21, %s22
    %p33 = scmp.eq.s32.totalorder %s13, 0
    %p34 = por %p32, %p33
    %p35 = scmp.ne.s32.totalorder %s21, %s22
    %p36 = scmp.eq.s32.totalorder %s14, 1
    %p37 = por %p35, %p36
    %p39 = scmp.ne.s32.totalorder %s22, %s38
    %p40 = scmp.eq.s32.totalorder %s14, 0
    %p41 = por %p39, %p40
    %s42 = ssub.s32 %s8, %s15
    %p43 = scmp.eq.s32.totalorder %s42, 0
    %s45 = sadd.s32 %s44, 1
    %s46 = scalar_select %p43, %s44, %s45
    %p49 = pneg %p43
    %p50 = scmp.eq.s32.totalorder %s8, 1
    %p51 = por %p49, %p50
    %p52 = scmp.ne.s32.totalorder %s44, %s47
    %p53 = scmp.eq.s32.totalorder %s8, 0
    %p54 = por %p52, %p53
    %p55 = scmp.ne.s32.totalorder %s44, %s47
    %p56 = scmp.eq.s32.totalorder %s13, 1
    %p57 = por %p55, %p56
    %p58 = scmp.ne.s32.totalorder %s47, %s48
    %p59 = scmp.eq.s32.totalorder %s13, 0
    %p60 = por %p58, %p59
    %p61 = scmp.ne.s32.totalorder %s47, %s48
    %p62 = scmp.eq.s32.totalorder %s14, 1
    %p63 = por %p61, %p62
    %p65 = scmp.ne.s32.totalorder %s48, %s64
    %p66 = scmp.eq.s32.totalorder %s14, 0
    %p67 = por %p65, %p66
    %s68 = ssub.s32 %s8, %s15
    %p69 = scmp.eq.s32.totalorder %s68, 0
    %s71 = sadd.s32 %s70, 1
    %s72 = scalar_select %p69, %s70, %s71
    %p75 = pneg %p69
    %p76 = scmp.eq.s32.totalorder %s8, 1
    %p77 = por %p75, %p76
    %p78 = scmp.ne.s32.totalorder %s70, %s73
    %p79 = scmp.eq.s32.totalorder %s8, 0
    %p80 = por %p78, %p79
    %p81 = scmp.ne.s32.totalorder %s70, %s73
    %p82 = scmp.eq.s32.totalorder %s13, 1
    %p83 = por %p81, %p82
    %p84 = scmp.ne.s32.totalorder %s73, %s74
    %p85 = scmp.eq.s32.totalorder %s13, 0
    %p86 = por %p84, %p85
    %p87 = scmp.ne.s32.totalorder %s73, %s74
    %p88 = scmp.eq.s32.totalorder %s14, 1
    %p89 = por %p87, %p88
    %p91 = scmp.ne.s32.totalorder %s74, %s90
    %p92 = scmp.eq.s32.totalorder %s14, 0
    %p93 = por %p91, %p92
    %p94 = scmp.le.s32.totalorder 1, %s8
    %p95 = scmp.lt.s32.totalorder %s8, 3
    %p96 = pnand %p94, %p95
    %p97 = pneg %p96
    // Predicated region
    $region9: #{transformer_forward.26} parent=5 // pred_check
      _
    $region10: #{transformer_forward.26} parent=5 // pred_check_branch
      %99 = sbr.rel (%p96) target = $region12
    $region11: #{transformer_forward.26} parent=5 // pred_region
      %s100 = ssub.s32 %s8, 1
    $region12: #{transformer_forward.26} parent=5 // pred_fallthru
      _
    %p101 = scmp.lt.s32.totalorder %s8, 2
    // Predicated region
    $region13: #{transformer_forward.26} parent=5 // pred_check
      %p102 = pneg %p101
    $region14: #{transformer_forward.26} parent=5 // pred_check_branch
      %104 = sbr.rel (%p102) target = $region16
    $region15: #{transformer_forward.26} parent=5 // pred_region
      // Predicated region
      $region17: #{transformer_forward.26} parent=15 // pred_check
        %p105 = pneg %p28
      $region18: #{transformer_forward.26} parent=15 // pred_check_branch
        %107 = sbr.rel (%p105) target = $region20
      $region19: #{transformer_forward.26} parent=15 // pred_region
        %p108 = scmp.lt.s32.totalorder %s8, 1
        %s109 = scalar_select %p108, %s8, 1
        %s110 = smul.addr %s109, 8
        %s111 = scalar_lea.vmem %s0, %s110
      $region20: #{transformer_forward.26} parent=15 // pred_fallthru
        _
      // Predicated region
      $region21: #{transformer_forward.26} parent=15 // pred_check
        %p112 = pneg %p54
      $region22: #{transformer_forward.26} parent=15 // pred_check_branch
        %114 = sbr.rel (%p112) target = $region24
      $region23: #{transformer_forward.26} parent=15 // pred_region
        %p115 = scmp.lt.s32.totalorder %s8, 1
        %s116 = scalar_select %p115, %s8, 1
        %s117 = scalar_lea.vmem %s1, %s116
      $region24: #{transformer_forward.26} parent=15 // pred_fallthru
        _
    $region16: #{transformer_forward.26} parent=5 // pred_fallthru
      _
    %p118 = scmp.le.s32.totalorder 1, %s8
    %p119 = scmp.lt.s32.totalorder %s8, 3
    %p120 = pnand %p118, %p119
    %p121 = pneg %p120
    // Predicated region
    $region25: #{transformer_forward.26} parent=5 // pred_check
      _
    $region26: #{transformer_forward.26} parent=5 // pred_check_branch
      %123 = sbr.rel (%p120) target = $region28
    $region27: #{transformer_forward.26} parent=5 // pred_region
      %s124 = ssub.s32 %s8, 1
      %p125 = scmp.lt.s32.totalorder %s13, 1
      %s126 = scalar_select %p125, %s13, 1
      %s127 = smul.addr %s126, 8
      %s128 = scalar_lea.vmem %s0, %s127
      %p129 = pneg %p34
      %p130 = pneg %p31
      %p131 = scmp.lt.s32.totalorder %s13, 1
      %s132 = scalar_select %p131, %s13, 1
      %s133 = scalar_lea.vmem %s1, %s132
      %p134 = pneg %p60
      %p135 = pneg %p57
      %p136 = pneg %p86
      %p137 = pneg %p83
      %p138 = scmp.lt.s32.totalorder %s13, 1
      %s139 = scalar_select %p138, %s13, 1
      %s140 = smul.addr %s139, 8
      %s141 = scalar_lea.vmem %s2, %s140
      %p142 = scmp.lt.s32.totalorder %s13, 1
      %s143 = scalar_select %p142, %s13, 1
      %s144 = smul.addr %s143, 8
      %s145 = scalar_lea.vmem %s0, %s144
      %p146 = scmp.lt.s32.totalorder %s13, 1
      %s147 = scalar_select %p146, %s13, 1
      %s148 = scalar_lea.vmem %s1, %s147
      %p149 = scmp.lt.s32.totalorder %s13, 1
      %s150 = scalar_select %p149, %s13, 1
      %s151 = smul.addr %s150, 8
      %s152 = scalar_lea.vmem %s2, %s151
      %v154 = vld [vmem:[%s145] sm:$0xff]
      %v155 = vpack.c.bf16 %v154, %v154
      %v156 = vld [vmem:[%s148] sm:$0x1]
      %158 = vrot.lane.b32.xlu0 %v155, 96
      %v159 = vpop.permute.xlu0 %158
      %vm160 = vcmask 64512
      %v162 = vsel %vm160, %v155, 0
      %v165 = vsel %vm160, %v159, 0
      %167 = vmatprep.subr.bf16.mxu0 0
      %168 = vmatpush1.bf16.xpose.msra.mxu0 0
      %169 = vmatprep.subr.bf16.mxu0 0
      %170 = vmatpush1.bf16.xpose.msra.mxu0 0
      %171 = vmatprep.subr.bf16.mxu0 0
      %172 = vmatpush1.bf16.xpose.msra.mxu0 0
      %173 = vmatprep.subr.bf16.mxu0 0
      %174 = vmatpush1.bf16.xpose.msra.mxu0 0
      %175 = vmatprep.subr.bf16.mxu0 0
      %176 = vmatpush1.bf16.xpose.msra.mxu0 0
      %177 = vmatprep.subr.bf16.mxu0 0
      %178 = vmatpush1.bf16.xpose.msra.mxu0 0
      %179 = vmatprep.subr.bf16.mxu0 0
      %180 = vmatpush1.bf16.xpose.msra.mxu0 0
      %181 = vmatprep.subr.bf16.mxu0 0
      %182 = vmatpush1.bf16.xpose.msra.mxu0 %v165
      %183 = vmatprep.subr.bf16.mxu0 0
      %184 = vmatpush2.bf16.xpose.msra.mxu0 0
      %185 = vmatprep.subr.bf16.mxu0 0
      %186 = vmatpush2.bf16.xpose.msra.mxu0 0
      %187 = vmatprep.subr.bf16.mxu0 0
      %188 = vmatpush2.bf16.xpose.msra.mxu0 0
      %189 = vmatprep.subr.bf16.mxu0 0
      %190 = vmatpush2.bf16.xpose.msra.mxu0 0
      %191 = vmatprep.subr.bf16.mxu0 0
      %192 = vmatpush2.bf16.xpose.msra.mxu0 0
      %193 = vmatprep.subr.bf16.mxu0 0
      %194 = vmatpush2.bf16.xpose.msra.mxu0 0
      %195 = vmatprep.subr.bf16.mxu0 0
      %196 = vmatpush2.bf16.xpose.msra.mxu0 0
      %197 = vmatprep.subr.bf16.mxu0 0
      %198 = vmatpush2.bf16.xpose.msra.mxu0 0
      %199 = vmatprep.mubr.bf16.mxu0 0
      %200 = vmatmul.mubr.bf16.gmra.mxu0 %v162
      %v201 = vpop.f32.mrf.mxu0
      %v202 = vadd.f32 0.0, %v201
      %v203 = vpop.f32.mrf.mxu0
      %v204 = vpop.f32.mrf.mxu0
      %v205 = vpop.f32.mrf.mxu0
      %206 = vdwg.mxu0
      %vm207 = vcmp.gt.f32.partialorder %v156, 0.0
      %v208 = vsel %vm207, 1, 0
      %v209 = vlaneseq
      %v210 = vshrl.u32 %v209, 7
      %v211 = vsub.s32 0, %v210
      %v212 = vrot.slane %v208, %v211
      %vm213 = vcmp.eq.s32.totalorder %v212, 1
      %v214 = vsel %vm213, %v202, -1e+09
      %v215 = vsel %vm160, %v214, -inf
      %216 = vmax.xlane.f32.xlu0 %v215
      %v217 = vpop.xlane.xlu0 %216
      %v218 = vsub.f32 %v214, %v217
      %v219 = vmul.f32 %v218, 1.442695
      %v220 = vpow.pop %v219
      %v221 = vsel %vm160, %v220, 0.0
      %222 = vadd.xlane.f32.xlu0 %v221
      %v223 = vpop.xlane.xlu0 %222
      %v224 = vrcp.pop %v223
      %v225 = vmul.f32 1.0, %v224
      %v226 = vmul.f32 %v220, %v225
      %v227 = vpack.c.bf16 %v226, %v226
      %228 = vrot.lane.b32.xlu0 %v155, 64
      %v229 = vpop.permute.xlu0 %228
      %v231 = vsel %vm160, %v227, 0
      %vm233 = vcmask 1043456
      %v235 = vsel %vm233, %v229, 0
      %237 = vmatprep.subr.bf16.mxu0 0
      %238 = vmatpush1.bf16.msra.mxu0 0
      %239 = vmatprep.subr.bf16.mxu0 0
      %240 = vmatpush1.bf16.msra.mxu0 0
      %241 = vmatprep.subr.bf16.mxu0 0
      %242 = vmatpush1.bf16.msra.mxu0 0
      %243 = vmatprep.subr.bf16.mxu0 0
      %244 = vmatpush1.bf16.msra.mxu0 0
      %245 = vmatprep.subr.bf16.mxu0 0
      %246 = vmatpush1.bf16.msra.mxu0 0
      %247 = vmatprep.subr.bf16.mxu0 0
      %248 = vmatpush1.bf16.msra.mxu0 0
      %249 = vmatprep.subr.bf16.mxu0 0
      %250 = vmatpush1.bf16.msra.mxu0 0
      %251 = vmatprep.subr.bf16.mxu0 0
      %252 = vmatpush1.bf16.msra.mxu0 %v235
      %253 = vmatprep.subr.bf16.mxu0 0
      %254 = vmatpush2.bf16.msra.mxu0 0
      %255 = vmatprep.subr.bf16.mxu0 0
      %256 = vmatpush2.bf16.msra.mxu0 0
      %257 = vmatprep.subr.bf16.mxu0 0
      %258 = vmatpush2.bf16.msra.mxu0 0
      %259 = vmatprep.subr.bf16.mxu0 0
      %260 = vmatpush2.bf16.msra.mxu0 0
      %261 = vmatprep.subr.bf16.mxu0 0
      %262 = vmatpush2.bf16.msra.mxu0 0
      %263 = vmatprep.subr.bf16.mxu0 0
      %264 = vmatpush2.bf16.msra.mxu0 0
      %265 = vmatprep.subr.bf16.mxu0 0
      %266 = vmatpush2.bf16.msra.mxu0 0
      %267 = vmatprep.subr.bf16.mxu0 0
      %268 = vmatpush2.bf16.msra.mxu0 0
      %269 = vmatprep.mubr.bf16.mxu0 0
      %270 = vmatmul.mubr.bf16.gmra.mxu0 %v231
      %v271 = vpop.f32.mrf.mxu0
      %v272 = vadd.f32 0.0, %v271
      %v273 = vpop.f32.mrf.mxu0
      %v274 = vpop.f32.mrf.mxu0
      %v275 = vpop.f32.mrf.mxu0
      %276 = vdwg.mxu0
      %277 = vrot.lane.b32.xlu0 %v155, 120
      %v278 = vpop.permute.xlu0 %277
      %279 = vrot.lane.b32.xlu0 %v155, 88
      %v280 = vpop.permute.xlu0 %279
      %v282 = vsel %vm160, %v278, 0
      %v285 = vsel %vm160, %v280, 0
      %287 = vmatprep.subr.bf16.mxu0 0
      %288 = vmatpush1.bf16.xpose.msra.mxu0 0
      %289 = vmatprep.subr.bf16.mxu0 0
      %290 = vmatpush1.bf16.xpose.msra.mxu0 0
      %291 = vmatprep.subr.bf16.mxu0 0
      %292 = vmatpush1.bf16.xpose.msra.mxu0 0
      %293 = vmatprep.subr.bf16.mxu0 0
      %294 = vmatpush1.bf16.xpose.msra.mxu0 0
      %295 = vmatprep.subr.bf16.mxu0 0
      %296 = vmatpush1.bf16.xpose.msra.mxu0 0
      %297 = vmatprep.subr.bf16.mxu0 0
      %298 = vmatpush1.bf16.xpose.msra.mxu0 0
      %299 = vmatprep.subr.bf16.mxu0 0
      %300 = vmatpush1.bf16.xpose.msra.mxu0 0
      %301 = vmatprep.subr.bf16.mxu0 0
      %302 = vmatpush1.bf16.xpose.msra.mxu0 %v285
      %303 = vmatprep.subr.bf16.mxu0 0
      %304 = vmatpush2.bf16.xpose.msra.mxu0 0
      %305 = vmatprep.subr.bf16.mxu0 0
      %306 = vmatpush2.bf16.xpose.msra.mxu0 0
      %307 = vmatprep.subr.bf16.mxu0 0
      %308 = vmatpush2.bf16.xpose.msra.mxu0 0
      %309 = vmatprep.subr.bf16.mxu0 0
      %310 = vmatpush2.bf16.xpose.msra.mxu0 0
      %311 = vmatprep.subr.bf16.mxu0 0
      %312 = vmatpush2.bf16.xpose.msra.mxu0 0
      %313 = vmatprep.subr.bf16.mxu0 0
      %314 = vmatpush2.bf16.xpose.msra.mxu0 0
      %315 = vmatprep.subr.bf16.mxu0 0
      %316 = vmatpush2.bf16.xpose.msra.mxu0 0
      %317 = vmatprep.subr.bf16.mxu0 0
      %318 = vmatpush2.bf16.xpose.msra.mxu0 0
      %319 = vmatprep.mubr.bf16.mxu0 0
      %320 = vmatmul.mubr.bf16.gmra.mxu0 %v282
      %v321 = vpop.f32.mrf.mxu0
      %v322 = vadd.f32 0.0, %v321
      %v323 = vpop.f32.mrf.mxu0
      %v324 = vpop.f32.mrf.mxu0
      %v325 = vpop.f32.mrf.mxu0
      %326 = vdwg.mxu0
      %v327 = vsel %vm213, %v322, -1e+09
      %v328 = vsel %vm160, %v327, -inf
      %329 = vmax.xlane.f32.xlu0 %v328
      %v330 = vpop.xlane.xlu0 %329
      %v331 = vsub.f32 %v327, %v330
      %v332 = vmul.f32 %v331, 1.442695
      %v333 = vpow.pop %v332
      %v334 = vsel %vm160, %v333, 0.0
      %335 = vadd.xlane.f32.xlu0 %v334
      %v336 = vpop.xlane.xlu0 %335
      %v337 = vrcp.pop %v336
      %v338 = vmul.f32 1.0, %v337
      %v339 = vmul.f32 %v333, %v338
      %v340 = vpack.c.bf16 %v339, %v339
      %341 = vrot.lane.b32.xlu0 %v155, 56
      %v342 = vpop.permute.xlu0 %341
      %v344 = vsel %vm160, %v340, 0
      %v347 = vsel %vm233, %v342, 0
      %349 = vmatprep.subr.bf16.mxu0 0
      %350 = vmatpush1.bf16.msra.mxu0 0
      %351 = vmatprep.subr.bf16.mxu0 0
      %352 = vmatpush1.bf16.msra.mxu0 0
      %353 = vmatprep.subr.bf16.mxu0 0
      %354 = vmatpush1.bf16.msra.mxu0 0
      %355 = vmatprep.subr.bf16.mxu0 0
      %356 = vmatpush1.bf16.msra.mxu0 0
      %357 = vmatprep.subr.bf16.mxu0 0
      %358 = vmatpush1.bf16.msra.mxu0 0
      %359 = vmatprep.subr.bf16.mxu0 0
      %360 = vmatpush1.bf16.msra.mxu0 0
      %361 = vmatprep.subr.bf16.mxu0 0
      %362 = vmatpush1.bf16.msra.mxu0 0
      %363 = vmatprep.subr.bf16.mxu0 0
      %364 = vmatpush1.bf16.msra.mxu0 %v347
      %365 = vmatprep.subr.bf16.mxu0 0
      %366 = vmatpush2.bf16.msra.mxu0 0
      %367 = vmatprep.subr.bf16.mxu0 0
      %368 = vmatpush2.bf16.msra.mxu0 0
      %369 = vmatprep.subr.bf16.mxu0 0
      %370 = vmatpush2.bf16.msra.mxu0 0
      %371 = vmatprep.subr.bf16.mxu0 0
      %372 = vmatpush2.bf16.msra.mxu0 0
      %373 = vmatprep.subr.bf16.mxu0 0
      %374 = vmatpush2.bf16.msra.mxu0 0
      %375 = vmatprep.subr.bf16.mxu0 0
      %376 = vmatpush2.bf16.msra.mxu0 0
      %377 = vmatprep.subr.bf16.mxu0 0
      %378 = vmatpush2.bf16.msra.mxu0 0
      %379 = vmatprep.subr.bf16.mxu0 0
      %380 = vmatpush2.bf16.msra.mxu0 0
      %381 = vmatprep.mubr.bf16.mxu0 0
      %382 = vmatmul.mubr.bf16.gmra.mxu0 %v344
      %v383 = vpop.f32.mrf.mxu0
      %v384 = vadd.f32 0.0, %v383
      %v385 = vpop.f32.mrf.mxu0
      %v386 = vpop.f32.mrf.mxu0
      %v387 = vpop.f32.mrf.mxu0
      %388 = vdwg.mxu0
      %389 = vrot.lane.b32.xlu0 %v155, 112
      %v390 = vpop.permute.xlu0 %389
      %391 = vrot.lane.b32.xlu0 %v155, 80
      %v392 = vpop.permute.xlu0 %391
      %v394 = vsel %vm160, %v390, 0
      %v397 = vsel %vm160, %v392, 0
      %399 = vmatprep.subr.bf16.mxu0 0
      %400 = vmatpush1.bf16.xpose.msra.mxu0 0
      %401 = vmatprep.subr.bf16.mxu0 0
      %402 = vmatpush1.bf16.xpose.msra.mxu0 0
      %403 = vmatprep.subr.bf16.mxu0 0
      %404 = vmatpush1.bf16.xpose.msra.mxu0 0
      %405 = vmatprep.subr.bf16.mxu0 0
      %406 = vmatpush1.bf16.xpose.msra.mxu0 0
      %407 = vmatprep.subr.bf16.mxu0 0
      %408 = vmatpush1.bf16.xpose.msra.mxu0 0
      %409 = vmatprep.subr.bf16.mxu0 0
      %410 = vmatpush1.bf16.xpose.msra.mxu0 0
      %411 = vmatprep.subr.bf16.mxu0 0
      %412 = vmatpush1.bf16.xpose.msra.mxu0 0
      %413 = vmatprep.subr.bf16.mxu0 0
      %414 = vmatpush1.bf16.xpose.msra.mxu0 %v397
      %415 = vmatprep.subr.bf16.mxu0 0
      %416 = vmatpush2.bf16.xpose.msra.mxu0 0
      %417 = vmatprep.subr.bf16.mxu0 0
      %418 = vmatpush2.bf16.xpose.msra.mxu0 0
      %419 = vmatprep.subr.bf16.mxu0 0
      %420 = vmatpush2.bf16.xpose.msra.mxu0 0
      %421 = vmatprep.subr.bf16.mxu0 0
      %422 = vmatpush2.bf16.xpose.msra.mxu0 0
      %423 = vmatprep.subr.bf16.mxu0 0
      %424 = vmatpush2.bf16.xpose.msra.mxu0 0
      %425 = vmatprep.subr.bf16.mxu0 0
      %426 = vmatpush2.bf16.xpose.msra.mxu0 0
      %427 = vmatprep.subr.bf16.mxu0 0
      %428 = vmatpush2.bf16.xpose.msra.mxu0 0
      %429 = vmatprep.subr.bf16.mxu0 0
      %430 = vmatpush2.bf16.xpose.msra.mxu0 0
      %431 = vmatprep.mubr.bf16.mxu0 0
      %432 = vmatmul.mubr.bf16.gmra.mxu0 %v394
      %v433 = vpop.f32.mrf.mxu0
      %v434 = vadd.f32 0.0, %v433
      %v435 = vpop.f32.mrf.mxu0
      %v436 = vpop.f32.mrf.mxu0
      %v437 = vpop.f32.mrf.mxu0
      %438 = vdwg.mxu0
      %v439 = vsel %vm213, %v434, -1e+09
      %v440 = vsel %vm160, %v439, -inf
      %441 = vmax.xlane.f32.xlu0 %v440
      %v442 = vpop.xlane.xlu0 %441
      %v443 = vsub.f32 %v439, %v442
      %v444 = vmul.f32 %v443, 1.442695
      %v445 = vpow.pop %v444
      %v446 = vsel %vm160, %v445, 0.0
      %447 = vadd.xlane.f32.xlu0 %v446
      %v448 = vpop.xlane.xlu0 %447
      %v449 = vrcp.pop %v448
      %v450 = vmul.f32 1.0, %v449
      %v451 = vmul.f32 %v445, %v450
      %v452 = vpack.c.bf16 %v451, %v451
      %453 = vrot.lane.b32.xlu0 %v155, 48
      %v454 = vpop.permute.xlu0 %453
      %v456 = vsel %vm160, %v452, 0
      %v459 = vsel %vm233, %v454, 0
      %461 = vmatprep.subr.bf16.mxu0 0
      %462 = vmatpush1.bf16.msra.mxu0 0
      %463 = vmatprep.subr.bf16.mxu0 0
      %464 = vmatpush1.bf16.msra.mxu0 0
      %465 = vmatprep.subr.bf16.mxu0 0
      %466 = vmatpush1.bf16.msra.mxu0 0
      %467 = vmatprep.subr.bf16.mxu0 0
      %468 = vmatpush1.bf16.msra.mxu0 0
      %469 = vmatprep.subr.bf16.mxu0 0
      %470 = vmatpush1.bf16.msra.mxu0 0
      %471 = vmatprep.subr.bf16.mxu0 0
      %472 = vmatpush1.bf16.msra.mxu0 0
      %473 = vmatprep.subr.bf16.mxu0 0
      %474 = vmatpush1.bf16.msra.mxu0 0
      %475 = vmatprep.subr.bf16.mxu0 0
      %476 = vmatpush1.bf16.msra.mxu0 %v459
      %477 = vmatprep.subr.bf16.mxu0 0
      %478 = vmatpush2.bf16.msra.mxu0 0
      %479 = vmatprep.subr.bf16.mxu0 0
      %480 = vmatpush2.bf16.msra.mxu0 0
      %481 = vmatprep.subr.bf16.mxu0 0
      %482 = vmatpush2.bf16.msra.mxu0 0
      %483 = vmatprep.subr.bf16.mxu0 0
      %484 = vmatpush2.bf16.msra.mxu0 0
      %485 = vmatprep.subr.bf16.mxu0 0
      %486 = vmatpush2.bf16.msra.mxu0 0
      %487 = vmatprep.subr.bf16.mxu0 0
      %488 = vmatpush2.bf16.msra.mxu0 0
      %489 = vmatprep.subr.bf16.mxu0 0
      %490 = vmatpush2.bf16.msra.mxu0 0
      %491 = vmatprep.subr.bf16.mxu0 0
      %492 = vmatpush2.bf16.msra.mxu0 0
      %493 = vmatprep.mubr.bf16.mxu0 0
      %494 = vmatmul.mubr.bf16.gmra.mxu0 %v456
      %v495 = vpop.f32.mrf.mxu0
      %v496 = vadd.f32 0.0, %v495
      %v497 = vpop.f32.mrf.mxu0
      %v498 = vpop.f32.mrf.mxu0
      %v499 = vpop.f32.mrf.mxu0
      %500 = vdwg.mxu0
      %501 = vrot.lane.b32.xlu0 %v155, 104
      %v502 = vpop.permute.xlu0 %501
      %503 = vrot.lane.b32.xlu0 %v155, 72
      %v504 = vpop.permute.xlu0 %503
      %v506 = vsel %vm160, %v502, 0
      %v509 = vsel %vm160, %v504, 0
      %511 = vmatprep.subr.bf16.mxu0 0
      %512 = vmatpush1.bf16.xpose.msra.mxu0 0
      %513 = vmatprep.subr.bf16.mxu0 0
      %514 = vmatpush1.bf16.xpose.msra.mxu0 0
      %515 = vmatprep.subr.bf16.mxu0 0
      %516 = vmatpush1.bf16.xpose.msra.mxu0 0
      %517 = vmatprep.subr.bf16.mxu0 0
      %518 = vmatpush1.bf16.xpose.msra.mxu0 0
      %519 = vmatprep.subr.bf16.mxu0 0
      %520 = vmatpush1.bf16.xpose.msra.mxu0 0
      %521 = vmatprep.subr.bf16.mxu0 0
      %522 = vmatpush1.bf16.xpose.msra.mxu0 0
      %523 = vmatprep.subr.bf16.mxu0 0
      %524 = vmatpush1.bf16.xpose.msra.mxu0 0
      %525 = vmatprep.subr.bf16.mxu0 0
      %526 = vmatpush1.bf16.xpose.msra.mxu0 %v509
      %527 = vmatprep.subr.bf16.mxu0 0
      %528 = vmatpush2.bf16.xpose.msra.mxu0 0
      %529 = vmatprep.subr.bf16.mxu0 0
      %530 = vmatpush2.bf16.xpose.msra.mxu0 0
      %531 = vmatprep.subr.bf16.mxu0 0
      %532 = vmatpush2.bf16.xpose.msra.mxu0 0
      %533 = vmatprep.subr.bf16.mxu0 0
      %534 = vmatpush2.bf16.xpose.msra.mxu0 0
      %535 = vmatprep.subr.bf16.mxu0 0
      %536 = vmatpush2.bf16.xpose.msra.mxu0 0
      %537 = vmatprep.subr.bf16.mxu0 0
      %538 = vmatpush2.bf16.xpose.msra.mxu0 0
      %539 = vmatprep.subr.bf16.mxu0 0
      %540 = vmatpush2.bf16.xpose.msra.mxu0 0
      %541 = vmatprep.subr.bf16.mxu0 0
      %542 = vmatpush2.bf16.xpose.msra.mxu0 0
      %543 = vmatprep.mubr.bf16.mxu0 0
      %544 = vmatmul.mubr.bf16.gmra.mxu0 %v506
      %v545 = vpop.f32.mrf.mxu0
      %v546 = vadd.f32 0.0, %v545
      %v547 = vpop.f32.mrf.mxu0
      %v548 = vpop.f32.mrf.mxu0
      %v549 = vpop.f32.mrf.mxu0
      %550 = vdwg.mxu0
      %v551 = vsel %vm213, %v546, -1e+09
      %v552 = vsel %vm160, %v551, -inf
      %553 = vmax.xlane.f32.xlu0 %v552
      %v554 = vpop.xlane.xlu0 %553
      %v555 = vsub.f32 %v551, %v554
      %v556 = vmul.f32 %v555, 1.442695
      %v557 = vpow.pop %v556
      %v558 = vsel %vm160, %v557, 0.0
      %559 = vadd.xlane.f32.xlu0 %v558
      %v560 = vpop.xlane.xlu0 %559
      %v561 = vrcp.pop %v560
      %v562 = vmul.f32 1.0, %v561
      %v563 = vmul.f32 %v557, %v562
      %v564 = vpack.c.bf16 %v563, %v563
      %565 = vrot.lane.b32.xlu0 %v155, 40
      %v566 = vpop.permute.xlu0 %565
      %v568 = vsel %vm160, %v564, 0
      %v571 = vsel %vm233, %v566, 0
      %573 = vmatprep.subr.bf16.mxu0 0
      %574 = vmatpush1.bf16.msra.mxu0 0
      %575 = vmatprep.subr.bf16.mxu0 0
      %576 = vmatpush1.bf16.msra.mxu0 0
      %577 = vmatprep.subr.bf16.mxu0 0
      %578 = vmatpush1.bf16.msra.mxu0 0
      %579 = vmatprep.subr.bf16.mxu0 0
      %580 = vmatpush1.bf16.msra.mxu0 0
      %581 = vmatprep.subr.bf16.mxu0 0
      %582 = vmatpush1.bf16.msra.mxu0 0
      %583 = vmatprep.subr.bf16.mxu0 0
      %584 = vmatpush1.bf16.msra.mxu0 0
      %585 = vmatprep.subr.bf16.mxu0 0
      %586 = vmatpush1.bf16.msra.mxu0 0
      %587 = vmatprep.subr.bf16.mxu0 0
      %588 = vmatpush1.bf16.msra.mxu0 %v571
      %589 = vmatprep.subr.bf16.mxu0 0
      %590 = vmatpush2.bf16.msra.mxu0 0
      %591 = vmatprep.subr.bf16.mxu0 0
      %592 = vmatpush2.bf16.msra.mxu0 0
      %593 = vmatprep.subr.bf16.mxu0 0
      %594 = vmatpush2.bf16.msra.mxu0 0
      %595 = vmatprep.subr.bf16.mxu0 0
      %596 = vmatpush2.bf16.msra.mxu0 0
      %597 = vmatprep.subr.bf16.mxu0 0
      %598 = vmatpush2.bf16.msra.mxu0 0
      %599 = vmatprep.subr.bf16.mxu0 0
      %600 = vmatpush2.bf16.msra.mxu0 0
      %601 = vmatprep.subr.bf16.mxu0 0
      %602 = vmatpush2.bf16.msra.mxu0 0
      %603 = vmatprep.subr.bf16.mxu0 0
      %604 = vmatpush2.bf16.msra.mxu0 0
      %605 = vmatprep.mubr.bf16.mxu0 0
      %606 = vmatmul.mubr.bf16.gmra.mxu0 %v568
      %v607 = vpop.f32.mrf.mxu0
      %v608 = vadd.f32 0.0, %v607
      %v609 = vpop.f32.mrf.mxu0
      %v610 = vpop.f32.mrf.mxu0
      %v611 = vpop.f32.mrf.mxu0
      %612 = vdwg.mxu0
      %614 = vrot.lane.b32.xlu0 %v384, 8
      %v615 = vpop.permute.xlu0 %614
      %618 = vrot.lane.b32.xlu0 %v496, 16
      %v619 = vpop.permute.xlu0 %618
      %622 = vrot.lane.b32.xlu0 %v608, 24
      %v623 = vpop.permute.xlu0 %622
      %v625 = vsel %vm160, %v272, %v615
      %vm626 = vcmask 130048
      %v627 = vsel %vm626, %v625, %v619
      %vm628 = vcmask 195584
      %v629 = vsel %vm628, %v627, %v623
      %vm630 = vcmask 261120
      %631 = vst.msk [vmem:[%s152] sm:$0xff] %vm630, %v629
      %p632 = scmp.lt.s32.totalorder %s13, 1
      %s633 = scalar_select %p632, %s13, 1
      %s634 = smul.addr %s633, 8
      %s635 = scalar_lea.vmem %s2, %s634
      // Predicated region
      $region29: #{transformer_forward.26} parent=27 // pred_check
        %p636 = pneg %p83
      $region30: #{transformer_forward.26} parent=27 // pred_check_branch
        %638 = sbr.rel (%p636) target = $region32
      $region31: #{transformer_forward.26} parent=27 // pred_region
        _
      $region32: #{transformer_forward.26} parent=27 // pred_fallthru
        _
    $region28: #{transformer_forward.26} parent=5 // pred_fallthru
      _
    %p639 = scmp.le.s32.totalorder 2, %s8
    // Predicated region
    $region33: #{transformer_forward.26} parent=5 // pred_check
      %p640 = pneg %p639
    $region34: #{transformer_forward.26} parent=5 // pred_check_branch
      %642 = sbr.rel (%p640) target = $region36
    $region35: #{transformer_forward.26} parent=5 // pred_region
      %s643 = ssub.s32 %s8, 2
      // Predicated region
      $region37: #{transformer_forward.26} parent=35 // pred_check
        %p644 = pneg %p89
      $region38: #{transformer_forward.26} parent=35 // pred_check_branch
        %646 = sbr.rel (%p644) target = $region40
      $region39: #{transformer_forward.26} parent=35 // pred_region
        %p647 = scmp.lt.s32.totalorder %s14, 1
        %s648 = scalar_select %p647, %s14, 1
        %s649 = smul.addr %s648, 8
        %s650 = scalar_lea.vmem %s2, %s649
      $region40: #{transformer_forward.26} parent=35 // pred_fallthru
        _
    $region36: #{transformer_forward.26} parent=5 // pred_fallthru
      _
  $region6: #{transformer_forward.26} parent=0 // loop_footer
    %s12 = sadd.s32 1, %s8
  $region7: #{transformer_forward.26} parent=0 // loop_footer_branch
    %7 = sbr.rel target = $region3
  $region8: #{transformer_forward.26} parent=0 // loop_exit
    _

// kernel: transformer_forward.37
$region0: #{transformer_forward.37}
  #allocation0 [shape = 'u32[]', space=smem, size = 0x4, offset = 0x4, fixed_abs, tag = 'smem constant byte address 0x4 - core index']
  #allocation1 [shape = 'u32[144,128]{1,0:T(1,128)}', space=vmem, size = 0x12000, scoped, tag = 'internal scratch']
  %s0 = inlined_call_operand.vmem [shape: f32[16,32], index: 0, kind: input, shape index: {}]
  %s1 = inlined_call_operand.vmem [shape: bf16[32,64], index: 1, kind: input, shape index: {}]
  %s2 = inlined_call_operand.vmem [shape: f32[1,64], index: 2, kind: input, shape index: {}]
  %s3 = inlined_call_operand.vmem [shape: f32[1,32], index: 3, kind: input, shape index: {}]
  %s4 = inlined_call_operand.vmem [shape: f32[1,32], index: 4, kind: input, shape index: {}]
  %s5 = inlined_call_operand.vmem [shape: f32[16,64], index: 5, kind: output, shape index: {}]
  %s6 = sld [smem:[#allocation0]]
  $region30: #{transformer_forward.37} parent=0
    _
  %s8 = ssub.s32 1, %s6
  %s9 = scalar_select 0, %s8, %s6
  // Predicated region
  $region2: #{transformer_forward.37} parent=0 // pred_check
    _
  $region3: #{transformer_forward.37} parent=0 // pred_check_branch
    %11 = sbr.rel (0) target = $region5
  $region4: #{transformer_forward.37} parent=0 // pred_region
    _
  $region5: #{transformer_forward.37} parent=0 // pred_fallthru
    _
  // Predicated region
  $region6: #{transformer_forward.37} parent=0 // pred_check
    _
  $region7: #{transformer_forward.37} parent=0 // pred_check_branch
    %13 = sbr.rel (0) target = $region9
  $region8: #{transformer_forward.37} parent=0 // pred_region
    _
  $region9: #{transformer_forward.37} parent=0 // pred_fallthru
    _
  // Predicated region
  $region10: #{transformer_forward.37} parent=0 // pred_check
    _
  $region11: #{transformer_forward.37} parent=0 // pred_check_branch
    %15 = sbr.rel (0) target = $region13
  $region12: #{transformer_forward.37} parent=0 // pred_region
    _
  $region13: #{transformer_forward.37} parent=0 // pred_fallthru
    _
  // Predicated region
  $region14: #{transformer_forward.37} parent=0 // pred_check
    _
  $region15: #{transformer_forward.37} parent=0 // pred_check_branch
    %17 = sbr.rel (0) target = $region17
  $region16: #{transformer_forward.37} parent=0 // pred_region
    _
  $region17: #{transformer_forward.37} parent=0 // pred_fallthru
    _
  // Predicated region
  $region18: #{transformer_forward.37} parent=0 // pred_check
    _
  $region19: #{transformer_forward.37} parent=0 // pred_check_branch
    %19 = sbr.rel (0) target = $region21
  $region20: #{transformer_forward.37} parent=0 // pred_region
    _
  $region21: #{transformer_forward.37} parent=0 // pred_fallthru
    _
  %v21 = vld [vmem:[%s0] sm:$0xff]
  %v22 = vld [vmem:[%s0 + $0x8] sm:$0xff]
  %vm23 = vcmask 261120
  %v24 = vsel %vm23, %v21, 0.0
  %25 = vadd.xlane.f32.xlu0 %v24
  %v26 = vpop.xlane.xlu0 %25
  %v27 = vsel %vm23, %v22, 0.0
  %28 = vadd.xlane.f32.xlu0 %v27
  %v29 = vpop.xlane.xlu0 %28
  %v30 = vrcp.pop 32.0
  %v31 = vmul.f32 %v26, %v30
  %v32 = vmul.f32 %v29, %v30
  %v33 = vsub.f32 %v21, %v31
  %v34 = vsub.f32 %v22, %v32
  %v35 = vmul.f32 %v33, %v33
  %v36 = vmul.f32 %v34, %v34
  %v37 = vsel %vm23, %v35, 0.0
  %38 = vadd.xlane.f32.xlu0 %v37
  %v39 = vpop.xlane.xlu0 %38
  %v40 = vsel %vm23, %v36, 0.0
  %41 = vadd.xlane.f32.xlu0 %v40
  %v42 = vpop.xlane.xlu0 %41
  %v43 = vmul.f32 %v39, %v30
  %v44 = vmul.f32 %v42, %v30
  %v45 = vadd.f32 %v43, 1e-05
  %v46 = vadd.f32 %v44, 1e-05
  %v47 = vrsqrt.pop %v45
  %v48 = vrsqrt.pop %v46
  %v49 = vmul.f32 %v33, %v47
  %v50 = vmul.f32 %v34, %v48
  %v51 = vld [vmem:[%s3] sm:$0x1]
  %v53 = vlaneseq
  %v54 = vshrl.u32 %v53, 7
  %v55 = vsub.s32 0, %v54
  %v56 = vrot.slane %v51, %v55
  %v58 = vmul.f32 %v49, %v56
  %v59 = vmul.f32 %v50, %v56
  %v60 = vld [vmem:[%s4] sm:$0x1]
  %v62 = vlaneseq
  %v63 = vshrl.u32 %v62, 7
  %v64 = vsub.s32 0, %v63
  %v65 = vrot.slane %v60, %v64
  %v67 = vadd.f32 %v58, %v65
  %v68 = vadd.f32 %v59, %v65
  %v69 = vpack.c.bf16 %v68, %v67
  %v70 = vld [vmem:[%s1] sm:$0xf]
  %v71 = vld [vmem:[%s1 + $0x4] sm:$0xf]
  %v72 = vld [vmem:[%s1 + $0x8] sm:$0xf]
  %v73 = vld [vmem:[%s1 + $0xc] sm:$0xf]
  %v74 = vld [vmem:[%s2] sm:$0x1]
  %v76 = vlaneseq
  %v77 = vshrl.u32 %v76, 7
  %v78 = vsub.s32 0, %v77
  %v79 = vrot.slane %v74, %v78
  %v85 = vunpack.c.l.b16 %v70
  %v86 = vunpack.c.l.b16 %v71
  %v87 = vunpack.c.l.b16 %v72
  %v88 = vunpack.c.l.b16 %v73
  %v89 = vpack.c.b16 %v86, %v85
  %v90 = vpack.c.b16 %v88, %v87
  %v94 = vsel %vm23, %v69, 0
  %96 = vmatprep.subr.bf16.mxu0 0
  %97 = vmatpush1.bf16.msra.mxu0 0
  %98 = vmatprep.subr.bf16.mxu0 0
  %99 = vmatpush1.bf16.msra.mxu0 0
  %100 = vmatprep.subr.bf16.mxu0 0
  %101 = vmatpush1.bf16.msra.mxu0 0
  %102 = vmatprep.subr.bf16.mxu0 0
  %103 = vmatpush1.bf16.msra.mxu0 0
  %104 = vmatprep.subr.bf16.mxu0 0
  %105 = vmatpush1.bf16.msra.mxu0 0
  %106 = vmatprep.subr.bf16.mxu0 0
  %107 = vmatpush1.bf16.msra.mxu0 0
  %108 = vmatprep.subr.bf16.mxu0 0
  %109 = vmatpush1.bf16.msra.mxu0 %v90
  %110 = vmatprep.subr.bf16.mxu0 0
  %111 = vmatpush1.bf16.msra.mxu0 %v89
  %112 = vmatprep.subr.bf16.mxu0 0
  %113 = vmatpush2.bf16.msra.mxu0 0
  %114 = vmatprep.subr.bf16.mxu0 0
  %115 = vmatpush2.bf16.msra.mxu0 0
  %116 = vmatprep.subr.bf16.mxu0 0
  %117 = vmatpush2.bf16.msra.mxu0 0
  %118 = vmatprep.subr.bf16.mxu0 0
  %119 = vmatpush2.bf16.msra.mxu0 0
  %120 = vmatprep.subr.bf16.mxu0 0
  %121 = vmatpush2.bf16.msra.mxu0 0
  %122 = vmatprep.subr.bf16.mxu0 0
  %123 = vmatpush2.bf16.msra.mxu0 0
  %124 = vmatprep.subr.bf16.mxu0 0
  %125 = vmatpush2.bf16.msra.mxu0 0
  %126 = vmatprep.subr.bf16.mxu0 0
  %127 = vmatpush2.bf16.msra.mxu0 0
  %128 = vmatprep.mubr.bf16.mxu0 0
  %129 = vmatmul.mubr.bf16.gmra.mxu0 %v94
  %v130 = vpop.f32.mrf.mxu0
  %v131 = vadd.f32 %v79, %v130
  %v132 = vpop.f32.mrf.mxu0
  %v133 = vpop.f32.mrf.mxu0
  %v134 = vadd.f32 %v79, %v133
  %v135 = vpop.f32.mrf.mxu0
  %136 = vdwg.mxu0
  %vm137 = vcmask 523264
  %138 = vst.msk [vmem:[%s5] sm:$0xff] %vm137, %v131
  %139 = vst.msk [vmem:[%s5 + $0x8] sm:$0xff] %vm137, %v134
  // Predicated region
  $region22: #{transformer_forward.37} parent=0 // pred_check
    _
  $region23: #{transformer_forward.37} parent=0 // pred_check_branch
    %141 = sbr.rel (0) target = $region25
  $region24: #{transformer_forward.37} parent=0 // pred_region
    _
  $region25: #{transformer_forward.37} parent=0 // pred_fallthru
    _
  // Predicated region
  $region26: #{transformer_forward.37} parent=0 // pred_check
    _
  $region27: #{transformer_forward.37} parent=0 // pred_check_branch
    %143 = sbr.rel (0) target = $region29
  $region28: #{transformer_forward.37} parent=0 // pred_region
    _
  $region29: #{transformer_forward.37} parent=0 // pred_fallthru
    _

// kernel: transformer_forward.36
$region0: #{transformer_forward.36}
  #allocation0 [shape = 'u32[]', space=smem, size = 0x4, offset = 0x4, fixed_abs, tag = 'smem constant byte address 0x4 - core index']
  #allocation1 [shape = 'u32[144,128]{1,0:T(1,128)}', space=vmem, size = 0x12000, scoped, tag = 'internal scratch']
  %s0 = inlined_call_operand.vmem [shape: f32[16,32], index: 0, kind: input, shape index: {}]
  %s1 = inlined_call_operand.vmem [shape: bf16[32,32], index: 1, kind: input, shape index: {}]
  %s2 = inlined_call_operand.vmem [shape: f32[1,32], index: 2, kind: input, shape index: {}]
  %s3 = inlined_call_operand.vmem [shape: f32[1,32], index: 3, kind: input, shape index: {}]
  %s4 = inlined_call_operand.vmem [shape: f32[1,32], index: 4, kind: input, shape index: {}]
  %s5 = inlined_call_operand.vmem [shape: f32[16,32], index: 5, kind: output, shape index: {}]
  %s6 = sld [smem:[#allocation0]]
  $region30: #{transformer_forward.36} parent=0
    _
  %s8 = ssub.s32 1, %s6
  %s9 = scalar_select 0, %s8, %s6
  // Predicated region
  $region2: #{transformer_forward.36} parent=0 // pred_check
    _
  $region3: #{transformer_forward.36} parent=0 // pred_check_branch
    %11 = sbr.rel (0) target = $region5
  $region4: #{transformer_forward.36} parent=0 // pred_region
    _
  $region5: #{transformer_forward.36} parent=0 // pred_fallthru
    _
  // Predicated region
  $region6: #{transformer_forward.36} parent=0 // pred_check
    _
  $region7: #{transformer_forward.36} parent=0 // pred_check_branch
    %13 = sbr.rel (0) target = $region9
  $region8: #{transformer_forward.36} parent=0 // pred_region
    _
  $region9: #{transformer_forward.36} parent=0 // pred_fallthru
    _
  // Predicated region
  $region10: #{transformer_forward.36} parent=0 // pred_check
    _
  $region11: #{transformer_forward.36} parent=0 // pred_check_branch
    %15 = sbr.rel (0) target = $region13
  $region12: #{transformer_forward.36} parent=0 // pred_region
    _
  $region13: #{transformer_forward.36} parent=0 // pred_fallthru
    _
  // Predicated region
  $region14: #{transformer_forward.36} parent=0 // pred_check
    _
  $region15: #{transformer_forward.36} parent=0 // pred_check_branch
    %17 = sbr.rel (0) target = $region17
  $region16: #{transformer_forward.36} parent=0 // pred_region
    _
  $region17: #{transformer_forward.36} parent=0 // pred_fallthru
    _
  // Predicated region
  $region18: #{transformer_forward.36} parent=0 // pred_check
    _
  $region19: #{transformer_forward.36} parent=0 // pred_check_branch
    %19 = sbr.rel (0) target = $region21
  $region20: #{transformer_forward.36} parent=0 // pred_region
    _
  $region21: #{transformer_forward.36} parent=0 // pred_fallthru
    _
  %v21 = vld [vmem:[%s0] sm:$0xff]
  %v22 = vld [vmem:[%s0 + $0x8] sm:$0xff]
  %vm23 = vcmask 261120
  %v24 = vsel %vm23, %v21, 0.0
  %25 = vadd.xlane.f32.xlu0 %v24
  %v26 = vpop.xlane.xlu0 %25
  %v27 = vsel %vm23, %v22, 0.0
  %28 = vadd.xlane.f32.xlu0 %v27
  %v29 = vpop.xlane.xlu0 %28
  %v30 = vrcp.pop 32.0
  %v31 = vmul.f32 %v26, %v30
  %v32 = vmul.f32 %v29, %v30
  %v33 = vsub.f32 %v21, %v31
  %v34 = vsub.f32 %v22, %v32
  %v35 = vmul.f32 %v33, %v33
  %v36 = vmul.f32 %v34, %v34
  %v37 = vsel %vm23, %v35, 0.0
  %38 = vadd.xlane.f32.xlu0 %v37
  %v39 = vpop.xlane.xlu0 %38
  %v40 = vsel %vm23, %v36, 0.0
  %41 = vadd.xlane.f32.xlu0 %v40
  %v42 = vpop.xlane.xlu0 %41
  %v43 = vmul.f32 %v39, %v30
  %v44 = vmul.f32 %v42, %v30
  %v45 = vadd.f32 %v43, 1e-05
  %v46 = vadd.f32 %v44, 1e-05
  %v47 = vrsqrt.pop %v45
  %v48 = vrsqrt.pop %v46
  %v49 = vmul.f32 %v33, %v47
  %v50 = vmul.f32 %v34, %v48
  %v51 = vld [vmem:[%s3] sm:$0x1]
  %v53 = vlaneseq
  %v54 = vshrl.u32 %v53, 7
  %v55 = vsub.s32 0, %v54
  %v56 = vrot.slane %v51, %v55
  %v58 = vmul.f32 %v49, %v56
  %v59 = vmul.f32 %v50, %v56
  %v60 = vld [vmem:[%s4] sm:$0x1]
  %v62 = vlaneseq
  %v63 = vshrl.u32 %v62, 7
  %v64 = vsub.s32 0, %v63
  %v65 = vrot.slane %v60, %v64
  %v67 = vadd.f32 %v58, %v65
  %v68 = vadd.f32 %v59, %v65
  %v69 = vpack.c.bf16 %v68, %v67
  %v70 = vld [vmem:[%s1] sm:$0xf]
  %v71 = vld [vmem:[%s1 + $0x4] sm:$0xf]
  %v72 = vld [vmem:[%s1 + $0x8] sm:$0xf]
  %v73 = vld [vmem:[%s1 + $0xc] sm:$0xf]
  %v74 = vld [vmem:[%s2] sm:$0x1]
  %v76 = vlaneseq
  %v77 = vshrl.u32 %v76, 7
  %v78 = vsub.s32 0, %v77
  %v79 = vrot.slane %v74, %v78
  %v85 = vunpack.c.l.b16 %v70
  %v86 = vunpack.c.l.b16 %v71
  %v87 = vunpack.c.l.b16 %v72
  %v88 = vunpack.c.l.b16 %v73
  %v89 = vpack.c.b16 %v86, %v85
  %v90 = vpack.c.b16 %v88, %v87
  %v94 = vsel %vm23, %v69, 0
  %96 = vmatprep.subr.bf16.mxu0 0
  %97 = vmatpush1.bf16.msra.mxu0 0
  %98 = vmatprep.subr.bf16.mxu0 0
  %99 = vmatpush1.bf16.msra.mxu0 0
  %100 = vmatprep.subr.bf16.mxu0 0
  %101 = vmatpush1.bf16.msra.mxu0 0
  %102 = vmatprep.subr.bf16.mxu0 0
  %103 = vmatpush1.bf16.msra.mxu0 0
  %104 = vmatprep.subr.bf16.mxu0 0
  %105 = vmatpush1.bf16.msra.mxu0 0
  %106 = vmatprep.subr.bf16.mxu0 0
  %107 = vmatpush1.bf16.msra.mxu0 0
  %108 = vmatprep.subr.bf16.mxu0 0
  %109 = vmatpush1.bf16.msra.mxu0 %v90
  %110 = vmatprep.subr.bf16.mxu0 0
  %111 = vmatpush1.bf16.msra.mxu0 %v89
  %112 = vmatprep.subr.bf16.mxu0 0
  %113 = vmatpush2.bf16.msra.mxu0 0
  %114 = vmatprep.subr.bf16.mxu0 0
  %115 = vmatpush2.bf16.msra.mxu0 0
  %116 = vmatprep.subr.bf16.mxu0 0
  %117 = vmatpush2.bf16.msra.mxu0 0
  %118 = vmatprep.subr.bf16.mxu0 0
  %119 = vmatpush2.bf16.msra.mxu0 0
  %120 = vmatprep.subr.bf16.mxu0 0
  %121 = vmatpush2.bf16.msra.mxu0 0
  %122 = vmatprep.subr.bf16.mxu0 0
  %123 = vmatpush2.bf16.msra.mxu0 0
  %124 = vmatprep.subr.bf16.mxu0 0
  %125 = vmatpush2.bf16.msra.mxu0 0
  %126 = vmatprep.subr.bf16.mxu0 0
  %127 = vmatpush2.bf16.msra.mxu0 0
  %128 = vmatprep.mubr.bf16.mxu0 0
  %129 = vmatmul.mubr.bf16.gmra.mxu0 %v94
  %v130 = vpop.f32.mrf.mxu0
  %v131 = vadd.f32 %v79, %v130
  %v132 = vpop.f32.mrf.mxu0
  %v133 = vpop.f32.mrf.mxu0
  %v134 = vadd.f32 %v79, %v133
  %v135 = vpop.f32.mrf.mxu0
  %136 = vdwg.mxu0
  %137 = vst.msk [vmem:[%s5] sm:$0xff] %vm23, %v131
  %138 = vst.msk [vmem:[%s5 + $0x8] sm:$0xff] %vm23, %v134
  // Predicated region
  $region22: #{transformer_forward.36} parent=0 // pred_check
    _
  $region23: #{transformer_forward.36} parent=0 // pred_check_branch
    %140 = sbr.rel (0) target = $region25
  $region24: #{transformer_forward.36} parent=0 // pred_region
    _
  $region25: #{transformer_forward.36} parent=0 // pred_fallthru
    _
  // Predicated region
  $region26: #{transformer_forward.36} parent=0 // pred_check
    _
  $region27: #{transformer_forward.36} parent=0 // pred_check_branch
    %142 = sbr.rel (0) target = $region29
  $region28: #{transformer_forward.36} parent=0 // pred_region
    _
  $region29: #{transformer_forward.36} parent=0 // pred_fallthru
    _

// kernel: transformer_forward.34
$region0: #{transformer_forward.34}
  #allocation0 [shape = 'u32[]', space=smem, size = 0x4, offset = 0x4, fixed_abs, tag = 'smem constant byte address 0x4 - core index']
  #allocation1 [shape = 'u32[144,128]{1,0:T(1,128)}', space=vmem, size = 0x12000, scoped, tag = 'internal scratch']
  %s0 = inlined_call_operand.vmem [shape: f32[2,8,96], index: 0, kind: input, shape index: {}]
  %s1 = inlined_call_operand.vmem [shape: f32[2,8,8], index: 1, kind: input, shape index: {}]
  %s2 = inlined_call_operand.vmem [shape: f32[2,8,32], index: 2, kind: output, shape index: {}]
  %s3 = sld [smem:[#allocation0]]
  $region41: #{transformer_forward.34} parent=0
    _
  %s5 = ssub.s32 1, %s3
  %s6 = scalar_select 0, %s5, %s3
  loop: start=0, step=1, limit=4
  $region2: #{transformer_forward.34} parent=0 // loop_pre_header
    _
  $region3: #{transformer_forward.34} parent=0 // loop_header
    %s8 = sphi 0, %s12
    %p9 = scmp.ge.s32.totalorder %s8, 4
    %s18 = sphi 0, %s20
    %s21 = sphi 0, %s18
    %s22 = sphi 0, %s21
    %s38 = sphi 0, %s22
    %s44 = sphi 0, %s46
    %s47 = sphi 0, %s44
    %s48 = sphi 0, %s47
    %s64 = sphi 0, %s48
    %s70 = sphi 0, %s72
    %s73 = sphi 0, %s70
    %s74 = sphi 0, %s73
    %s90 = sphi 0, %s74
  $region4: #{transformer_forward.34} parent=0 // loop_header_branch
    %11 = sbr.rel (%p9) target = $region8
  $region5: #{transformer_forward.34} parent=0 // loop_body
    %s13 = ssub.s32 %s8, 1
    %s14 = ssub.s32 %s8, 2
    %s15 = sadd.s32 %s8, 1
    %s16 = ssub.s32 %s8, %s15
    %p17 = scmp.eq.s32.totalorder %s16, 0
    %s19 = sadd.s32 %s18, 1
    %s20 = scalar_select %p17, %s18, %s19
    %p23 = pneg %p17
    %p24 = scmp.eq.s32.totalorder %s8, 1
    %p25 = por %p23, %p24
    %p26 = scmp.ne.s32.totalorder %s18, %s21
    %p27 = scmp.eq.s32.totalorder %s8, 0
    %p28 = por %p26, %p27
    %p29 = scmp.ne.s32.totalorder %s18, %s21
    %p30 = scmp.eq.s32.totalorder %s13, 1
    %p31 = por %p29, %p30
    %p32 = scmp.ne.s32.totalorder %s21, %s22
    %p33 = scmp.eq.s32.totalorder %s13, 0
    %p34 = por %p32, %p33
    %p35 = scmp.ne.s32.totalorder %s21, %s22
    %p36 = scmp.eq.s32.totalorder %s14, 1
    %p37 = por %p35, %p36
    %p39 = scmp.ne.s32.totalorder %s22, %s38
    %p40 = scmp.eq.s32.totalorder %s14, 0
    %p41 = por %p39, %p40
    %s42 = ssub.s32 %s8, %s15
    %p43 = scmp.eq.s32.totalorder %s42, 0
    %s45 = sadd.s32 %s44, 1
    %s46 = scalar_select %p43, %s44, %s45
    %p49 = pneg %p43
    %p50 = scmp.eq.s32.totalorder %s8, 1
    %p51 = por %p49, %p50
    %p52 = scmp.ne.s32.totalorder %s44, %s47
    %p53 = scmp.eq.s32.totalorder %s8, 0
    %p54 = por %p52, %p53
    %p55 = scmp.ne.s32.totalorder %s44, %s47
    %p56 = scmp.eq.s32.totalorder %s13, 1
    %p57 = por %p55, %p56
    %p58 = scmp.ne.s32.totalorder %s47, %s48
    %p59 = scmp.eq.s32.totalorder %s13, 0
    %p60 = por %p58, %p59
    %p61 = scmp.ne.s32.totalorder %s47, %s48
    %p62 = scmp.eq.s32.totalorder %s14, 1
    %p63 = por %p61, %p62
    %p65 = scmp.ne.s32.totalorder %s48, %s64
    %p66 = scmp.eq.s32.totalorder %s14, 0
    %p67 = por %p65, %p66
    %s68 = ssub.s32 %s8, %s15
    %p69 = scmp.eq.s32.totalorder %s68, 0
    %s71 = sadd.s32 %s70, 1
    %s72 = scalar_select %p69, %s70, %s71
    %p75 = pneg %p69
    %p76 = scmp.eq.s32.totalorder %s8, 1
    %p77 = por %p75, %p76
    %p78 = scmp.ne.s32.totalorder %s70, %s73
    %p79 = scmp.eq.s32.totalorder %s8, 0
    %p80 = por %p78, %p79
    %p81 = scmp.ne.s32.totalorder %s70, %s73
    %p82 = scmp.eq.s32.totalorder %s13, 1
    %p83 = por %p81, %p82
    %p84 = scmp.ne.s32.totalorder %s73, %s74
    %p85 = scmp.eq.s32.totalorder %s13, 0
    %p86 = por %p84, %p85
    %p87 = scmp.ne.s32.totalorder %s73, %s74
    %p88 = scmp.eq.s32.totalorder %s14, 1
    %p89 = por %p87, %p88
    %p91 = scmp.ne.s32.totalorder %s74, %s90
    %p92 = scmp.eq.s32.totalorder %s14, 0
    %p93 = por %p91, %p92
    %p94 = scmp.le.s32.totalorder 1, %s8
    %p95 = scmp.lt.s32.totalorder %s8, 3
    %p96 = pnand %p94, %p95
    %p97 = pneg %p96
    // Predicated region
    $region9: #{transformer_forward.34} parent=5 // pred_check
      _
    $region10: #{transformer_forward.34} parent=5 // pred_check_branch
      %99 = sbr.rel (%p96) target = $region12
    $region11: #{transformer_forward.34} parent=5 // pred_region
      %s100 = ssub.s32 %s8, 1
    $region12: #{transformer_forward.34} parent=5 // pred_fallthru
      _
    %p101 = scmp.lt.s32.totalorder %s8, 2
    // Predicated region
    $region13: #{transformer_forward.34} parent=5 // pred_check
      %p102 = pneg %p101
    $region14: #{transformer_forward.34} parent=5 // pred_check_branch
      %104 = sbr.rel (%p102) target = $region16
    $region15: #{transformer_forward.34} parent=5 // pred_region
      // Predicated region
      $region17: #{transformer_forward.34} parent=15 // pred_check
        %p105 = pneg %p28
      $region18: #{transformer_forward.34} parent=15 // pred_check_branch
        %107 = sbr.rel (%p105) target = $region20
      $region19: #{transformer_forward.34} parent=15 // pred_region
        %p108 = scmp.lt.s32.totalorder %s8, 1
        %s109 = scalar_select %p108, %s8, 1
        %s110 = smul.addr %s109, 8
        %s111 = scalar_lea.vmem %s0, %s110
      $region20: #{transformer_forward.34} parent=15 // pred_fallthru
        _
      // Predicated region
      $region21: #{transformer_forward.34} parent=15 // pred_check
        %p112 = pneg %p54
      $region22: #{transformer_forward.34} parent=15 // pred_check_branch
        %114 = sbr.rel (%p112) target = $region24
      $region23: #{transformer_forward.34} parent=15 // pred_region
        %p115 = scmp.lt.s32.totalorder %s8, 1
        %s116 = scalar_select %p115, %s8, 1
        %s117 = smul.addr %s116, 8
        %s118 = scalar_lea.vmem %s1, %s117
      $region24: #{transformer_forward.34} parent=15 // pred_fallthru
        _
    $region16: #{transformer_forward.34} parent=5 // pred_fallthru
      _
    %p119 = scmp.le.s32.totalorder 1, %s8
    %p120 = scmp.lt.s32.totalorder %s8, 3
    %p121 = pnand %p119, %p120
    %p122 = pneg %p121
    // Predicated region
    $region25: #{transformer_forward.34} parent=5 // pred_check
      _
    $region26: #{transformer_forward.34} parent=5 // pred_check_branch
      %124 = sbr.rel (%p121) target = $region28
    $region27: #{transformer_forward.34} parent=5 // pred_region
      %s125 = ssub.s32 %s8, 1
      %p126 = scmp.lt.s32.totalorder %s13, 1
      %s127 = scalar_select %p126, %s13, 1
      %s128 = smul.addr %s127, 8
      %s129 = scalar_lea.vmem %s0, %s128
      %p130 = pneg %p34
      %p131 = pneg %p31
      %p132 = scmp.lt.s32.totalorder %s13, 1
      %s133 = scalar_select %p132, %s13, 1
      %s134 = smul.addr %s133, 8
      %s135 = scalar_lea.vmem %s1, %s134
      %p136 = pneg %p60
      %p137 = pneg %p57
      %p138 = pneg %p86
      %p139 = pneg %p83
      %p140 = scmp.lt.s32.totalorder %s13, 1
      %s141 = scalar_select %p140, %s13, 1
      %s142 = smul.addr %s141, 8
      %s143 = scalar_lea.vmem %s2, %s142
      %p144 = scmp.lt.s32.totalorder %s13, 1
      %s145 = scalar_select %p144, %s13, 1
      %s146 = smul.addr %s145, 8
      %s147 = scalar_lea.vmem %s0, %s146
      %p148 = scmp.lt.s32.totalorder %s13, 1
      %s149 = scalar_select %p148, %s13, 1
      %s150 = smul.addr %s149, 8
      %s151 = scalar_lea.vmem %s1, %s150
      %p152 = scmp.lt.s32.totalorder %s13, 1
      %s153 = scalar_select %p152, %s13, 1
      %s154 = smul.addr %s153, 8
      %s155 = scalar_lea.vmem %s2, %s154
      %v157 = vld [vmem:[%s147] sm:$0xff]
      %v158 = vpack.c.bf16 %v157, %v157
      %v159 = vld [vmem:[%s151] sm:$0xff]
      %161 = vrot.lane.b32.xlu0 %v158, 96
      %v162 = vpop.permute.xlu0 %161
      %vm163 = vcmask 64512
      %v165 = vsel %vm163, %v158, 0
      %v168 = vsel %vm163, %v162, 0
      %170 = vmatprep.subr.bf16.mxu0 0
      %171 = vmatpush1.bf16.xpose.msra.mxu0 0
      %172 = vmatprep.subr.bf16.mxu0 0
      %173 = vmatpush1.bf16.xpose.msra.mxu0 0
      %174 = vmatprep.subr.bf16.mxu0 0
      %175 = vmatpush1.bf16.xpose.msra.mxu0 0
      %176 = vmatprep.subr.bf16.mxu0 0
      %177 = vmatpush1.bf16.xpose.msra.mxu0 0
      %178 = vmatprep.subr.bf16.mxu0 0
      %179 = vmatpush1.bf16.xpose.msra.mxu0 0
      %180 = vmatprep.subr.bf16.mxu0 0
      %181 = vmatpush1.bf16.xpose.msra.mxu0 0
      %182 = vmatprep.subr.bf16.mxu0 0
      %183 = vmatpush1.bf16.xpose.msra.mxu0 0
      %184 = vmatprep.subr.bf16.mxu0 0
      %185 = vmatpush1.bf16.xpose.msra.mxu0 %v168
      %186 = vmatprep.subr.bf16.mxu0 0
      %187 = vmatpush2.bf16.xpose.msra.mxu0 0
      %188 = vmatprep.subr.bf16.mxu0 0
      %189 = vmatpush2.bf16.xpose.msra.mxu0 0
      %190 = vmatprep.subr.bf16.mxu0 0
      %191 = vmatpush2.bf16.xpose.msra.mxu0 0
      %192 = vmatprep.subr.bf16.mxu0 0
      %193 = vmatpush2.bf16.xpose.msra.mxu0 0
      %194 = vmatprep.subr.bf16.mxu0 0
      %195 = vmatpush2.bf16.xpose.msra.mxu0 0
      %196 = vmatprep.subr.bf16.mxu0 0
      %197 = vmatpush2.bf16.xpose.msra.mxu0 0
      %198 = vmatprep.subr.bf16.mxu0 0
      %199 = vmatpush2.bf16.xpose.msra.mxu0 0
      %200 = vmatprep.subr.bf16.mxu0 0
      %201 = vmatpush2.bf16.xpose.msra.mxu0 0
      %202 = vmatprep.mubr.bf16.mxu0 0
      %203 = vmatmul.mubr.bf16.gmra.mxu0 %v165
      %v204 = vpop.f32.mrf.mxu0
      %v205 = vadd.f32 0.0, %v204
      %v206 = vpop.f32.mrf.mxu0
      %v207 = vpop.f32.mrf.mxu0
      %v208 = vpop.f32.mrf.mxu0
      %209 = vdwg.mxu0
      %vm210 = vcmp.gt.f32.partialorder %v159, 0.0
      %v211 = vsel %vm210, %v205, -1e+09
      %v212 = vsel %vm163, %v211, -inf
      %213 = vmax.xlane.f32.xlu0 %v212
      %v214 = vpop.xlane.xlu0 %213
      %v215 = vsub.f32 %v211, %v214
      %v216 = vmul.f32 %v215, 1.442695
      %v217 = vpow.pop %v216
      %v218 = vsel %vm163, %v217, 0.0
      %219 = vadd.xlane.f32.xlu0 %v218
      %v220 = vpop.xlane.xlu0 %219
      %v221 = vrcp.pop %v220
      %v222 = vmul.f32 1.0, %v221
      %v223 = vmul.f32 %v217, %v222
      %v224 = vpack.c.bf16 %v223, %v223
      %225 = vrot.lane.b32.xlu0 %v158, 64
      %v226 = vpop.permute.xlu0 %225
      %v228 = vsel %vm163, %v224, 0
      %vm230 = vcmask 1043456
      %v232 = vsel %vm230, %v226, 0
      %234 = vmatprep.subr.bf16.mxu0 0
      %235 = vmatpush1.bf16.msra.mxu0 0
      %236 = vmatprep.subr.bf16.mxu0 0
      %237 = vmatpush1.bf16.msra.mxu0 0
      %238 = vmatprep.subr.bf16.mxu0 0
      %239 = vmatpush1.bf16.msra.mxu0 0
      %240 = vmatprep.subr.bf16.mxu0 0
      %241 = vmatpush1.bf16.msra.mxu0 0
      %242 = vmatprep.subr.bf16.mxu0 0
      %243 = vmatpush1.bf16.msra.mxu0 0
      %244 = vmatprep.subr.bf16.mxu0 0
      %245 = vmatpush1.bf16.msra.mxu0 0
      %246 = vmatprep.subr.bf16.mxu0 0
      %247 = vmatpush1.bf16.msra.mxu0 0
      %248 = vmatprep.subr.bf16.mxu0 0
      %249 = vmatpush1.bf16.msra.mxu0 %v232
      %250 = vmatprep.subr.bf16.mxu0 0
      %251 = vmatpush2.bf16.msra.mxu0 0
      %252 = vmatprep.subr.bf16.mxu0 0
      %253 = vmatpush2.bf16.msra.mxu0 0
      %254 = vmatprep.subr.bf16.mxu0 0
      %255 = vmatpush2.bf16.msra.mxu0 0
      %256 = vmatprep.subr.bf16.mxu0 0
      %257 = vmatpush2.bf16.msra.mxu0 0
      %258 = vmatprep.subr.bf16.mxu0 0
      %259 = vmatpush2.bf16.msra.mxu0 0
      %260 = vmatprep.subr.bf16.mxu0 0
      %261 = vmatpush2.bf16.msra.mxu0 0
      %262 = vmatprep.subr.bf16.mxu0 0
      %263 = vmatpush2.bf16.msra.mxu0 0
      %264 = vmatprep.subr.bf16.mxu0 0
      %265 = vmatpush2.bf16.msra.mxu0 0
      %266 = vmatprep.mubr.bf16.mxu0 0
      %267 = vmatmul.mubr.bf16.gmra.mxu0 %v228
      %v268 = vpop.f32.mrf.mxu0
      %v269 = vadd.f32 0.0, %v268
      %v270 = vpop.f32.mrf.mxu0
      %v271 = vpop.f32.mrf.mxu0
      %v272 = vpop.f32.mrf.mxu0
      %273 = vdwg.mxu0
      %274 = vrot.lane.b32.xlu0 %v158, 120
      %v275 = vpop.permute.xlu0 %274
      %276 = vrot.lane.b32.xlu0 %v158, 88
      %v277 = vpop.permute.xlu0 %276
      %v279 = vsel %vm163, %v275, 0
      %v282 = vsel %vm163, %v277, 0
      %284 = vmatprep.subr.bf16.mxu0 0
      %285 = vmatpush1.bf16.xpose.msra.mxu0 0
      %286 = vmatprep.subr.bf16.mxu0 0
      %287 = vmatpush1.bf16.xpose.msra.mxu0 0
      %288 = vmatprep.subr.bf16.mxu0 0
      %289 = vmatpush1.bf16.xpose.msra.mxu0 0
      %290 = vmatprep.subr.bf16.mxu0 0
      %291 = vmatpush1.bf16.xpose.msra.mxu0 0
      %292 = vmatprep.subr.bf16.mxu0 0
      %293 = vmatpush1.bf16.xpose.msra.mxu0 0
      %294 = vmatprep.subr.bf16.mxu0 0
      %295 = vmatpush1.bf16.xpose.msra.mxu0 0
      %296 = vmatprep.subr.bf16.mxu0 0
      %297 = vmatpush1.bf16.xpose.msra.mxu0 0
      %298 = vmatprep.subr.bf16.mxu0 0
      %299 = vmatpush1.bf16.xpose.msra.mxu0 %v282
      %300 = vmatprep.subr.bf16.mxu0 0
      %301 = vmatpush2.bf16.xpose.msra.mxu0 0
      %302 = vmatprep.subr.bf16.mxu0 0
      %303 = vmatpush2.bf16.xpose.msra.mxu0 0
      %304 = vmatprep.subr.bf16.mxu0 0
      %305 = vmatpush2.bf16.xpose.msra.mxu0 0
      %306 = vmatprep.subr.bf16.mxu0 0
      %307 = vmatpush2.bf16.xpose.msra.mxu0 0
      %308 = vmatprep.subr.bf16.mxu0 0
      %309 = vmatpush2.bf16.xpose.msra.mxu0 0
      %310 = vmatprep.subr.bf16.mxu0 0
      %311 = vmatpush2.bf16.xpose.msra.mxu0 0
      %312 = vmatprep.subr.bf16.mxu0 0
      %313 = vmatpush2.bf16.xpose.msra.mxu0 0
      %314 = vmatprep.subr.bf16.mxu0 0
      %315 = vmatpush2.bf16.xpose.msra.mxu0 0
      %316 = vmatprep.mubr.bf16.mxu0 0
      %317 = vmatmul.mubr.bf16.gmra.mxu0 %v279
      %v318 = vpop.f32.mrf.mxu0
      %v319 = vadd.f32 0.0, %v318
      %v320 = vpop.f32.mrf.mxu0
      %v321 = vpop.f32.mrf.mxu0
      %v322 = vpop.f32.mrf.mxu0
      %323 = vdwg.mxu0
      %v324 = vsel %vm210, %v319, -1e+09
      %v325 = vsel %vm163, %v324, -inf
      %326 = vmax.xlane.f32.xlu0 %v325
      %v327 = vpop.xlane.xlu0 %326
      %v328 = vsub.f32 %v324, %v327
      %v329 = vmul.f32 %v328, 1.442695
      %v330 = vpow.pop %v329
      %v331 = vsel %vm163, %v330, 0.0
      %332 = vadd.xlane.f32.xlu0 %v331
      %v333 = vpop.xlane.xlu0 %332
      %v334 = vrcp.pop %v333
      %v335 = vmul.f32 1.0, %v334
      %v336 = vmul.f32 %v330, %v335
      %v337 = vpack.c.bf16 %v336, %v336
      %338 = vrot.lane.b32.xlu0 %v158, 56
      %v339 = vpop.permute.xlu0 %338
      %v341 = vsel %vm163, %v337, 0
      %v344 = vsel %vm230, %v339, 0
      %346 = vmatprep.subr.bf16.mxu0 0
      %347 = vmatpush1.bf16.msra.mxu0 0
      %348 = vmatprep.subr.bf16.mxu0 0
      %349 = vmatpush1.bf16.msra.mxu0 0
      %350 = vmatprep.subr.bf16.mxu0 0
      %351 = vmatpush1.bf16.msra.mxu0 0
      %352 = vmatprep.subr.bf16.mxu0 0
      %353 = vmatpush1.bf16.msra.mxu0 0
      %354 = vmatprep.subr.bf16.mxu0 0
      %355 = vmatpush1.bf16.msra.mxu0 0
      %356 = vmatprep.subr.bf16.mxu0 0
      %357 = vmatpush1.bf16.msra.mxu0 0
      %358 = vmatprep.subr.bf16.mxu0 0
      %359 = vmatpush1.bf16.msra.mxu0 0
      %360 = vmatprep.subr.bf16.mxu0 0
      %361 = vmatpush1.bf16.msra.mxu0 %v344
      %362 = vmatprep.subr.bf16.mxu0 0
      %363 = vmatpush2.bf16.msra.mxu0 0
      %364 = vmatprep.subr.bf16.mxu0 0
      %365 = vmatpush2.bf16.msra.mxu0 0
      %366 = vmatprep.subr.bf16.mxu0 0
      %367 = vmatpush2.bf16.msra.mxu0 0
      %368 = vmatprep.subr.bf16.mxu0 0
      %369 = vmatpush2.bf16.msra.mxu0 0
      %370 = vmatprep.subr.bf16.mxu0 0
      %371 = vmatpush2.bf16.msra.mxu0 0
      %372 = vmatprep.subr.bf16.mxu0 0
      %373 = vmatpush2.bf16.msra.mxu0 0
      %374 = vmatprep.subr.bf16.mxu0 0
      %375 = vmatpush2.bf16.msra.mxu0 0
      %376 = vmatprep.subr.bf16.mxu0 0
      %377 = vmatpush2.bf16.msra.mxu0 0
      %378 = vmatprep.mubr.bf16.mxu0 0
      %379 = vmatmul.mubr.bf16.gmra.mxu0 %v341
      %v380 = vpop.f32.mrf.mxu0
      %v381 = vadd.f32 0.0, %v380
      %v382 = vpop.f32.mrf.mxu0
      %v383 = vpop.f32.mrf.mxu0
      %v384 = vpop.f32.mrf.mxu0
      %385 = vdwg.mxu0
      %386 = vrot.lane.b32.xlu0 %v158, 112
      %v387 = vpop.permute.xlu0 %386
      %388 = vrot.lane.b32.xlu0 %v158, 80
      %v389 = vpop.permute.xlu0 %388
      %v391 = vsel %vm163, %v387, 0
      %v394 = vsel %vm163, %v389, 0
      %396 = vmatprep.subr.bf16.mxu0 0
      %397 = vmatpush1.bf16.xpose.msra.mxu0 0
      %398 = vmatprep.subr.bf16.mxu0 0
      %399 = vmatpush1.bf16.xpose.msra.mxu0 0
      %400 = vmatprep.subr.bf16.mxu0 0
      %401 = vmatpush1.bf16.xpose.msra.mxu0 0
      %402 = vmatprep.subr.bf16.mxu0 0
      %403 = vmatpush1.bf16.xpose.msra.mxu0 0
      %404 = vmatprep.subr.bf16.mxu0 0
      %405 = vmatpush1.bf16.xpose.msra.mxu0 0
      %406 = vmatprep.subr.bf16.mxu0 0
      %407 = vmatpush1.bf16.xpose.msra.mxu0 0
      %408 = vmatprep.subr.bf16.mxu0 0
      %409 = vmatpush1.bf16.xpose.msra.mxu0 0
      %410 = vmatprep.subr.bf16.mxu0 0
      %411 = vmatpush1.bf16.xpose.msra.mxu0 %v394
      %412 = vmatprep.subr.bf16.mxu0 0
      %413 = vmatpush2.bf16.xpose.msra.mxu0 0
      %414 = vmatprep.subr.bf16.mxu0 0
      %415 = vmatpush2.bf16.xpose.msra.mxu0 0
      %416 = vmatprep.subr.bf16.mxu0 0
      %417 = vmatpush2.bf16.xpose.msra.mxu0 0
      %418 = vmatprep.subr.bf16.mxu0 0
      %419 = vmatpush2.bf16.xpose.msra.mxu0 0
      %420 = vmatprep.subr.bf16.mxu0 0
      %421 = vmatpush2.bf16.xpose.msra.mxu0 0
      %422 = vmatprep.subr.bf16.mxu0 0
      %423 = vmatpush2.bf16.xpose.msra.mxu0 0
      %424 = vmatprep.subr.bf16.mxu0 0
      %425 = vmatpush2.bf16.xpose.msra.mxu0 0
      %426 = vmatprep.subr.bf16.mxu0 0
      %427 = vmatpush2.bf16.xpose.msra.mxu0 0
      %428 = vmatprep.mubr.bf16.mxu0 0
      %429 = vmatmul.mubr.bf16.gmra.mxu0 %v391
      %v430 = vpop.f32.mrf.mxu0
      %v431 = vadd.f32 0.0, %v430
      %v432 = vpop.f32.mrf.mxu0
      %v433 = vpop.f32.mrf.mxu0
      %v434 = vpop.f32.mrf.mxu0
      %435 = vdwg.mxu0
      %v436 = vsel %vm210, %v431, -1e+09
      %v437 = vsel %vm163, %v436, -inf
      %438 = vmax.xlane.f32.xlu0 %v437
      %v439 = vpop.xlane.xlu0 %438
      %v440 = vsub.f32 %v436, %v439
      %v441 = vmul.f32 %v440, 1.442695
      %v442 = vpow.pop %v441
      %v443 = vsel %vm163, %v442, 0.0
      %444 = vadd.xlane.f32.xlu0 %v443
      %v445 = vpop.xlane.xlu0 %444
      %v446 = vrcp.pop %v445
      %v447 = vmul.f32 1.0, %v446
      %v448 = vmul.f32 %v442, %v447
      %v449 = vpack.c.bf16 %v448, %v448
      %450 = vrot.lane.b32.xlu0 %v158, 48
      %v451 = vpop.permute.xlu0 %450
      %v453 = vsel %vm163, %v449, 0
      %v456 = vsel %vm230, %v451, 0
      %458 = vmatprep.subr.bf16.mxu0 0
      %459 = vmatpush1.bf16.msra.mxu0 0
      %460 = vmatprep.subr.bf16.mxu0 0
      %461 = vmatpush1.bf16.msra.mxu0 0
      %462 = vmatprep.subr.bf16.mxu0 0
      %463 = vmatpush1.bf16.msra.mxu0 0
      %464 = vmatprep.subr.bf16.mxu0 0
      %465 = vmatpush1.bf16.msra.mxu0 0
      %466 = vmatprep.subr.bf16.mxu0 0
      %467 = vmatpush1.bf16.msra.mxu0 0
      %468 = vmatprep.subr.bf16.mxu0 0
      %469 = vmatpush1.bf16.msra.mxu0 0
      %470 = vmatprep.subr.bf16.mxu0 0
      %471 = vmatpush1.bf16.msra.mxu0 0
      %472 = vmatprep.subr.bf16.mxu0 0
      %473 = vmatpush1.bf16.msra.mxu0 %v456
      %474 = vmatprep.subr.bf16.mxu0 0
      %475 = vmatpush2.bf16.msra.mxu0 0
      %476 = vmatprep.subr.bf16.mxu0 0
      %477 = vmatpush2.bf16.msra.mxu0 0
      %478 = vmatprep.subr.bf16.mxu0 0
      %479 = vmatpush2.bf16.msra.mxu0 0
      %480 = vmatprep.subr.bf16.mxu0 0
      %481 = vmatpush2.bf16.msra.mxu0 0
      %482 = vmatprep.subr.bf16.mxu0 0
      %483 = vmatpush2.bf16.msra.mxu0 0
      %484 = vmatprep.subr.bf16.mxu0 0
      %485 = vmatpush2.bf16.msra.mxu0 0
      %486 = vmatprep.subr.bf16.mxu0 0
      %487 = vmatpush2.bf16.msra.mxu0 0
      %488 = vmatprep.subr.bf16.mxu0 0
      %489 = vmatpush2.bf16.msra.mxu0 0
      %490 = vmatprep.mubr.bf16.mxu0 0
      %491 = vmatmul.mubr.bf16.gmra.mxu0 %v453
      %v492 = vpop.f32.mrf.mxu0
      %v493 = vadd.f32 0.0, %v492
      %v494 = vpop.f32.mrf.mxu0
      %v495 = vpop.f32.mrf.mxu0
      %v496 = vpop.f32.mrf.mxu0
      %497 = vdwg.mxu0
      %498 = vrot.lane.b32.xlu0 %v158, 104
      %v499 = vpop.permute.xlu0 %498
      %500 = vrot.lane.b32.xlu0 %v158, 72
      %v501 = vpop.permute.xlu0 %500
      %v503 = vsel %vm163, %v499, 0
      %v506 = vsel %vm163, %v501, 0
      %508 = vmatprep.subr.bf16.mxu0 0
      %509 = vmatpush1.bf16.xpose.msra.mxu0 0
      %510 = vmatprep.subr.bf16.mxu0 0
      %511 = vmatpush1.bf16.xpose.msra.mxu0 0
      %512 = vmatprep.subr.bf16.mxu0 0
      %513 = vmatpush1.bf16.xpose.msra.mxu0 0
      %514 = vmatprep.subr.bf16.mxu0 0
      %515 = vmatpush1.bf16.xpose.msra.mxu0 0
      %516 = vmatprep.subr.bf16.mxu0 0
      %517 = vmatpush1.bf16.xpose.msra.mxu0 0
      %518 = vmatprep.subr.bf16.mxu0 0
      %519 = vmatpush1.bf16.xpose.msra.mxu0 0
      %520 = vmatprep.subr.bf16.mxu0 0
      %521 = vmatpush1.bf16.xpose.msra.mxu0 0
      %522 = vmatprep.subr.bf16.mxu0 0
      %523 = vmatpush1.bf16.xpose.msra.mxu0 %v506
      %524 = vmatprep.subr.bf16.mxu0 0
      %525 = vmatpush2.bf16.xpose.msra.mxu0 0
      %526 = vmatprep.subr.bf16.mxu0 0
      %527 = vmatpush2.bf16.xpose.msra.mxu0 0
      %528 = vmatprep.subr.bf16.mxu0 0
      %529 = vmatpush2.bf16.xpose.msra.mxu0 0
      %530 = vmatprep.subr.bf16.mxu0 0
      %531 = vmatpush2.bf16.xpose.msra.mxu0 0
      %532 = vmatprep.subr.bf16.mxu0 0
      %533 = vmatpush2.bf16.xpose.msra.mxu0 0
      %534 = vmatprep.subr.bf16.mxu0 0
      %535 = vmatpush2.bf16.xpose.msra.mxu0 0
      %536 = vmatprep.subr.bf16.mxu0 0
      %537 = vmatpush2.bf16.xpose.msra.mxu0 0
      %538 = vmatprep.subr.bf16.mxu0 0
      %539 = vmatpush2.bf16.xpose.msra.mxu0 0
      %540 = vmatprep.mubr.bf16.mxu0 0
      %541 = vmatmul.mubr.bf16.gmra.mxu0 %v503
      %v542 = vpop.f32.mrf.mxu0
      %v543 = vadd.f32 0.0, %v542
      %v544 = vpop.f32.mrf.mxu0
      %v545 = vpop.f32.mrf.mxu0
      %v546 = vpop.f32.mrf.mxu0
      %547 = vdwg.mxu0
      %v548 = vsel %vm210, %v543, -1e+09
      %v549 = vsel %vm163, %v548, -inf
      %550 = vmax.xlane.f32.xlu0 %v549
      %v551 = vpop.xlane.xlu0 %550
      %v552 = vsub.f32 %v548, %v551
      %v553 = vmul.f32 %v552, 1.442695
      %v554 = vpow.pop %v553
      %v555 = vsel %vm163, %v554, 0.0
      %556 = vadd.xlane.f32.xlu0 %v555
      %v557 = vpop.xlane.xlu0 %556
      %v558 = vrcp.pop %v557
      %v559 = vmul.f32 1.0, %v558
      %v560 = vmul.f32 %v554, %v559
      %v561 = vpack.c.bf16 %v560, %v560
      %562 = vrot.lane.b32.xlu0 %v158, 40
      %v563 = vpop.permute.xlu0 %562
      %v565 = vsel %vm163, %v561, 0
      %v568 = vsel %vm230, %v563, 0
      %570 = vmatprep.subr.bf16.mxu0 0
      %571 = vmatpush1.bf16.msra.mxu0 0
      %572 = vmatprep.subr.bf16.mxu0 0
      %573 = vmatpush1.bf16.msra.mxu0 0
      %574 = vmatprep.subr.bf16.mxu0 0
      %575 = vmatpush1.bf16.msra.mxu0 0
      %576 = vmatprep.subr.bf16.mxu0 0
      %577 = vmatpush1.bf16.msra.mxu0 0
      %578 = vmatprep.subr.bf16.mxu0 0
      %579 = vmatpush1.bf16.msra.mxu0 0
      %580 = vmatprep.subr.bf16.mxu0 0
      %581 = vmatpush1.bf16.msra.mxu0 0
      %582 = vmatprep.subr.bf16.mxu0 0
      %583 = vmatpush1.bf16.msra.mxu0 0
      %584 = vmatprep.subr.bf16.mxu0 0
      %585 = vmatpush1.bf16.msra.mxu0 %v568
      %586 = vmatprep.subr.bf16.mxu0 0
      %587 = vmatpush2.bf16.msra.mxu0 0
      %588 = vmatprep.subr.bf16.mxu0 0
      %589 = vmatpush2.bf16.msra.mxu0 0
      %590 = vmatprep.subr.bf16.mxu0 0
      %591 = vmatpush2.bf16.msra.mxu0 0
      %592 = vmatprep.subr.bf16.mxu0 0
      %593 = vmatpush2.bf16.msra.mxu0 0
      %594 = vmatprep.subr.bf16.mxu0 0
      %595 = vmatpush2.bf16.msra.mxu0 0
      %596 = vmatprep.subr.bf16.mxu0 0
      %597 = vmatpush2.bf16.msra.mxu0 0
      %598 = vmatprep.subr.bf16.mxu0 0
      %599 = vmatpush2.bf16.msra.mxu0 0
      %600 = vmatprep.subr.bf16.mxu0 0
      %601 = vmatpush2.bf16.msra.mxu0 0
      %602 = vmatprep.mubr.bf16.mxu0 0
      %603 = vmatmul.mubr.bf16.gmra.mxu0 %v565
      %v604 = vpop.f32.mrf.mxu0
      %v605 = vadd.f32 0.0, %v604
      %v606 = vpop.f32.mrf.mxu0
      %v607 = vpop.f32.mrf.mxu0
      %v608 = vpop.f32.mrf.mxu0
      %609 = vdwg.mxu0
      %611 = vrot.lane.b32.xlu0 %v381, 8
      %v612 = vpop.permute.xlu0 %611
      %615 = vrot.lane.b32.xlu0 %v493, 16
      %v616 = vpop.permute.xlu0 %615
      %619 = vrot.lane.b32.xlu0 %v605, 24
      %v620 = vpop.permute.xlu0 %619
      %v622 = vsel %vm163, %v269, %v612
      %vm623 = vcmask 130048
      %v624 = vsel %vm623, %v622, %v616
      %vm625 = vcmask 195584
      %v626 = vsel %vm625, %v624, %v620
      %vm627 = vcmask 261120
      %628 = vst.msk [vmem:[%s155] sm:$0xff] %vm627, %v626
      %p629 = scmp.lt.s32.totalorder %s13, 1
      %s630 = scalar_select %p629, %s13, 1
      %s631 = smul.addr %s630, 8
      %s632 = scalar_lea.vmem %s2, %s631
      // Predicated region
      $region29: #{transformer_forward.34} parent=27 // pred_check
        %p633 = pneg %p83
      $region30: #{transformer_forward.34} parent=27 // pred_check_branch
        %635 = sbr.rel (%p633) target = $region32
      $region31: #{transformer_forward.34} parent=27 // pred_region
        _
      $region32: #{transformer_forward.34} parent=27 // pred_fallthru
        _
    $region28: #{transformer_forward.34} parent=5 // pred_fallthru
      _
    %p636 = scmp.le.s32.totalorder 2, %s8
    // Predicated region
    $region33: #{transformer_forward.34} parent=5 // pred_check
      %p637 = pneg %p636
    $region34: #{transformer_forward.34} parent=5 // pred_check_branch
      %639 = sbr.rel (%p637) target = $region36
    $region35: #{transformer_forward.34} parent=5 // pred_region
      %s640 = ssub.s32 %s8, 2
      // Predicated region
      $region37: #{transformer_forward.34} parent=35 // pred_check
        %p641 = pneg %p89
      $region38: #{transformer_forward.34} parent=35 // pred_check_branch
        %643 = sbr.rel (%p641) target = $region40
      $region39: #{transformer_forward.34} parent=35 // pred_region
        %p644 = scmp.lt.s32.totalorder %s14, 1
        %s645 = scalar_select %p644, %s14, 1
        %s646 = smul.addr %s645, 8
        %s647 = scalar_lea.vmem %s2, %s646
      $region40: #{transformer_forward.34} parent=35 // pred_fallthru
        _
    $region36: #{transformer_forward.34} parent=5 // pred_fallthru
      _
  $region6: #{transformer_forward.34} parent=0 // loop_footer
    %s12 = sadd.s32 1, %s8
  $region7: #{transformer_forward.34} parent=0 // loop_footer_branch
    %7 = sbr.rel target = $region3
  $region8: #{transformer_forward.34} parent=0 // loop_exit
    _

// kernel: transformer_forward.38
$region0: #{transformer_forward.38}
  #allocation0 [shape = 'u32[]', space=smem, size = 0x4, offset = 0x4, fixed_abs, tag = 'smem constant byte address 0x4 - core index']
  #allocation1 [shape = 'u32[144,128]{1,0:T(1,128)}', space=vmem, size = 0x12000, scoped, tag = 'internal scratch']
  %s0 = inlined_call_operand.vmem [shape: f32[2,8,32], index: 0, kind: input, shape index: {}]
  %s1 = inlined_call_operand.vmem [shape: f32[2,8,64], index: 1, kind: input, shape index: {}]
  %s2 = inlined_call_operand.vmem [shape: f32[2,1,8], index: 2, kind: input, shape index: {}]
  %s3 = inlined_call_operand.vmem [shape: f32[2,8,32], index: 3, kind: output, shape index: {}]
  %s4 = sld [smem:[#allocation0]]
  $region45: #{transformer_forward.38} parent=0
    _
  %s6 = ssub.s32 1, %s4
  %s7 = scalar_select 0, %s6, %s4
  loop: start=0, step=1, limit=4
  $region2: #{transformer_forward.38} parent=0 // loop_pre_header
    _
  $region3: #{transformer_forward.38} parent=0 // loop_header
    %s9 = sphi 0, %s13
    %p10 = scmp.ge.s32.totalorder %s9, 4
    %s19 = sphi 0, %s21
    %s22 = sphi 0, %s19
    %s23 = sphi 0, %s22
    %s39 = sphi 0, %s23
    %s45 = sphi 0, %s47
    %s48 = sphi 0, %s45
    %s49 = sphi 0, %s48
    %s65 = sphi 0, %s49
    %s71 = sphi 0, %s73
    %s74 = sphi 0, %s71
    %s75 = sphi 0, %s74
    %s91 = sphi 0, %s75
    %s97 = sphi 0, %s99
    %s100 = sphi 0, %s97
    %s101 = sphi 0, %s100
    %s117 = sphi 0, %s101
  $region4: #{transformer_forward.38} parent=0 // loop_header_branch
    %12 = sbr.rel (%p10) target = $region8
  $region5: #{transformer_forward.38} parent=0 // loop_body
    %s14 = ssub.s32 %s9, 1
    %s15 = ssub.s32 %s9, 2
    %s16 = sadd.s32 %s9, 1
    %s17 = ssub.s32 %s9, %s16
    %p18 = scmp.eq.s32.totalorder %s17, 0
    %s20 = sadd.s32 %s19, 1
    %s21 = scalar_select %p18, %s19, %s20
    %p24 = pneg %p18
    %p25 = scmp.eq.s32.totalorder %s9, 1
    %p26 = por %p24, %p25
    %p27 = scmp.ne.s32.totalorder %s19, %s22
    %p28 = scmp.eq.s32.totalorder %s9, 0
    %p29 = por %p27, %p28
    %p30 = scmp.ne.s32.totalorder %s19, %s22
    %p31 = scmp.eq.s32.totalorder %s14, 1
    %p32 = por %p30, %p31
    %p33 = scmp.ne.s32.totalorder %s22, %s23
    %p34 = scmp.eq.s32.totalorder %s14, 0
    %p35 = por %p33, %p34
    %p36 = scmp.ne.s32.totalorder %s22, %s23
    %p37 = scmp.eq.s32.totalorder %s15, 1
    %p38 = por %p36, %p37
    %p40 = scmp.ne.s32.totalorder %s23, %s39
    %p41 = scmp.eq.s32.totalorder %s15, 0
    %p42 = por %p40, %p41
    %s43 = ssub.s32 %s9, %s16
    %p44 = scmp.eq.s32.totalorder %s43, 0
    %s46 = sadd.s32 %s45, 1
    %s47 = scalar_select %p44, %s45, %s46
    %p50 = pneg %p44
    %p51 = scmp.eq.s32.totalorder %s9, 1
    %p52 = por %p50, %p51
    %p53 = scmp.ne.s32.totalorder %s45, %s48
    %p54 = scmp.eq.s32.totalorder %s9, 0
    %p55 = por %p53, %p54
    %p56 = scmp.ne.s32.totalorder %s45, %s48
    %p57 = scmp.eq.s32.totalorder %s14, 1
    %p58 = por %p56, %p57
    %p59 = scmp.ne.s32.totalorder %s48, %s49
    %p60 = scmp.eq.s32.totalorder %s14, 0
    %p61 = por %p59, %p60
    %p62 = scmp.ne.s32.totalorder %s48, %s49
    %p63 = scmp.eq.s32.totalorder %s15, 1
    %p64 = por %p62, %p63
    %p66 = scmp.ne.s32.totalorder %s49, %s65
    %p67 = scmp.eq.s32.totalorder %s15, 0
    %p68 = por %p66, %p67
    %s69 = ssub.s32 %s9, %s16
    %p70 = scmp.eq.s32.totalorder %s69, 0
    %s72 = sadd.s32 %s71, 1
    %s73 = scalar_select %p70, %s71, %s72
    %p76 = pneg %p70
    %p77 = scmp.eq.s32.totalorder %s9, 1
    %p78 = por %p76, %p77
    %p79 = scmp.ne.s32.totalorder %s71, %s74
    %p80 = scmp.eq.s32.totalorder %s9, 0
    %p81 = por %p79, %p80
    %p82 = scmp.ne.s32.totalorder %s71, %s74
    %p83 = scmp.eq.s32.totalorder %s14, 1
    %p84 = por %p82, %p83
    %p85 = scmp.ne.s32.totalorder %s74, %s75
    %p86 = scmp.eq.s32.totalorder %s14, 0
    %p87 = por %p85, %p86
    %p88 = scmp.ne.s32.totalorder %s74, %s75
    %p89 = scmp.eq.s32.totalorder %s15, 1
    %p90 = por %p88, %p89
    %p92 = scmp.ne.s32.totalorder %s75, %s91
    %p93 = scmp.eq.s32.totalorder %s15, 0
    %p94 = por %p92, %p93
    %s95 = ssub.s32 %s9, %s16
    %p96 = scmp.eq.s32.totalorder %s95, 0
    %s98 = sadd.s32 %s97, 1
    %s99 = scalar_select %p96, %s97, %s98
    %p102 = pneg %p96
    %p103 = scmp.eq.s32.totalorder %s9, 1
    %p104 = por %p102, %p103
    %p105 = scmp.ne.s32.totalorder %s97, %s100
    %p106 = scmp.eq.s32.totalorder %s9, 0
    %p107 = por %p105, %p106
    %p108 = scmp.ne.s32.totalorder %s97, %s100
    %p109 = scmp.eq.s32.totalorder %s14, 1
    %p110 = por %p108, %p109
    %p111 = scmp.ne.s32.totalorder %s100, %s101
    %p112 = scmp.eq.s32.totalorder %s14, 0
    %p113 = por %p111, %p112
    %p114 = scmp.ne.s32.totalorder %s100, %s101
    %p115 = scmp.eq.s32.totalorder %s15, 1
    %p116 = por %p114, %p115
    %p118 = scmp.ne.s32.totalorder %s101, %s117
    %p119 = scmp.eq.s32.totalorder %s15, 0
    %p120 = por %p118, %p119
    %p121 = scmp.le.s32.totalorder 1, %s9
    %p122 = scmp.lt.s32.totalorder %s9, 3
    %p123 = pnand %p121, %p122
    %p124 = pneg %p123
    // Predicated region
    $region9: #{transformer_forward.38} parent=5 // pred_check
      _
    $region10: #{transformer_forward.38} parent=5 // pred_check_branch
      %126 = sbr.rel (%p123) target = $region12
    $region11: #{transformer_forward.38} parent=5 // pred_region
      %s127 = ssub.s32 %s9, 1
    $region12: #{transformer_forward.38} parent=5 // pred_fallthru
      _
    %p128 = scmp.lt.s32.totalorder %s9, 2
    // Predicated region
    $region13: #{transformer_forward.38} parent=5 // pred_check
      %p129 = pneg %p128
    $region14: #{transformer_forward.38} parent=5 // pred_check_branch
      %131 = sbr.rel (%p129) target = $region16
    $region15: #{transformer_forward.38} parent=5 // pred_region
      // Predicated region
      $region17: #{transformer_forward.38} parent=15 // pred_check
        %p132 = pneg %p29
      $region18: #{transformer_forward.38} parent=15 // pred_check_branch
        %134 = sbr.rel (%p132) target = $region20
      $region19: #{transformer_forward.38} parent=15 // pred_region
        %p135 = scmp.lt.s32.totalorder %s9, 1
        %s136 = scalar_select %p135, %s9, 1
        %s137 = smul.addr %s136, 8
        %s138 = scalar_lea.vmem %s0, %s137
      $region20: #{transformer_forward.38} parent=15 // pred_fallthru
        _
      // Predicated region
      $region21: #{transformer_forward.38} parent=15 // pred_check
        %p139 = pneg %p55
      $region22: #{transformer_forward.38} parent=15 // pred_check_branch
        %141 = sbr.rel (%p139) target = $region24
      $region23: #{transformer_forward.38} parent=15 // pred_region
        %p142 = scmp.lt.s32.totalorder %s9, 1
        %s143 = scalar_select %p142, %s9, 1
        %s144 = smul.addr %s143, 8
        %s145 = scalar_lea.vmem %s1, %s144
      $region24: #{transformer_forward.38} parent=15 // pred_fallthru
        _
      // Predicated region
      $region25: #{transformer_forward.38} parent=15 // pred_check
        %p146 = pneg %p81
      $region26: #{transformer_forward.38} parent=15 // pred_check_branch
        %148 = sbr.rel (%p146) target = $region28
      $region27: #{transformer_forward.38} parent=15 // pred_region
        %p149 = scmp.lt.s32.totalorder %s9, 1
        %s150 = scalar_select %p149, %s9, 1
        %s151 = scalar_lea.vmem %s2, %s150
      $region28: #{transformer_forward.38} parent=15 // pred_fallthru
        _
    $region16: #{transformer_forward.38} parent=5 // pred_fallthru
      _
    %p152 = scmp.le.s32.totalorder 1, %s9
    %p153 = scmp.lt.s32.totalorder %s9, 3
    %p154 = pnand %p152, %p153
    %p155 = pneg %p154
    // Predicated region
    $region29: #{transformer_forward.38} parent=5 // pred_check
      _
    $region30: #{transformer_forward.38} parent=5 // pred_check_branch
      %157 = sbr.rel (%p154) target = $region32
    $region31: #{transformer_forward.38} parent=5 // pred_region
      %s158 = ssub.s32 %s9, 1
      %p159 = scmp.lt.s32.totalorder %s14, 1
      %s160 = scalar_select %p159, %s14, 1
      %s161 = smul.addr %s160, 8
      %s162 = scalar_lea.vmem %s0, %s161
      %p163 = pneg %p35
      %p164 = pneg %p32
      %p165 = scmp.lt.s32.totalorder %s14, 1
      %s166 = scalar_select %p165, %s14, 1
      %s167 = smul.addr %s166, 8
      %s168 = scalar_lea.vmem %s1, %s167
      %p169 = pneg %p61
      %p170 = pneg %p58
      %p171 = scmp.lt.s32.totalorder %s14, 1
      %s172 = scalar_select %p171, %s14, 1
      %s173 = scalar_lea.vmem %s2, %s172
      %p174 = pneg %p87
      %p175 = pneg %p84
      %p176 = pneg %p113
      %p177 = pneg %p110
      %p178 = scmp.lt.s32.totalorder %s14, 1
      %s179 = scalar_select %p178, %s14, 1
      %s180 = smul.addr %s179, 8
      %s181 = scalar_lea.vmem %s3, %s180
      %p182 = scmp.lt.s32.totalorder %s14, 1
      %s183 = scalar_select %p182, %s14, 1
      %s184 = smul.addr %s183, 8
      %s185 = scalar_lea.vmem %s0, %s184
      %p186 = scmp.lt.s32.totalorder %s14, 1
      %s187 = scalar_select %p186, %s14, 1
      %s188 = smul.addr %s187, 8
      %s189 = scalar_lea.vmem %s1, %s188
      %p190 = scmp.lt.s32.totalorder %s14, 1
      %s191 = scalar_select %p190, %s14, 1
      %s192 = scalar_lea.vmem %s2, %s191
      %p193 = scmp.lt.s32.totalorder %s14, 1
      %s194 = scalar_select %p193, %s14, 1
      %s195 = smul.addr %s194, 8
      %s196 = scalar_lea.vmem %s3, %s195
      %v198 = vld [vmem:[%s185] sm:$0xff]
      %v199 = vld [vmem:[%s189] sm:$0xff]
      %v200 = vpack.c.bf16 %v198, %v198
      %v201 = vpack.c.bf16 %v199, %v199
      %v202 = vld [vmem:[%s192] sm:$0x1]
      %vm203 = vcmask 64512
      %v205 = vsel %vm203, %v200, 0
      %v208 = vsel %vm203, %v201, 0
      %210 = vmatprep.subr.bf16.mxu0 0
      %211 = vmatpush1.bf16.xpose.msra.mxu0 0
      %212 = vmatprep.subr.bf16.mxu0 0
      %213 = vmatpush1.bf16.xpose.msra.mxu0 0
      %214 = vmatprep.subr.bf16.mxu0 0
      %215 = vmatpush1.bf16.xpose.msra.mxu0 0
      %216 = vmatprep.subr.bf16.mxu0 0
      %217 = vmatpush1.bf16.xpose.msra.mxu0 0
      %218 = vmatprep.subr.bf16.mxu0 0
      %219 = vmatpush1.bf16.xpose.msra.mxu0 0
      %220 = vmatprep.subr.bf16.mxu0 0
      %221 = vmatpush1.bf16.xpose.msra.mxu0 0
      %222 = vmatprep.subr.bf16.mxu0 0
      %223 = vmatpush1.bf16.xpose.msra.mxu0 0
      %224 = vmatprep.subr.bf16.mxu0 0
      %225 = vmatpush1.bf16.xpose.msra.mxu0 %v208
      %226 = vmatprep.subr.bf16.mxu0 0
      %227 = vmatpush2.bf16.xpose.msra.mxu0 0
      %228 = vmatprep.subr.bf16.mxu0 0
      %229 = vmatpush2.bf16.xpose.msra.mxu0 0
      %230 = vmatprep.subr.bf16.mxu0 0
      %231 = vmatpush2.bf16.xpose.msra.mxu0 0
      %232 = vmatprep.subr.bf16.mxu0 0
      %233 = vmatpush2.bf16.xpose.msra.mxu0 0
      %234 = vmatprep.subr.bf16.mxu0 0
      %235 = vmatpush2.bf16.xpose.msra.mxu0 0
      %236 = vmatprep.subr.bf16.mxu0 0
      %237 = vmatpush2.bf16.xpose.msra.mxu0 0
      %238 = vmatprep.subr.bf16.mxu0 0
      %239 = vmatpush2.bf16.xpose.msra.mxu0 0
      %240 = vmatprep.subr.bf16.mxu0 0
      %241 = vmatpush2.bf16.xpose.msra.mxu0 0
      %242 = vmatprep.mubr.bf16.mxu0 0
      %243 = vmatmul.mubr.bf16.gmra.mxu0 %v205
      %v244 = vpop.f32.mrf.mxu0
      %v245 = vadd.f32 0.0, %v244
      %v246 = vpop.f32.mrf.mxu0
      %v247 = vpop.f32.mrf.mxu0
      %v248 = vpop.f32.mrf.mxu0
      %249 = vdwg.mxu0
      %vm250 = vcmp.gt.f32.partialorder %v202, 0.0
      %v251 = vsel %vm250, 1, 0
      %v252 = vlaneseq
      %v253 = vshrl.u32 %v252, 7
      %v254 = vsub.s32 0, %v253
      %v255 = vrot.slane %v251, %v254
      %vm256 = vcmp.eq.s32.totalorder %v255, 1
      %v257 = vsel %vm256, %v245, -1e+09
      %v258 = vsel %vm203, %v257, -inf
      %259 = vmax.xlane.f32.xlu0 %v258
      %v260 = vpop.xlane.xlu0 %259
      %v261 = vsub.f32 %v257, %v260
      %v262 = vmul.f32 %v261, 1.442695
      %v263 = vpow.pop %v262
      %v264 = vsel %vm203, %v263, 0.0
      %265 = vadd.xlane.f32.xlu0 %v264
      %v266 = vpop.xlane.xlu0 %265
      %v267 = vrcp.pop %v266
      %v268 = vmul.f32 1.0, %v267
      %v269 = vmul.f32 %v263, %v268
      %v270 = vpack.c.bf16 %v269, %v269
      %272 = vrot.lane.b32.xlu0 %v201, 96
      %v273 = vpop.permute.xlu0 %272
      %v275 = vsel %vm203, %v270, 0
      %vm277 = vcmask 1043456
      %v279 = vsel %vm277, %v273, 0
      %281 = vmatprep.subr.bf16.mxu0 0
      %282 = vmatpush1.bf16.msra.mxu0 0
      %283 = vmatprep.subr.bf16.mxu0 0
      %284 = vmatpush1.bf16.msra.mxu0 0
      %285 = vmatprep.subr.bf16.mxu0 0
      %286 = vmatpush1.bf16.msra.mxu0 0
      %287 = vmatprep.subr.bf16.mxu0 0
      %288 = vmatpush1.bf16.msra.mxu0 0
      %289 = vmatprep.subr.bf16.mxu0 0
      %290 = vmatpush1.bf16.msra.mxu0 0
      %291 = vmatprep.subr.bf16.mxu0 0
      %292 = vmatpush1.bf16.msra.mxu0 0
      %293 = vmatprep.subr.bf16.mxu0 0
      %294 = vmatpush1.bf16.msra.mxu0 0
      %295 = vmatprep.subr.bf16.mxu0 0
      %296 = vmatpush1.bf16.msra.mxu0 %v279
      %297 = vmatprep.subr.bf16.mxu0 0
      %298 = vmatpush2.bf16.msra.mxu0 0
      %299 = vmatprep.subr.bf16.mxu0 0
      %300 = vmatpush2.bf16.msra.mxu0 0
      %301 = vmatprep.subr.bf16.mxu0 0
      %302 = vmatpush2.bf16.msra.mxu0 0
      %303 = vmatprep.subr.bf16.mxu0 0
      %304 = vmatpush2.bf16.msra.mxu0 0
      %305 = vmatprep.subr.bf16.mxu0 0
      %306 = vmatpush2.bf16.msra.mxu0 0
      %307 = vmatprep.subr.bf16.mxu0 0
      %308 = vmatpush2.bf16.msra.mxu0 0
      %309 = vmatprep.subr.bf16.mxu0 0
      %310 = vmatpush2.bf16.msra.mxu0 0
      %311 = vmatprep.subr.bf16.mxu0 0
      %312 = vmatpush2.bf16.msra.mxu0 0
      %313 = vmatprep.mubr.bf16.mxu0 0
      %314 = vmatmul.mubr.bf16.gmra.mxu0 %v275
      %v315 = vpop.f32.mrf.mxu0
      %v316 = vadd.f32 0.0, %v315
      %v317 = vpop.f32.mrf.mxu0
      %v318 = vpop.f32.mrf.mxu0
      %v319 = vpop.f32.mrf.mxu0
      %320 = vdwg.mxu0
      %322 = vrot.lane.b32.xlu0 %v200, 120
      %v323 = vpop.permute.xlu0 %322
      %324 = vrot.lane.b32.xlu0 %v201, 120
      %v325 = vpop.permute.xlu0 %324
      %v327 = vsel %vm203, %v323, 0
      %v330 = vsel %vm203, %v325, 0
      %332 = vmatprep.subr.bf16.mxu0 0
      %333 = vmatpush1.bf16.xpose.msra.mxu0 0
      %334 = vmatprep.subr.bf16.mxu0 0
      %335 = vmatpush1.bf16.xpose.msra.mxu0 0
      %336 = vmatprep.subr.bf16.mxu0 0
      %337 = vmatpush1.bf16.xpose.msra.mxu0 0
      %338 = vmatprep.subr.bf16.mxu0 0
      %339 = vmatpush1.bf16.xpose.msra.mxu0 0
      %340 = vmatprep.subr.bf16.mxu0 0
      %341 = vmatpush1.bf16.xpose.msra.mxu0 0
      %342 = vmatprep.subr.bf16.mxu0 0
      %343 = vmatpush1.bf16.xpose.msra.mxu0 0
      %344 = vmatprep.subr.bf16.mxu0 0
      %345 = vmatpush1.bf16.xpose.msra.mxu0 0
      %346 = vmatprep.subr.bf16.mxu0 0
      %347 = vmatpush1.bf16.xpose.msra.mxu0 %v330
      %348 = vmatprep.subr.bf16.mxu0 0
      %349 = vmatpush2.bf16.xpose.msra.mxu0 0
      %350 = vmatprep.subr.bf16.mxu0 0
      %351 = vmatpush2.bf16.xpose.msra.mxu0 0
      %352 = vmatprep.subr.bf16.mxu0 0
      %353 = vmatpush2.bf16.xpose.msra.mxu0 0
      %354 = vmatprep.subr.bf16.mxu0 0
      %355 = vmatpush2.bf16.xpose.msra.mxu0 0
      %356 = vmatprep.subr.bf16.mxu0 0
      %357 = vmatpush2.bf16.xpose.msra.mxu0 0
      %358 = vmatprep.subr.bf16.mxu0 0
      %359 = vmatpush2.bf16.xpose.msra.mxu0 0
      %360 = vmatprep.subr.bf16.mxu0 0
      %361 = vmatpush2.bf16.xpose.msra.mxu0 0
      %362 = vmatprep.subr.bf16.mxu0 0
      %363 = vmatpush2.bf16.xpose.msra.mxu0 0
      %364 = vmatprep.mubr.bf16.mxu0 0
      %365 = vmatmul.mubr.bf16.gmra.mxu0 %v327
      %v366 = vpop.f32.mrf.mxu0
      %v367 = vadd.f32 0.0, %v366
      %v368 = vpop.f32.mrf.mxu0
      %v369 = vpop.f32.mrf.mxu0
      %v370 = vpop.f32.mrf.mxu0
      %371 = vdwg.mxu0
      %v372 = vsel %vm256, %v367, -1e+09
      %v373 = vsel %vm203, %v372, -inf
      %374 = vmax.xlane.f32.xlu0 %v373
      %v375 = vpop.xlane.xlu0 %374
      %v376 = vsub.f32 %v372, %v375
      %v377 = vmul.f32 %v376, 1.442695
      %v378 = vpow.pop %v377
      %v379 = vsel %vm203, %v378, 0.0
      %380 = vadd.xlane.f32.xlu0 %v379
      %v381 = vpop.xlane.xlu0 %380
      %v382 = vrcp.pop %v381
      %v383 = vmul.f32 1.0, %v382
      %v384 = vmul.f32 %v378, %v383
      %v385 = vpack.c.bf16 %v384, %v384
      %386 = vrot.lane.b32.xlu0 %v201, 88
      %v387 = vpop.permute.xlu0 %386
      %v389 = vsel %vm203, %v385, 0
      %v392 = vsel %vm277, %v387, 0
      %394 = vmatprep.subr.bf16.mxu0 0
      %395 = vmatpush1.bf16.msra.mxu0 0
      %396 = vmatprep.subr.bf16.mxu0 0
      %397 = vmatpush1.bf16.msra.mxu0 0
      %398 = vmatprep.subr.bf16.mxu0 0
      %399 = vmatpush1.bf16.msra.mxu0 0
      %400 = vmatprep.subr.bf16.mxu0 0
      %401 = vmatpush1.bf16.msra.mxu0 0
      %402 = vmatprep.subr.bf16.mxu0 0
      %403 = vmatpush1.bf16.msra.mxu0 0
      %404 = vmatprep.subr.bf16.mxu0 0
      %405 = vmatpush1.bf16.msra.mxu0 0
      %406 = vmatprep.subr.bf16.mxu0 0
      %407 = vmatpush1.bf16.msra.mxu0 0
      %408 = vmatprep.subr.bf16.mxu0 0
      %409 = vmatpush1.bf16.msra.mxu0 %v392
      %410 = vmatprep.subr.bf16.mxu0 0
      %411 = vmatpush2.bf16.msra.mxu0 0
      %412 = vmatprep.subr.bf16.mxu0 0
      %413 = vmatpush2.bf16.msra.mxu0 0
      %414 = vmatprep.subr.bf16.mxu0 0
      %415 = vmatpush2.bf16.msra.mxu0 0
      %416 = vmatprep.subr.bf16.mxu0 0
      %417 = vmatpush2.bf16.msra.mxu0 0
      %418 = vmatprep.subr.bf16.mxu0 0
      %419 = vmatpush2.bf16.msra.mxu0 0
      %420 = vmatprep.subr.bf16.mxu0 0
      %421 = vmatpush2.bf16.msra.mxu0 0
      %422 = vmatprep.subr.bf16.mxu0 0
      %423 = vmatpush2.bf16.msra.mxu0 0
      %424 = vmatprep.subr.bf16.mxu0 0
      %425 = vmatpush2.bf16.msra.mxu0 0
      %426 = vmatprep.mubr.bf16.mxu0 0
      %427 = vmatmul.mubr.bf16.gmra.mxu0 %v389
      %v428 = vpop.f32.mrf.mxu0
      %v429 = vadd.f32 0.0, %v428
      %v430 = vpop.f32.mrf.mxu0
      %v431 = vpop.f32.mrf.mxu0
      %v432 = vpop.f32.mrf.mxu0
      %433 = vdwg.mxu0
      %434 = vrot.lane.b32.xlu0 %v200, 112
      %v435 = vpop.permute.xlu0 %434
      %436 = vrot.lane.b32.xlu0 %v201, 112
      %v437 = vpop.permute.xlu0 %436
      %v439 = vsel %vm203, %v435, 0
      %v442 = vsel %vm203, %v437, 0
      %444 = vmatprep.subr.bf16.mxu0 0
      %445 = vmatpush1.bf16.xpose.msra.mxu0 0
      %446 = vmatprep.subr.bf16.mxu0 0
      %447 = vmatpush1.bf16.xpose.msra.mxu0 0
      %448 = vmatprep.subr.bf16.mxu0 0
      %449 = vmatpush1.bf16.xpose.msra.mxu0 0
      %450 = vmatprep.subr.bf16.mxu0 0
      %451 = vmatpush1.bf16.xpose.msra.mxu0 0
      %452 = vmatprep.subr.bf16.mxu0 0
      %453 = vmatpush1.bf16.xpose.msra.mxu0 0
      %454 = vmatprep.subr.bf16.mxu0 0
      %455 = vmatpush1.bf16.xpose.msra.mxu0 0
      %456 = vmatprep.subr.bf16.mxu0 0
      %457 = vmatpush1.bf16.xpose.msra.mxu0 0
      %458 = vmatprep.subr.bf16.mxu0 0
      %459 = vmatpush1.bf16.xpose.msra.mxu0 %v442
      %460 = vmatprep.subr.bf16.mxu0 0
      %461 = vmatpush2.bf16.xpose.msra.mxu0 0
      %462 = vmatprep.subr.bf16.mxu0 0
      %463 = vmatpush2.bf16.xpose.msra.mxu0 0
      %464 = vmatprep.subr.bf16.mxu0 0
      %465 = vmatpush2.bf16.xpose.msra.mxu0 0
      %466 = vmatprep.subr.bf16.mxu0 0
      %467 = vmatpush2.bf16.xpose.msra.mxu0 0
      %468 = vmatprep.subr.bf16.mxu0 0
      %469 = vmatpush2.bf16.xpose.msra.mxu0 0
      %470 = vmatprep.subr.bf16.mxu0 0
      %471 = vmatpush2.bf16.xpose.msra.mxu0 0
      %472 = vmatprep.subr.bf16.mxu0 0
      %473 = vmatpush2.bf16.xpose.msra.mxu0 0
      %474 = vmatprep.subr.bf16.mxu0 0
      %475 = vmatpush2.bf16.xpose.msra.mxu0 0
      %476 = vmatprep.mubr.bf16.mxu0 0
      %477 = vmatmul.mubr.bf16.gmra.mxu0 %v439
      %v478 = vpop.f32.mrf.mxu0
      %v479 = vadd.f32 0.0, %v478
      %v480 = vpop.f32.mrf.mxu0
      %v481 = vpop.f32.mrf.mxu0
      %v482 = vpop.f32.mrf.mxu0
      %483 = vdwg.mxu0
      %v484 = vsel %vm256, %v479, -1e+09
      %v485 = vsel %vm203, %v484, -inf
      %486 = vmax.xlane.f32.xlu0 %v485
      %v487 = vpop.xlane.xlu0 %486
      %v488 = vsub.f32 %v484, %v487
      %v489 = vmul.f32 %v488, 1.442695
      %v490 = vpow.pop %v489
      %v491 = vsel %vm203, %v490, 0.0
      %492 = vadd.xlane.f32.xlu0 %v491
      %v493 = vpop.xlane.xlu0 %492
      %v494 = vrcp.pop %v493
      %v495 = vmul.f32 1.0, %v494
      %v496 = vmul.f32 %v490, %v495
      %v497 = vpack.c.bf16 %v496, %v496
      %498 = vrot.lane.b32.xlu0 %v201, 80
      %v499 = vpop.permute.xlu0 %498
      %v501 = vsel %vm203, %v497, 0
      %v504 = vsel %vm277, %v499, 0
      %506 = vmatprep.subr.bf16.mxu0 0
      %507 = vmatpush1.bf16.msra.mxu0 0
      %508 = vmatprep.subr.bf16.mxu0 0
      %509 = vmatpush1.bf16.msra.mxu0 0
      %510 = vmatprep.subr.bf16.mxu0 0
      %511 = vmatpush1.bf16.msra.mxu0 0
      %512 = vmatprep.subr.bf16.mxu0 0
      %513 = vmatpush1.bf16.msra.mxu0 0
      %514 = vmatprep.subr.bf16.mxu0 0
      %515 = vmatpush1.bf16.msra.mxu0 0
      %516 = vmatprep.subr.bf16.mxu0 0
      %517 = vmatpush1.bf16.msra.mxu0 0
      %518 = vmatprep.subr.bf16.mxu0 0
      %519 = vmatpush1.bf16.msra.mxu0 0
      %520 = vmatprep.subr.bf16.mxu0 0
      %521 = vmatpush1.bf16.msra.mxu0 %v504
      %522 = vmatprep.subr.bf16.mxu0 0
      %523 = vmatpush2.bf16.msra.mxu0 0
      %524 = vmatprep.subr.bf16.mxu0 0
      %525 = vmatpush2.bf16.msra.mxu0 0
      %526 = vmatprep.subr.bf16.mxu0 0
      %527 = vmatpush2.bf16.msra.mxu0 0
      %528 = vmatprep.subr.bf16.mxu0 0
      %529 = vmatpush2.bf16.msra.mxu0 0
      %530 = vmatprep.subr.bf16.mxu0 0
      %531 = vmatpush2.bf16.msra.mxu0 0
      %532 = vmatprep.subr.bf16.mxu0 0
      %533 = vmatpush2.bf16.msra.mxu0 0
      %534 = vmatprep.subr.bf16.mxu0 0
      %535 = vmatpush2.bf16.msra.mxu0 0
      %536 = vmatprep.subr.bf16.mxu0 0
      %537 = vmatpush2.bf16.msra.mxu0 0
      %538 = vmatprep.mubr.bf16.mxu0 0
      %539 = vmatmul.mubr.bf16.gmra.mxu0 %v501
      %v540 = vpop.f32.mrf.mxu0
      %v541 = vadd.f32 0.0, %v540
      %v542 = vpop.f32.mrf.mxu0
      %v543 = vpop.f32.mrf.mxu0
      %v544 = vpop.f32.mrf.mxu0
      %545 = vdwg.mxu0
      %546 = vrot.lane.b32.xlu0 %v200, 104
      %v547 = vpop.permute.xlu0 %546
      %548 = vrot.lane.b32.xlu0 %v201, 104
      %v549 = vpop.permute.xlu0 %548
      %v551 = vsel %vm203, %v547, 0
      %v554 = vsel %vm203, %v549, 0
      %556 = vmatprep.subr.bf16.mxu0 0
      %557 = vmatpush1.bf16.xpose.msra.mxu0 0
      %558 = vmatprep.subr.bf16.mxu0 0
      %559 = vmatpush1.bf16.xpose.msra.mxu0 0
      %560 = vmatprep.subr.bf16.mxu0 0
      %561 = vmatpush1.bf16.xpose.msra.mxu0 0
      %562 = vmatprep.subr.bf16.mxu0 0
      %563 = vmatpush1.bf16.xpose.msra.mxu0 0
      %564 = vmatprep.subr.bf16.mxu0 0
      %565 = vmatpush1.bf16.xpose.msra.mxu0 0
      %566 = vmatprep.subr.bf16.mxu0 0
      %567 = vmatpush1.bf16.xpose.msra.mxu0 0
      %568 = vmatprep.subr.bf16.mxu0 0
      %569 = vmatpush1.bf16.xpose.msra.mxu0 0
      %570 = vmatprep.subr.bf16.mxu0 0
      %571 = vmatpush1.bf16.xpose.msra.mxu0 %v554
      %572 = vmatprep.subr.bf16.mxu0 0
      %573 = vmatpush2.bf16.xpose.msra.mxu0 0
      %574 = vmatprep.subr.bf16.mxu0 0
      %575 = vmatpush2.bf16.xpose.msra.mxu0 0
      %576 = vmatprep.subr.bf16.mxu0 0
      %577 = vmatpush2.bf16.xpose.msra.mxu0 0
      %578 = vmatprep.subr.bf16.mxu0 0
      %579 = vmatpush2.bf16.xpose.msra.mxu0 0
      %580 = vmatprep.subr.bf16.mxu0 0
      %581 = vmatpush2.bf16.xpose.msra.mxu0 0
      %582 = vmatprep.subr.bf16.mxu0 0
      %583 = vmatpush2.bf16.xpose.msra.mxu0 0
      %584 = vmatprep.subr.bf16.mxu0 0
      %585 = vmatpush2.bf16.xpose.msra.mxu0 0
      %586 = vmatprep.subr.bf16.mxu0 0
      %587 = vmatpush2.bf16.xpose.msra.mxu0 0
      %588 = vmatprep.mubr.bf16.mxu0 0
      %589 = vmatmul.mubr.bf16.gmra.mxu0 %v551
      %v590 = vpop.f32.mrf.mxu0
      %v591 = vadd.f32 0.0, %v590
      %v592 = vpop.f32.mrf.mxu0
      %v593 = vpop.f32.mrf.mxu0
      %v594 = vpop.f32.mrf.mxu0
      %595 = vdwg.mxu0
      %v596 = vsel %vm256, %v591, -1e+09
      %v597 = vsel %vm203, %v596, -inf
      %598 = vmax.xlane.f32.xlu0 %v597
      %v599 = vpop.xlane.xlu0 %598
      %v600 = vsub.f32 %v596, %v599
      %v601 = vmul.f32 %v600, 1.442695
      %v602 = vpow.pop %v601
      %v603 = vsel %vm203, %v602, 0.0
      %604 = vadd.xlane.f32.xlu0 %v603
      %v605 = vpop.xlane.xlu0 %604
      %v606 = vrcp.pop %v605
      %v607 = vmul.f32 1.0, %v606
      %v608 = vmul.f32 %v602, %v607
      %v609 = vpack.c.bf16 %v608, %v608
      %610 = vrot.lane.b32.xlu0 %v201, 72
      %v611 = vpop.permute.xlu0 %610
      %v613 = vsel %vm203, %v609, 0
      %v616 = vsel %vm277, %v611, 0
      %618 = vmatprep.subr.bf16.mxu0 0
      %619 = vmatpush1.bf16.msra.mxu0 0
      %620 = vmatprep.subr.bf16.mxu0 0
      %621 = vmatpush1.bf16.msra.mxu0 0
      %622 = vmatprep.subr.bf16.mxu0 0
      %623 = vmatpush1.bf16.msra.mxu0 0
      %624 = vmatprep.subr.bf16.mxu0 0
      %625 = vmatpush1.bf16.msra.mxu0 0
      %626 = vmatprep.subr.bf16.mxu0 0
      %627 = vmatpush1.bf16.msra.mxu0 0
      %628 = vmatprep.subr.bf16.mxu0 0
      %629 = vmatpush1.bf16.msra.mxu0 0
      %630 = vmatprep.subr.bf16.mxu0 0
      %631 = vmatpush1.bf16.msra.mxu0 0
      %632 = vmatprep.subr.bf16.mxu0 0
      %633 = vmatpush1.bf16.msra.mxu0 %v616
      %634 = vmatprep.subr.bf16.mxu0 0
      %635 = vmatpush2.bf16.msra.mxu0 0
      %636 = vmatprep.subr.bf16.mxu0 0
      %637 = vmatpush2.bf16.msra.mxu0 0
      %638 = vmatprep.subr.bf16.mxu0 0
      %639 = vmatpush2.bf16.msra.mxu0 0
      %640 = vmatprep.subr.bf16.mxu0 0
      %641 = vmatpush2.bf16.msra.mxu0 0
      %642 = vmatprep.subr.bf16.mxu0 0
      %643 = vmatpush2.bf16.msra.mxu0 0
      %644 = vmatprep.subr.bf16.mxu0 0
      %645 = vmatpush2.bf16.msra.mxu0 0
      %646 = vmatprep.subr.bf16.mxu0 0
      %647 = vmatpush2.bf16.msra.mxu0 0
      %648 = vmatprep.subr.bf16.mxu0 0
      %649 = vmatpush2.bf16.msra.mxu0 0
      %650 = vmatprep.mubr.bf16.mxu0 0
      %651 = vmatmul.mubr.bf16.gmra.mxu0 %v613
      %v652 = vpop.f32.mrf.mxu0
      %v653 = vadd.f32 0.0, %v652
      %v654 = vpop.f32.mrf.mxu0
      %v655 = vpop.f32.mrf.mxu0
      %v656 = vpop.f32.mrf.mxu0
      %657 = vdwg.mxu0
      %659 = vrot.lane.b32.xlu0 %v429, 8
      %v660 = vpop.permute.xlu0 %659
      %663 = vrot.lane.b32.xlu0 %v541, 16
      %v664 = vpop.permute.xlu0 %663
      %667 = vrot.lane.b32.xlu0 %v653, 24
      %v668 = vpop.permute.xlu0 %667
      %v670 = vsel %vm203, %v316, %v660
      %vm671 = vcmask 130048
      %v672 = vsel %vm671, %v670, %v664
      %vm673 = vcmask 195584
      %v674 = vsel %vm673, %v672, %v668
      %vm675 = vcmask 261120
      %676 = vst.msk [vmem:[%s196] sm:$0xff] %vm675, %v674
      %p677 = scmp.lt.s32.totalorder %s14, 1
      %s678 = scalar_select %p677, %s14, 1
      %s679 = smul.addr %s678, 8
      %s680 = scalar_lea.vmem %s3, %s679
      // Predicated region
      $region33: #{transformer_forward.38} parent=31 // pred_check
        %p681 = pneg %p110
      $region34: #{transformer_forward.38} parent=31 // pred_check_branch
        %683 = sbr.rel (%p681) target = $region36
      $region35: #{transformer_forward.38} parent=31 // pred_region
        _
      $region36: #{transformer_forward.38} parent=31 // pred_fallthru
        _
    $region32: #{transformer_forward.38} parent=5 // pred_fallthru
      _
    %p684 = scmp.le.s32.totalorder 2, %s9
    // Predicated region
    $region37: #{transformer_forward.38} parent=5 // pred_check
      %p685 = pneg %p684
    $region38: #{transformer_forward.38} parent=5 // pred_check_branch
      %687 = sbr.rel (%p685) target = $region40
    $region39: #{transformer_forward.38} parent=5 // pred_region
      %s688 = ssub.s32 %s9, 2
      // Predicated region
      $region41: #{transformer_forward.38} parent=39 // pred_check
        %p689 = pneg %p116
      $region42: #{transformer_forward.38} parent=39 // pred_check_branch
        %691 = sbr.rel (%p689) target = $region44
      $region43: #{transformer_forward.38} parent=39 // pred_region
        %p692 = scmp.lt.s32.totalorder %s15, 1
        %s693 = scalar_select %p692, %s15, 1
        %s694 = smul.addr %s693, 8
        %s695 = scalar_lea.vmem %s3, %s694
      $region44: #{transformer_forward.38} parent=39 // pred_fallthru
        _
    $region40: #{transformer_forward.38} parent=5 // pred_fallthru
      _
  $region6: #{transformer_forward.38} parent=0 // loop_footer
    %s13 = sadd.s32 1, %s9
  $region7: #{transformer_forward.38} parent=0 // loop_footer_branch
    %8 = sbr.rel target = $region3
  $region8: #{transformer_forward.38} parent=0 // loop_exit
    _

// kernel: transformer_forward.49
$region0: #{transformer_forward.49}
  #allocation0 [shape = 'u32[]', space=smem, size = 0x4, offset = 0x4, fixed_abs, tag = 'smem constant byte address 0x4 - core index']
  #allocation1 [shape = 'u32[144,128]{1,0:T(1,128)}', space=vmem, size = 0x12000, scoped, tag = 'internal scratch']
  %s0 = inlined_call_operand.vmem [shape: f32[16,32], index: 0, kind: input, shape index: {}]
  %s1 = inlined_call_operand.vmem [shape: bf16[32,128], index: 1, kind: input, shape index: {}]
  %s2 = inlined_call_operand.vmem [shape: f32[1,128], index: 2, kind: input, shape index: {}]
  %s3 = inlined_call_operand.vmem [shape: f32[1,32], index: 3, kind: input, shape index: {}]
  %s4 = inlined_call_operand.vmem [shape: f32[1,32], index: 4, kind: input, shape index: {}]
  %s5 = inlined_call_operand.hbm [shape: f32[16,128], index: 5, kind: output, shape index: {}]
  %s6 = sld [smem:[#allocation0]]
  $region30: #{transformer_forward.49} parent=0
    _
  %s8 = ssub.s32 1, %s6
  %s9 = scalar_select 0, %s8, %s6
  $region1: #{transformer_forward.49} parent=0
    #allocation2 [shape = 'u8[8192]{0}', space=vmem, size = 0x2000, scoped, tag = 'output window, operand 0, single buffered']
    #allocation3 [shape = 's32[1]{0}', space=sflag, size = 0x4, scoped, tag = 'scoped memory for transformer_forward.49']
    %10 = vsyncpa [#allocation3], 0
    // Predicated region
    $region2: #{transformer_forward.49} parent=1 // pred_check
      _
    $region3: #{transformer_forward.49} parent=1 // pred_check_branch
      %12 = sbr.rel (0) target = $region5
    $region4: #{transformer_forward.49} parent=1 // pred_region
      _
    $region5: #{transformer_forward.49} parent=1 // pred_fallthru
      _
    // Predicated region
    $region6: #{transformer_forward.49} parent=1 // pred_check
      _
    $region7: #{transformer_forward.49} parent=1 // pred_check_branch
      %14 = sbr.rel (0) target = $region9
    $region8: #{transformer_forward.49} parent=1 // pred_region
      _
    $region9: #{transformer_forward.49} parent=1 // pred_fallthru
      _
    // Predicated region
    $region10: #{transformer_forward.49} parent=1 // pred_check
      _
    $region11: #{transformer_forward.49} parent=1 // pred_check_branch
      %16 = sbr.rel (0) target = $region13
    $region12: #{transformer_forward.49} parent=1 // pred_region
      _
    $region13: #{transformer_forward.49} parent=1 // pred_fallthru
      _
    // Predicated region
    $region14: #{transformer_forward.49} parent=1 // pred_check
      _
    $region15: #{transformer_forward.49} parent=1 // pred_check_branch
      %18 = sbr.rel (0) target = $region17
    $region16: #{transformer_forward.49} parent=1 // pred_region
      _
    $region17: #{transformer_forward.49} parent=1 // pred_fallthru
      _
    // Predicated region
    $region18: #{transformer_forward.49} parent=1 // pred_check
      _
    $region19: #{transformer_forward.49} parent=1 // pred_check_branch
      %20 = sbr.rel (0) target = $region21
    $region20: #{transformer_forward.49} parent=1 // pred_region
      _
    $region21: #{transformer_forward.49} parent=1 // pred_fallthru
      _
    %v22 = vld [vmem:[%s0] sm:$0xff]
    %v23 = vld [vmem:[%s0 + $0x8] sm:$0xff]
    %vm24 = vcmask 261120
    %v25 = vsel %vm24, %v22, 0.0
    %26 = vadd.xlane.f32.xlu0 %v25
    %v27 = vpop.xlane.xlu0 %26
    %v28 = vsel %vm24, %v23, 0.0
    %29 = vadd.xlane.f32.xlu0 %v28
    %v30 = vpop.xlane.xlu0 %29
    %v31 = vrcp.pop 32.0
    %v32 = vmul.f32 %v27, %v31
    %v33 = vmul.f32 %v30, %v31
    %v34 = vsub.f32 %v22, %v32
    %v35 = vsub.f32 %v23, %v33
    %v36 = vmul.f32 %v34, %v34
    %v37 = vmul.f32 %v35, %v35
    %v38 = vsel %vm24, %v36, 0.0
    %39 = vadd.xlane.f32.xlu0 %v38
    %v40 = vpop.xlane.xlu0 %39
    %v41 = vsel %vm24, %v37, 0.0
    %42 = vadd.xlane.f32.xlu0 %v41
    %v43 = vpop.xlane.xlu0 %42
    %v44 = vmul.f32 %v40, %v31
    %v45 = vmul.f32 %v43, %v31
    %v46 = vadd.f32 %v44, 1e-05
    %v47 = vadd.f32 %v45, 1e-05
    %v48 = vrsqrt.pop %v46
    %v49 = vrsqrt.pop %v47
    %v50 = vmul.f32 %v34, %v48
    %v51 = vmul.f32 %v35, %v49
    %v52 = vld [vmem:[%s3] sm:$0x1]
    %v54 = vlaneseq
    %v55 = vshrl.u32 %v54, 7
    %v56 = vsub.s32 0, %v55
    %v57 = vrot.slane %v52, %v56
    %v59 = vmul.f32 %v50, %v57
    %v60 = vmul.f32 %v51, %v57
    %v61 = vld [vmem:[%s4] sm:$0x1]
    %v63 = vlaneseq
    %v64 = vshrl.u32 %v63, 7
    %v65 = vsub.s32 0, %v64
    %v66 = vrot.slane %v61, %v65
    %v68 = vadd.f32 %v59, %v66
    %v69 = vadd.f32 %v60, %v66
    %v70 = vpack.c.bf16 %v69, %v68
    %v71 = vld [vmem:[%s1] sm:$0xf]
    %v72 = vld [vmem:[%s1 + $0x4] sm:$0xf]
    %v73 = vld [vmem:[%s1 + $0x8] sm:$0xf]
    %v74 = vld [vmem:[%s1 + $0xc] sm:$0xf]
    %v75 = vld [vmem:[%s2] sm:$0x1]
    %v77 = vlaneseq
    %v78 = vshrl.u32 %v77, 7
    %v79 = vsub.s32 0, %v78
    %v80 = vrot.slane %v75, %v79
    %v86 = vunpack.c.l.b16 %v71
    %v87 = vunpack.c.l.b16 %v72
    %v88 = vunpack.c.l.b16 %v73
    %v89 = vunpack.c.l.b16 %v74
    %v90 = vpack.c.b16 %v87, %v86
    %v91 = vpack.c.b16 %v89, %v88
    %v95 = vsel %vm24, %v70, 0
    %97 = vmatprep.subr.bf16.mxu0 0
    %98 = vmatpush1.bf16.msra.mxu0 0
    %99 = vmatprep.subr.bf16.mxu0 0
    %100 = vmatpush1.bf16.msra.mxu0 0
    %101 = vmatprep.subr.bf16.mxu0 0
    %102 = vmatpush1.bf16.msra.mxu0 0
    %103 = vmatprep.subr.bf16.mxu0 0
    %104 = vmatpush1.bf16.msra.mxu0 0
    %105 = vmatprep.subr.bf16.mxu0 0
    %106 = vmatpush1.bf16.msra.mxu0 0
    %107 = vmatprep.subr.bf16.mxu0 0
    %108 = vmatpush1.bf16.msra.mxu0 0
    %109 = vmatprep.subr.bf16.mxu0 0
    %110 = vmatpush1.bf16.msra.mxu0 %v91
    %111 = vmatprep.subr.bf16.mxu0 0
    %112 = vmatpush1.bf16.msra.mxu0 %v90
    %113 = vmatprep.subr.bf16.mxu0 0
    %114 = vmatpush2.bf16.msra.mxu0 0
    %115 = vmatprep.subr.bf16.mxu0 0
    %116 = vmatpush2.bf16.msra.mxu0 0
    %117 = vmatprep.subr.bf16.mxu0 0
    %118 = vmatpush2.bf16.msra.mxu0 0
    %119 = vmatprep.subr.bf16.mxu0 0
    %120 = vmatpush2.bf16.msra.mxu0 0
    %121 = vmatprep.subr.bf16.mxu0 0
    %122 = vmatpush2.bf16.msra.mxu0 0
    %123 = vmatprep.subr.bf16.mxu0 0
    %124 = vmatpush2.bf16.msra.mxu0 0
    %125 = vmatprep.subr.bf16.mxu0 0
    %126 = vmatpush2.bf16.msra.mxu0 0
    %127 = vmatprep.subr.bf16.mxu0 0
    %128 = vmatpush2.bf16.msra.mxu0 0
    %129 = vmatprep.mubr.bf16.mxu0 0
    %130 = vmatmul.mubr.bf16.gmra.mxu0 %v95
    %v131 = vpop.f32.mrf.mxu0
    %v132 = vadd.f32 %v80, %v131
    %v133 = vpop.f32.mrf.mxu0
    %v134 = vpop.f32.mrf.mxu0
    %v135 = vadd.f32 %v80, %v134
    %v136 = vpop.f32.mrf.mxu0
    %137 = vdwg.mxu0
    %138 = vst [vmem:[#allocation2] sm:$0xff] %v132
    %139 = vst [vmem:[#allocation2 + $0x8] sm:$0xff] %v135
    // Predicated region
    $region22: #{transformer_forward.49} parent=1 // pred_check
      _
    $region23: #{transformer_forward.49} parent=1 // pred_check_branch
      %141 = sbr.rel (0) target = $region25
    $region24: #{transformer_forward.49} parent=1 // pred_region
      %s143 = ssub.s32 256, 256
      %144 = vsyncadd [#allocation3], %s143
      %s145 = sshll.u32 [#allocation2], 4
      %s146 = int_to_ptr.vmem [resolvable:$true] %s145
      %151 = dma.vmem_to_hbm [thread:$0]  %s146, 256, %s5, [#allocation3], 128, 128, 8
    $region25: #{transformer_forward.49} parent=1 // pred_fallthru
      _
    // Predicated region
    $region26: #{transformer_forward.49} parent=1 // pred_check
      _
    $region27: #{transformer_forward.49} parent=1 // pred_check_branch
      %153 = sbr.rel (0) target = $region29
    $region28: #{transformer_forward.49} parent=1 // pred_region
      %154 = dma.done [#allocation3], 256
    $region29: #{transformer_forward.49} parent=1 // pred_fallthru
      _
    %155 = vsyncpa [#allocation3], 1

</llo_original>
